<compile_context>
chip_gen: v7x
topology: tpu7x:2x2x1
jax: 0.10.0
libtpu: 0.0.40
codegen_flags: <defaults>
</compile_context>

<pallas_src>
import jax
import jax.numpy as jnp
from jax.experimental import pallas as pl
from jax.experimental.pallas import tpu as pltpu

# ---- module hyper-parameters (small but consistent with the PyTorch module) ----
MAXLEN = 100                    # sequence length == Conv1d out_channels == maxlen
NUM_CLASSES = 30
WINDOW_SIZES = (3, 4, 5, 6)
EMBED_DIM = 128                 # (module default is 300; kept small)
VOCAB_SIZE = 50
FC1_DIM = 400                   # len(windows_size) * maxlen -> 400
BATCH = 2

# ---- kernel-layout (lane/sublane aligned) sizes ----
LPAD = 128                      # padded sequence length (power of two, multiple of 8)
CPAD = 128                      # padded conv channels (one full lane tile per window)
VPAD = 128                      # padded vocab rows for the one-hot gather matmul
FCPAD = 512                     # padded fc1 width (4 * CPAD)
CLSPAD = 128                    # padded class dim (lane-dense output)
NWIN = len(WINDOW_SIZES)
MAXWIN = max(WINDOW_SIZES)      # 6 shifted id columns
# Masking safety: requires LPAD - MAXLEN >= MAXWIN - 1  (here 28 >= 5).


def textcnn_kernel(idsw_ref,                   # (B*LPAD, MAXWIN) int32: col k = ids[t+k]
                   wbig_ref,                   # (MAXWIN*VPAD, NWIN*CPAD) bf16 (emb folded in)
                   bcat_ref,                   # (1, NWIN*CPAD) f32 conv biases
                   w1_hbm, b1_ref,             # (NWIN*CPAD, FCPAD) bf16 in HBM, (1, FCPAD) f32
                   wf_hbm, bf_ref,             # (FCPAD, CLSPAD) bf16 in HBM, (1, CLSPAD) f32
                   out_ref,                    # (B, CLSPAD) f32
                   w1_vmem, wf_vmem, dma_sem):
    # Kick off FC weight DMAs immediately; they overlap the gather/conv/pool stage.
    cp_w1 = pltpu.make_async_copy(w1_hbm, w1_vmem, dma_sem.at[0])
    cp_wf = pltpu.make_async_copy(wf_hbm, wf_vmem, dma_sem.at[1])
    cp_w1.start()
    cp_wf.start()

    BLp, nshift = idsw_ref.shape
    B = out_ref.shape[0]
    Lpad = BLp // B

    # ---- windowed one-hot LHS: block k = onehot(ids[t+k])  (exact in bf16) ----
    ids = idsw_ref[...]                                              # (BLp, MAXWIN) int32
    vio = jax.lax.broadcasted_iota(jnp.int32, (BLp, VPAD), 1)
    onehot = jnp.concatenate(
        [(vio == ids[:, k:k + 1]).astype(jnp.bfloat16) for k in range(nshift)],
        axis=1)                                                      # (BLp, MAXWIN*VPAD)
    # TODO(synk): dropout after the embedding is identity (eval mode).

    # ---- gather + every conv tap of every window: ONE MXU matmul, time-aligned ----
    y = jnp.dot(onehot, wbig_ref[...],
                preferred_element_type=jnp.float32)                  # (BLp, NWIN*CPAD) f32

    # bias + ReLU, then zero out invalid / padded time steps (ReLU >= 0 makes 0-mask safe)
    row = jax.lax.broadcasted_iota(jnp.int32, (BLp, CPAD), 0)
    l_idx = jnp.bitwise_and(row, Lpad - 1)                           # t within padded sequence
    mask = jnp.concatenate([l_idx < (MAXLEN - h + 1) for h in WINDOW_SIZES], axis=1)
    act = jnp.where(mask, jnp.maximum(y + bcat_ref[...], 0.0), 0.0)  # (BLp, NWIN*CPAD)

    # global max-pool over time, per batch (static 8-aligned sublane slices)
    feat = jnp.concatenate(
        [jnp.max(act[b * Lpad:(b + 1) * Lpad, :], axis=0, keepdims=True) for b in range(B)],
        axis=0)                                                      # (B, NWIN*CPAD)

    # FC weights must have landed by now.
    cp_w1.wait()
    cp_wf.wait()

    # ---- fc1 (ReLU) -> fc -> sigmoid, whole batch at once ----
    hid = jnp.dot(feat.astype(jnp.bfloat16), w1_vmem[...],
                  preferred_element_type=jnp.float32) + b1_ref[...]
    hid = jnp.maximum(hid, 0.0)
    # TODO(synk): dropout in fc1 is identity (eval mode).
    logits = jnp.dot(hid.astype(jnp.bfloat16), wf_vmem[...],
                     preferred_element_type=jnp.float32) + bf_ref[...]
    out_ref[...] = jax.nn.sigmoid(logits)                            # (B, CLSPAD)


def prepare_kernel_params(params):
    """One-time packing of PyTorch-layout weights into kernel layout (padded/aligned, bf16)."""
    E = EMBED_DIM
    emb = params["embedding"]                                        # (V+1, E)
    emb_pad = jnp.zeros((VPAD, E), jnp.float32).at[:emb.shape[0], :].set(emb)

    # Windowed-one-hot RHS: Wbig[k*VPAD + v, wi*CPAD + c] = sum_e emb[v,e] * conv_w[wi][c,e,k]
    wbig = jnp.zeros((MAXWIN * VPAD, NWIN * CPAD), jnp.float32)
    bcat = jnp.zeros((1, NWIN * CPAD), jnp.float32)
    for wi, (w_oih, bias) in enumerate(params["convs_torch"]):       # w_oih: (C, E, h)
        h = w_oih.shape[2]
        for k in range(h):
            blk = emb_pad @ jnp.transpose(w_oih[:, :, k])            # (VPAD, C)
            wbig = wbig.at[k * VPAD:(k + 1) * VPAD,
                           wi * CPAD:wi * CPAD + MAXLEN].set(blk)
        bcat = bcat.at[0, wi * CPAD:wi * CPAD + MAXLEN].set(bias)

    # fc1: remap input rows 100*wi + c -> 128*wi + c, pad output 400 -> 512
    w1pad = jnp.zeros((NWIN * CPAD, FCPAD), jnp.float32)
    for wi in range(NWIN):
        w1pad = w1pad.at[wi * CPAD:wi * CPAD + MAXLEN, :FC1_DIM].set(
            params["w1t"][wi * MAXLEN:(wi + 1) * MAXLEN, :])
    b1pad = jnp.zeros((1, FCPAD), jnp.float32).at[0, :FC1_DIM].set(params["b1"])
    wfpad = (jnp.zeros((FCPAD, CLSPAD), jnp.float32)
             .at[:FC1_DIM, :NUM_CLASSES].set(params["wft"]))
    bfpad = jnp.zeros((1, CLSPAD), jnp.float32).at[0, :NUM_CLASSES].set(params["bf"])

    return {"wbig": wbig.astype(jnp.bfloat16), "bcat": bcat,
            "w1": w1pad.astype(jnp.bfloat16), "b1": b1pad,
            "wf": wfpad.astype(jnp.bfloat16), "bf": bfpad}


@jax.jit
def textcnn_forward(ids, kparams):
    """ids: (B, L) int32 token ids; kparams: output of prepare_kernel_params."""
    B, L = ids.shape
    ids_pad = jnp.zeros((B, LPAD), jnp.int32).at[:, :L].set(ids)
    # Shifted id columns: ids_win[b*LPAD + t, k] = ids_pad[b, t+k] (0 past the end; masked).
    shifted = [jnp.pad(ids_pad[:, k:], ((0, 0), (0, k))) for k in range(MAXWIN)]
    ids_win = jnp.stack(shifted, axis=-1).reshape(B * LPAD, MAXWIN)

    vmem = pl.BlockSpec(memory_space=pltpu.MemorySpace.VMEM)
    hbm = pl.BlockSpec(memory_space=pl.ANY)
    out = pl.pallas_call(
        textcnn_kernel,
        out_shape=jax.ShapeDtypeStruct((B, CLSPAD), jnp.float32),
        in_specs=[vmem, vmem, vmem, hbm, vmem, hbm, vmem],
        out_specs=vmem,
        scratch_shapes=[pltpu.VMEM((NWIN * CPAD, FCPAD), jnp.bfloat16),
                        pltpu.VMEM((FCPAD, CLSPAD), jnp.bfloat16),
                        pltpu.SemaphoreType.DMA((2,))],
    )(ids_win, kparams["wbig"], kparams["bcat"],
      kparams["w1"], kparams["b1"], kparams["wf"], kparams["bf"])
    return out[:, :NUM_CLASSES]


def make_params(key):
    ks = jax.random.split(key, 4 + 2 * len(WINDOW_SIZES))
    params = {}
    params["embedding"] = 0.1 * jax.random.normal(
        ks[0], (VOCAB_SIZE + 1, EMBED_DIM), jnp.float32)
    convs = []
    for i, h in enumerate(WINDOW_SIZES):
        w = 0.05 * jax.random.normal(ks[1 + 2 * i], (MAXLEN, EMBED_DIM, h), jnp.float32)
        b = 0.01 * jax.random.normal(ks[2 + 2 * i], (MAXLEN,), jnp.float32)
        convs.append((w, b))
    params["convs_torch"] = convs
    params["w1t"] = 0.05 * jax.random.normal(
        ks[-3], (len(WINDOW_SIZES) * MAXLEN, FC1_DIM), jnp.float32)
    params["b1"] = 0.01 * jax.random.normal(ks[-2], (FC1_DIM,), jnp.float32)
    kf = jax.random.split(ks[-1])
    params["wft"] = 0.05 * jax.random.normal(kf[0], (FC1_DIM, NUM_CLASSES), jnp.float32)
    params["bf"] = 0.01 * jax.random.normal(kf[1], (NUM_CLASSES,), jnp.float32)
    return params


def reference_forward(ids, params):
    """Pure-JAX f32 reference mirroring the PyTorch forward (eval mode)."""
    emb = jnp.take(params["embedding"], ids, axis=0)                 # (B, L, E)
    x_ncw = jnp.transpose(emb, (0, 2, 1))                            # (B, E, L)
    feats = []
    for w_oih, bias in params["convs_torch"]:
        y = jax.lax.conv_general_dilated(
            x_ncw, w_oih, window_strides=(1,), padding="VALID",
            dimension_numbers=("NCH", "OIH", "NCH"))                 # (B, C, Lout)
        y = jnp.maximum(y + bias[None, :, None], 0.0)
        feats.append(jnp.max(y, axis=2))                             # (B, C)
    feat = jnp.concatenate(feats, axis=1)                            # (B, 4*C)
    hid = jnp.maximum(feat @ params["w1t"] + params["b1"], 0.0)
    return jax.nn.sigmoid(hid @ params["wft"] + params["bf"])


if __name__ == "__main__":
    key = jax.random.PRNGKey(0)
    k_param, k_ids = jax.random.split(key)
    params = make_params(k_param)
    kparams = prepare_kernel_params(params)                          # one-time weight prep
    ids = jax.random.randint(k_ids, (BATCH, MAXLEN), 0, VOCAB_SIZE + 1, dtype=jnp.int32)

    out = jax.block_until_ready(textcnn_forward(ids, kparams))
    ref = jax.block_until_ready(reference_forward(ids, params))

    assert out.shape == (BATCH, NUM_CLASSES), out.shape
    # bf16 weights -> relaxed tolerance vs. the f32 reference (~4e-3 relative error).
    assert jnp.allclose(out, ref, rtol=2e-2, atol=2e-2), float(jnp.max(jnp.abs(out - ref)))
    print("KERNEL_OK")
</pallas_src>

<mosaic_0001>
module attributes {stable_mosaic.version = 11 : i64} {
  func.func @textcnn_kernel(%arg0: memref<256x6xi32, #tpu.memory_space<vmem>>, %arg1: memref<768x512xbf16, #tpu.memory_space<vmem>>, %arg2: memref<1x512xf32, #tpu.memory_space<vmem>>, %arg3: memref<512x512xbf16, #tpu.memory_space<any>>, %arg4: memref<1x512xf32, #tpu.memory_space<vmem>>, %arg5: memref<512x128xbf16, #tpu.memory_space<any>>, %arg6: memref<1x128xf32, #tpu.memory_space<vmem>>, %arg7: memref<2x128xf32, #tpu.memory_space<vmem>>, %arg8: memref<512x512xbf16, #tpu.memory_space<vmem>>, %arg9: memref<512x128xbf16, #tpu.memory_space<vmem>>, %arg10: memref<2x!tpu.dma_semaphore, #tpu.memory_space<semaphore_mem>>) attributes {dimension_semantics = [], scalar_prefetch = 0 : i64, scratch_operands = 3 : i64, tpu.core_type = #tpu.core_type<tc>} {
    %c0_i32 = arith.constant 0 : i32
    %0 = tpu.memref_slice %arg10[%c0_i32] : memref<2x!tpu.dma_semaphore, #tpu.memory_space<semaphore_mem>> -> memref<1x!tpu.dma_semaphore, #tpu.memory_space<semaphore_mem>>
    %1 = tpu.memref_squeeze %0 : memref<1x!tpu.dma_semaphore, #tpu.memory_space<semaphore_mem>> -> memref<!tpu.dma_semaphore, #tpu.memory_space<semaphore_mem>>
    tpu.enqueue_dma source(%arg3 : memref<512x512xbf16, #tpu.memory_space<any>>) target(%arg8 : memref<512x512xbf16, #tpu.memory_space<vmem>>) target_semaphore(%1 : memref<!tpu.dma_semaphore, #tpu.memory_space<semaphore_mem>>)
    %c1_i32 = arith.constant 1 : i32
    %2 = tpu.memref_slice %arg10[%c1_i32] : memref<2x!tpu.dma_semaphore, #tpu.memory_space<semaphore_mem>> -> memref<1x!tpu.dma_semaphore, #tpu.memory_space<semaphore_mem>>
    %3 = tpu.memref_squeeze %2 : memref<1x!tpu.dma_semaphore, #tpu.memory_space<semaphore_mem>> -> memref<!tpu.dma_semaphore, #tpu.memory_space<semaphore_mem>>
    tpu.enqueue_dma source(%arg5 : memref<512x128xbf16, #tpu.memory_space<any>>) target(%arg9 : memref<512x128xbf16, #tpu.memory_space<vmem>>) target_semaphore(%3 : memref<!tpu.dma_semaphore, #tpu.memory_space<semaphore_mem>>)
    %c0 = arith.constant 0 : index
    %c0_0 = arith.constant 0 : index
    %4 = vector.load %arg0[%c0, %c0_0] : memref<256x6xi32, #tpu.memory_space<vmem>>, vector<256x6xi32>
    %5 = tpu.iota {dimensions = array<i32: 1>} : vector<256x128xi32>
    %6 = vector.extract_strided_slice %4 {offsets = [0, 0], sizes = [256, 1], strides = [1, 1]} : vector<256x6xi32> to vector<256x1xi32>
    %7 = vector.broadcast %6 : vector<256x1xi32> to vector<256x128xi32>
    %8 = arith.cmpi eq, %5, %7 : vector<256x128xi32>
    %9 = arith.extui %8 : vector<256x128xi1> to vector<256x128xi32>
    %10 = arith.sitofp %9 : vector<256x128xi32> to vector<256x128xf32>
    %11 = arith.truncf %10 : vector<256x128xf32> to vector<256x128xbf16>
    %12 = vector.extract_strided_slice %4 {offsets = [0, 1], sizes = [256, 1], strides = [1, 1]} : vector<256x6xi32> to vector<256x1xi32>
    %13 = vector.broadcast %12 : vector<256x1xi32> to vector<256x128xi32>
    %14 = arith.cmpi eq, %5, %13 : vector<256x128xi32>
    %15 = arith.extui %14 : vector<256x128xi1> to vector<256x128xi32>
    %16 = arith.sitofp %15 : vector<256x128xi32> to vector<256x128xf32>
    %17 = arith.truncf %16 : vector<256x128xf32> to vector<256x128xbf16>
    %18 = vector.extract_strided_slice %4 {offsets = [0, 2], sizes = [256, 1], strides = [1, 1]} : vector<256x6xi32> to vector<256x1xi32>
    %19 = vector.broadcast %18 : vector<256x1xi32> to vector<256x128xi32>
    %20 = arith.cmpi eq, %5, %19 : vector<256x128xi32>
    %21 = arith.extui %20 : vector<256x128xi1> to vector<256x128xi32>
    %22 = arith.sitofp %21 : vector<256x128xi32> to vector<256x128xf32>
    %23 = arith.truncf %22 : vector<256x128xf32> to vector<256x128xbf16>
    %24 = vector.extract_strided_slice %4 {offsets = [0, 3], sizes = [256, 1], strides = [1, 1]} : vector<256x6xi32> to vector<256x1xi32>
    %25 = vector.broadcast %24 : vector<256x1xi32> to vector<256x128xi32>
    %26 = arith.cmpi eq, %5, %25 : vector<256x128xi32>
    %27 = arith.extui %26 : vector<256x128xi1> to vector<256x128xi32>
    %28 = arith.sitofp %27 : vector<256x128xi32> to vector<256x128xf32>
    %29 = arith.truncf %28 : vector<256x128xf32> to vector<256x128xbf16>
    %30 = vector.extract_strided_slice %4 {offsets = [0, 4], sizes = [256, 1], strides = [1, 1]} : vector<256x6xi32> to vector<256x1xi32>
    %31 = vector.broadcast %30 : vector<256x1xi32> to vector<256x128xi32>
    %32 = arith.cmpi eq, %5, %31 : vector<256x128xi32>
    %33 = arith.extui %32 : vector<256x128xi1> to vector<256x128xi32>
    %34 = arith.sitofp %33 : vector<256x128xi32> to vector<256x128xf32>
    %35 = arith.truncf %34 : vector<256x128xf32> to vector<256x128xbf16>
    %36 = vector.extract_strided_slice %4 {offsets = [0, 5], sizes = [256, 1], strides = [1, 1]} : vector<256x6xi32> to vector<256x1xi32>
    %37 = vector.broadcast %36 : vector<256x1xi32> to vector<256x128xi32>
    %38 = arith.cmpi eq, %5, %37 : vector<256x128xi32>
    %39 = arith.extui %38 : vector<256x128xi1> to vector<256x128xi32>
    %40 = arith.sitofp %39 : vector<256x128xi32> to vector<256x128xf32>
    %41 = arith.truncf %40 : vector<256x128xf32> to vector<256x128xbf16>
    %42 = tpu.concatenate %11, %17, %23, %29, %35, %41 in 1 : vector<256x128xbf16>, vector<256x128xbf16>, vector<256x128xbf16>, vector<256x128xbf16>, vector<256x128xbf16>, vector<256x128xbf16> -> vector<256x768xbf16>
    %c0_1 = arith.constant 0 : index
    %c0_2 = arith.constant 0 : index
    %43 = vector.load %arg1[%c0_1, %c0_2] : memref<768x512xbf16, #tpu.memory_space<vmem>>, vector<768x512xbf16>
    %cst = arith.constant dense<0.000000e+00> : vector<256x512xf32>
    %44 = tpu.matmul %42, %43, %cst {dimension_numbers = #tpu.dot_dimension_numbers<[1], [0], [0], [1], [0, 0, 1, 1], [], []>} : vector<256x768xbf16>, vector<768x512xbf16>, vector<256x512xf32> -> vector<256x512xf32>
    %45 = tpu.iota {dimensions = array<i32: 0>} : vector<256x128xi32>
    %c127_i32 = arith.constant 127 : i32
    %46 = vector.broadcast %c127_i32 : i32 to vector<256x128xi32>
    %47 = arith.andi %45, %46 : vector<256x128xi32>
    %c98_i32 = arith.constant 98 : i32
    %48 = vector.broadcast %c98_i32 : i32 to vector<256x128xi32>
    %49 = arith.cmpi slt, %47, %48 : vector<256x128xi32>
    %c97_i32 = arith.constant 97 : i32
    %50 = vector.broadcast %c97_i32 : i32 to vector<256x128xi32>
    %51 = arith.cmpi slt, %47, %50 : vector<256x128xi32>
    %c96_i32 = arith.constant 96 : i32
    %52 = vector.broadcast %c96_i32 : i32 to vector<256x128xi32>
    %53 = arith.cmpi slt, %47, %52 : vector<256x128xi32>
    %c95_i32 = arith.constant 95 : i32
    %54 = vector.broadcast %c95_i32 : i32 to vector<256x128xi32>
    %55 = arith.cmpi slt, %47, %54 : vector<256x128xi32>
    %56 = tpu.concatenate %49, %51, %53, %55 in 1 : vector<256x128xi1>, vector<256x128xi1>, vector<256x128xi1>, vector<256x128xi1> -> vector<256x512xi1>
    %c0_3 = arith.constant 0 : index
    %c0_4 = arith.constant 0 : index
    %57 = vector.load %arg2[%c0_3, %c0_4] : memref<1x512xf32, #tpu.memory_space<vmem>>, vector<1x512xf32>
    %58 = vector.broadcast %57 : vector<1x512xf32> to vector<256x512xf32>
    %59 = arith.addf %44, %58 : vector<256x512xf32>
    %cst_5 = arith.constant 0.000000e+00 : f32
    %60 = vector.broadcast %cst_5 : f32 to vector<256x512xf32>
    %61 = arith.maximumf %59, %60 : vector<256x512xf32>
    %cst_6 = arith.constant 0.000000e+00 : f32
    %62 = vector.broadcast %cst_6 : f32 to vector<256x512xf32>
    %63 = arith.select %56, %61, %62 : vector<256x512xi1>, vector<256x512xf32>
    %64 = vector.extract_strided_slice %63 {offsets = [0, 0], sizes = [128, 512], strides = [1, 1]} : vector<256x512xf32> to vector<128x512xf32>
    %cst_7 = arith.constant dense<0xFF800000> : vector<512xf32>
    %65 = vector.multi_reduction <maximumf>, %64, %cst_7 [0] : vector<128x512xf32> to vector<512xf32>
    %66 = vector.shape_cast %65 : vector<512xf32> to vector<1x512xf32>
    %67 = vector.extract_strided_slice %63 {offsets = [128, 0], sizes = [128, 512], strides = [1, 1]} : vector<256x512xf32> to vector<128x512xf32>
    %cst_8 = arith.constant dense<0xFF800000> : vector<512xf32>
    %68 = vector.multi_reduction <maximumf>, %67, %cst_8 [0] : vector<128x512xf32> to vector<512xf32>
    %69 = vector.shape_cast %68 : vector<512xf32> to vector<1x512xf32>
    %70 = tpu.concatenate %66, %69 in 0 : vector<1x512xf32>, vector<1x512xf32> -> vector<2x512xf32>
    %c0_i32_9 = arith.constant 0 : i32
    %71 = tpu.memref_slice %arg10[%c0_i32_9] : memref<2x!tpu.dma_semaphore, #tpu.memory_space<semaphore_mem>> -> memref<1x!tpu.dma_semaphore, #tpu.memory_space<semaphore_mem>>
    %72 = tpu.memref_squeeze %71 : memref<1x!tpu.dma_semaphore, #tpu.memory_space<semaphore_mem>> -> memref<!tpu.dma_semaphore, #tpu.memory_space<semaphore_mem>>
    tpu.wait_dma2 semaphore(%72 : memref<!tpu.dma_semaphore, #tpu.memory_space<semaphore_mem>>) src(%arg3 : memref<512x512xbf16, #tpu.memory_space<any>>) dst(%arg8 : memref<512x512xbf16, #tpu.memory_space<vmem>>)
    %c1_i32_10 = arith.constant 1 : i32
    %73 = tpu.memref_slice %arg10[%c1_i32_10] : memref<2x!tpu.dma_semaphore, #tpu.memory_space<semaphore_mem>> -> memref<1x!tpu.dma_semaphore, #tpu.memory_space<semaphore_mem>>
    %74 = tpu.memref_squeeze %73 : memref<1x!tpu.dma_semaphore, #tpu.memory_space<semaphore_mem>> -> memref<!tpu.dma_semaphore, #tpu.memory_space<semaphore_mem>>
    tpu.wait_dma2 semaphore(%74 : memref<!tpu.dma_semaphore, #tpu.memory_space<semaphore_mem>>) src(%arg5 : memref<512x128xbf16, #tpu.memory_space<any>>) dst(%arg9 : memref<512x128xbf16, #tpu.memory_space<vmem>>)
    %75 = arith.truncf %70 : vector<2x512xf32> to vector<2x512xbf16>
    %c0_11 = arith.constant 0 : index
    %c0_12 = arith.constant 0 : index
    %76 = vector.load %arg8[%c0_11, %c0_12] : memref<512x512xbf16, #tpu.memory_space<vmem>>, vector<512x512xbf16>
    %cst_13 = arith.constant dense<0.000000e+00> : vector<2x512xf32>
    %77 = tpu.matmul %75, %76, %cst_13 {dimension_numbers = #tpu.dot_dimension_numbers<[1], [0], [0], [1], [0, 0, 1, 1], [], []>} : vector<2x512xbf16>, vector<512x512xbf16>, vector<2x512xf32> -> vector<2x512xf32>
    %c0_14 = arith.constant 0 : index
    %c0_15 = arith.constant 0 : index
    %78 = vector.load %arg4[%c0_14, %c0_15] : memref<1x512xf32, #tpu.memory_space<vmem>>, vector<1x512xf32>
    %79 = vector.broadcast %78 : vector<1x512xf32> to vector<2x512xf32>
    %80 = arith.addf %77, %79 : vector<2x512xf32>
    %cst_16 = arith.constant 0.000000e+00 : f32
    %81 = vector.broadcast %cst_16 : f32 to vector<2x512xf32>
    %82 = arith.maximumf %80, %81 : vector<2x512xf32>
    %83 = arith.truncf %82 : vector<2x512xf32> to vector<2x512xbf16>
    %c0_17 = arith.constant 0 : index
    %c0_18 = arith.constant 0 : index
    %84 = vector.load %arg9[%c0_17, %c0_18] : memref<512x128xbf16, #tpu.memory_space<vmem>>, vector<512x128xbf16>
    %cst_19 = arith.constant dense<0.000000e+00> : vector<2x128xf32>
    %85 = tpu.matmul %83, %84, %cst_19 {dimension_numbers = #tpu.dot_dimension_numbers<[1], [0], [0], [1], [0, 0, 1, 1], [], []>} : vector<2x512xbf16>, vector<512x128xbf16>, vector<2x128xf32> -> vector<2x128xf32>
    %c0_20 = arith.constant 0 : index
    %c0_21 = arith.constant 0 : index
    %86 = vector.load %arg6[%c0_20, %c0_21] : memref<1x128xf32, #tpu.memory_space<vmem>>, vector<1x128xf32>
    %87 = vector.broadcast %86 : vector<1x128xf32> to vector<2x128xf32>
    %88 = arith.addf %85, %87 : vector<2x128xf32>
    %89 = arith.negf %88 : vector<2x128xf32>
    %90 = math.exp %89 : vector<2x128xf32>
    %cst_22 = arith.constant 1.000000e+00 : f32
    %91 = vector.broadcast %cst_22 : f32 to vector<2x128xf32>
    %92 = arith.addf %91, %90 : vector<2x128xf32>
    %93 = arith.divf %91, %92 : vector<2x128xf32>
    %c0_23 = arith.constant 0 : index
    %c0_24 = arith.constant 0 : index
    %94 = vector.load %arg7[%c0_23, %c0_24] : memref<2x128xf32, #tpu.memory_space<vmem>>, vector<2x128xf32>
    tpu.vector_store %arg7[%c0_23, %c0_24], %93 {strides = array<i32>} : memref<2x128xf32, #tpu.memory_space<vmem>>, vector<2x128xf32>,
    return
  }
}

</mosaic_0001>

<llo_original>
// kernel: textcnn_forward.1
$region0: #{textcnn_forward.1}
  #allocation0 [shape = 'u32[]', space=smem, size = 0x4, offset = 0x4, fixed_abs, tag = 'smem constant byte address 0x4 - core index']
  #allocation1 [shape = 'u32[144,128]{1,0:T(1,128)}', space=vmem, size = 0x12000, scoped, tag = 'internal scratch']
  #allocation2 [shape = 'bf16[512,512]{1,0:T(16,128)(2,1)}', space=vmem, size = 0x80000, scoped, tag = 'scratch operand']
  #allocation3 [shape = 'bf16[512,128]{1,0:T(16,128)(2,1)}', space=vmem, size = 0x20000, scoped, tag = 'scratch operand']
  #allocation4 [shape = 's32[2]{0}', space=sflag, size = 0x8, scoped, tag = 'scratch operand']
  #allocation9 [shape = 's32[]', space=sflag, size = 0x4, offset = 0, fixed_abs, tag = 'sflag constant byte address 0x0 - dummy sync flag']
  #allocation11 [shape = 's32[]', space=sflag, size = 0x4, offset = 0, fixed_abs, tag = 'sflag constant byte address 0x0 - dummy sync flag']
  %s0 = inlined_call_operand.vmem [shape: s32[256,6], index: 0, kind: input, shape index: {}]
  %s1 = inlined_call_operand.hbm [shape: bf16[768,512], index: 1, kind: input, shape index: {}]
  %s2 = inlined_call_operand.vmem [shape: f32[1,512], index: 2, kind: input, shape index: {}]
  %s3 = inlined_call_operand.hbm [shape: bf16[512,512], index: 3, kind: input, shape index: {}]
  %s4 = inlined_call_operand.vmem [shape: f32[1,512], index: 4, kind: input, shape index: {}]
  %s5 = inlined_call_operand.vmem [shape: bf16[512,128], index: 5, kind: input, shape index: {}]
  %s6 = inlined_call_operand.vmem [shape: f32[1,128], index: 6, kind: input, shape index: {}]
  %s7 = inlined_call_operand.hbm [shape: f32[2,128], index: 7, kind: output, shape index: {}]
  %s8 = sld [smem:[#allocation0]]
  $region68: #{textcnn_forward.1} parent=0
    _
  %s10 = ssub.s32 1, %s8
  %s11 = scalar_select 0, %s10, %s8
  $region1: #{textcnn_forward.1} parent=0
    #allocation5 [shape = 'u8[786432]{0}', space=vmem, size = 0xc0000, scoped, tag = 'input window, operand 1, single buffered']
    #allocation6 [shape = 's32[1]{0}', space=sflag, size = 0x4, scoped, tag = 'scoped memory for textcnn_forward.1']
    #allocation7 [shape = 's32[1]{0}', space=sflag, size = 0x4, scoped, tag = 'scoped memory for textcnn_forward.1']
    #allocation8 [shape = 'u8[1024]{0}', space=vmem, size = 0x400, scoped, tag = 'output window, operand 0, single buffered']
    #allocation10 [shape = 'u32[9]{0}', space=smem, size = 0x24, scoped, tag = 'DMA stride descriptor']
    %12 = vsyncpa [#allocation6], 0
    %13 = vsyncpa [#allocation7], 0
    // Predicated region
    $region2: #{textcnn_forward.1} parent=1 // pred_check
      _
    $region3: #{textcnn_forward.1} parent=1 // pred_check_branch
      %15 = sbr.rel (0) target = $region5
    $region4: #{textcnn_forward.1} parent=1 // pred_region
      _
    $region5: #{textcnn_forward.1} parent=1 // pred_fallthru
      _
    // Predicated region
    $region6: #{textcnn_forward.1} parent=1 // pred_check
      _
    $region7: #{textcnn_forward.1} parent=1 // pred_check_branch
      %17 = sbr.rel (0) target = $region9
    $region8: #{textcnn_forward.1} parent=1 // pred_region
      %s19 = ssub.s32 24576, 24576
      %20 = vsyncadd [#allocation6], %s19
      %s21 = sshll.u32 [#allocation5], 4
      %s22 = int_to_ptr.vmem [resolvable:$true] %s21
      %27 = dma.hbm_to_vmem [thread:$0]  %s1, 24576, %s22, [#allocation6], 256, 256, 16
    $region9: #{textcnn_forward.1} parent=1 // pred_fallthru
      _
    // Predicated region
    $region10: #{textcnn_forward.1} parent=1 // pred_check
      _
    $region11: #{textcnn_forward.1} parent=1 // pred_check_branch
      %29 = sbr.rel (0) target = $region13
    $region12: #{textcnn_forward.1} parent=1 // pred_region
      _
    $region13: #{textcnn_forward.1} parent=1 // pred_fallthru
      _
    // Predicated region
    $region14: #{textcnn_forward.1} parent=1 // pred_check
      _
    $region15: #{textcnn_forward.1} parent=1 // pred_check_branch
      %31 = sbr.rel (0) target = $region17
    $region16: #{textcnn_forward.1} parent=1 // pred_region
      _
    $region17: #{textcnn_forward.1} parent=1 // pred_fallthru
      _
    // Predicated region
    $region18: #{textcnn_forward.1} parent=1 // pred_check
      _
    $region19: #{textcnn_forward.1} parent=1 // pred_check_branch
      %33 = sbr.rel (0) target = $region21
    $region20: #{textcnn_forward.1} parent=1 // pred_region
      _
    $region21: #{textcnn_forward.1} parent=1 // pred_fallthru
      _
    // Predicated region
    $region22: #{textcnn_forward.1} parent=1 // pred_check
      _
    $region23: #{textcnn_forward.1} parent=1 // pred_check_branch
      %35 = sbr.rel (0) target = $region25
    $region24: #{textcnn_forward.1} parent=1 // pred_region
      %36 = dma.done [#allocation6], 24576
    $region25: #{textcnn_forward.1} parent=1 // pred_fallthru
      _
    %s39 = sshll.u32 1, 14
    %s40 = sxor.u32 4294967295, %s39
    %s42 = sld [smem:[#allocation0]]
    %s43 = sadd.s32 2, %s42
    %s45 = sshll.u32 7, 26
    %s46 = sxor.u32 4294967295, %s45
    %s47 = sand.u32 0, %s46
    %s48 = sshll.u32 %s43, 26
    %s49 = sor.u32 %s47, %s48
    %s50 = sshll.u32 [#allocation2], 4
    %s51 = int_to_ptr.vmem [resolvable:$true] %s50
    %54 = sst [smem:[#allocation10]] 512
    %s55 = scalar_lea.smem [#allocation10], 1
    %56 = sst [smem:[%s55]] 512
    %s57 = scalar_lea.smem [#allocation10], 2
    %58 = sst [smem:[%s57]] 4
    %s59 = scalar_lea.smem [#allocation10], 3
    %60 = sst [smem:[%s59]] 64
    %s61 = scalar_lea.smem [#allocation10], 4
    %62 = sst [smem:[%s61]] 128
    %s63 = scalar_lea.smem [#allocation10], 5
    %64 = sst [smem:[%s63]] 2
    %s65 = scalar_lea.smem [#allocation10], 6
    %66 = sst [smem:[%s65]] 256
    %s67 = scalar_lea.smem [#allocation10], 7
    %68 = sst [smem:[%s67]] 64
    %s69 = scalar_lea.smem [#allocation10], 8
    %70 = sst [smem:[%s69]] 4
    %72 = dma.general %s3, 16384, %s51, [#allocation4], [#allocation9], [#allocation10], %s49, 0
    %s73 = scalar_lea.sflag [#allocation4], 1
    %p75 = scmp.lt.u32.totalorder 256, 8
    %p76 = pneg %p75
    // Predicated region
    $region26: #{textcnn_forward.1} parent=1 // pred_check
      _
    $region27: #{textcnn_forward.1} parent=1 // pred_check_branch
      %78 = sbr.rel (%p75) target = $region29
    $region28: #{textcnn_forward.1} parent=1 // pred_region
      %s93 = sand.u32 256, 7
      %p94 = scmp.eq.s32.totalorder %s93, 0
      // Predicated region
      $region41: #{textcnn_forward.1} parent=28 // pred_check
        %p95 = pneg %p94
      $region42: #{textcnn_forward.1} parent=28 // pred_check_branch
        %97 = sbr.rel (%p95) target = $region44
      $region43: #{textcnn_forward.1} parent=28 // pred_region
        loop: start=0, step=1, limit=1
        $region45: #{textcnn_forward.1} parent=43 // loop_pre_header
          _
        $region46: #{textcnn_forward.1} parent=43 // loop_header
          %s99 = sphi 0, %s103
          %p100 = scmp.ge.s32.totalorder %s99, 1
          %s104 = sphi %s5, %s5
          %s105 = sphi [#allocation3], [#allocation3]
        $region47: #{textcnn_forward.1} parent=43 // loop_header_branch
          %102 = sbr.rel (%p100) target = $region51
        $region48: #{textcnn_forward.1} parent=43 // loop_body
          %v106 = vld [vmem:[%s104] sm:$0xff]
          %107 = vst [vmem:[%s105] sm:$0xff] %v106
          %v108 = vld [vmem:[%s104 + $0x8] sm:$0xff]
          %109 = vst [vmem:[%s105 + $0x8] sm:$0xff] %v108
          %v110 = vld [vmem:[%s104 + $0x10] sm:$0xff]
          %111 = vst [vmem:[%s105 + $0x10] sm:$0xff] %v110
          %v112 = vld [vmem:[%s104 + $0x18] sm:$0xff]
          %113 = vst [vmem:[%s105 + $0x18] sm:$0xff] %v112
          %v114 = vld [vmem:[%s104 + $0x20] sm:$0xff]
          %115 = vst [vmem:[%s105 + $0x20] sm:$0xff] %v114
          %v116 = vld [vmem:[%s104 + $0x28] sm:$0xff]
          %117 = vst [vmem:[%s105 + $0x28] sm:$0xff] %v116
          %v118 = vld [vmem:[%s104 + $0x30] sm:$0xff]
          %119 = vst [vmem:[%s105 + $0x30] sm:$0xff] %v118
          %v120 = vld [vmem:[%s104 + $0x38] sm:$0xff]
          %121 = vst [vmem:[%s105 + $0x38] sm:$0xff] %v120
          %v122 = vld [vmem:[%s104 + $0x40] sm:$0xff]
          %123 = vst [vmem:[%s105 + $0x40] sm:$0xff] %v122
          %v124 = vld [vmem:[%s104 + $0x48] sm:$0xff]
          %125 = vst [vmem:[%s105 + $0x48] sm:$0xff] %v124
          %v126 = vld [vmem:[%s104 + $0x50] sm:$0xff]
          %127 = vst [vmem:[%s105 + $0x50] sm:$0xff] %v126
          %v128 = vld [vmem:[%s104 + $0x58] sm:$0xff]
          %129 = vst [vmem:[%s105 + $0x58] sm:$0xff] %v128
          %v130 = vld [vmem:[%s104 + $0x60] sm:$0xff]
          %131 = vst [vmem:[%s105 + $0x60] sm:$0xff] %v130
          %v132 = vld [vmem:[%s104 + $0x68] sm:$0xff]
          %133 = vst [vmem:[%s105 + $0x68] sm:$0xff] %v132
          %v134 = vld [vmem:[%s104 + $0x70] sm:$0xff]
          %135 = vst [vmem:[%s105 + $0x70] sm:$0xff] %v134
          %v136 = vld [vmem:[%s104 + $0x78] sm:$0xff]
          %137 = vst [vmem:[%s105 + $0x78] sm:$0xff] %v136
          %v138 = vld [vmem:[%s104 + $0x80] sm:$0xff]
          %139 = vst [vmem:[%s105 + $0x80] sm:$0xff] %v138
          %v140 = vld [vmem:[%s104 + $0x88] sm:$0xff]
          %141 = vst [vmem:[%s105 + $0x88] sm:$0xff] %v140
          %v142 = vld [vmem:[%s104 + $0x90] sm:$0xff]
          %143 = vst [vmem:[%s105 + $0x90] sm:$0xff] %v142
          %v144 = vld [vmem:[%s104 + $0x98] sm:$0xff]
          %145 = vst [vmem:[%s105 + $0x98] sm:$0xff] %v144
          %v146 = vld [vmem:[%s104 + $0xa0] sm:$0xff]
          %147 = vst [vmem:[%s105 + $0xa0] sm:$0xff] %v146
          %v148 = vld [vmem:[%s104 + $0xa8] sm:$0xff]
          %149 = vst [vmem:[%s105 + $0xa8] sm:$0xff] %v148
          %v150 = vld [vmem:[%s104 + $0xb0] sm:$0xff]
          %151 = vst [vmem:[%s105 + $0xb0] sm:$0xff] %v150
          %v152 = vld [vmem:[%s104 + $0xb8] sm:$0xff]
          %153 = vst [vmem:[%s105 + $0xb8] sm:$0xff] %v152
          %v154 = vld [vmem:[%s104 + $0xc0] sm:$0xff]
          %155 = vst [vmem:[%s105 + $0xc0] sm:$0xff] %v154
          %v156 = vld [vmem:[%s104 + $0xc8] sm:$0xff]
          %157 = vst [vmem:[%s105 + $0xc8] sm:$0xff] %v156
          %v158 = vld [vmem:[%s104 + $0xd0] sm:$0xff]
          %159 = vst [vmem:[%s105 + $0xd0] sm:$0xff] %v158
          %v160 = vld [vmem:[%s104 + $0xd8] sm:$0xff]
          %161 = vst [vmem:[%s105 + $0xd8] sm:$0xff] %v160
          %v162 = vld [vmem:[%s104 + $0xe0] sm:$0xff]
          %163 = vst [vmem:[%s105 + $0xe0] sm:$0xff] %v162
          %v164 = vld [vmem:[%s104 + $0xe8] sm:$0xff]
          %165 = vst [vmem:[%s105 + $0xe8] sm:$0xff] %v164
          %v166 = vld [vmem:[%s104 + $0xf0] sm:$0xff]
          %167 = vst [vmem:[%s105 + $0xf0] sm:$0xff] %v166
          %v168 = vld [vmem:[%s104 + $0xf8] sm:$0xff]
          %169 = vst [vmem:[%s105 + $0xf8] sm:$0xff] %v168
        $region49: #{textcnn_forward.1} parent=43 // loop_footer
          %s103 = sadd.s32 1, %s99
        $region50: #{textcnn_forward.1} parent=43 // loop_footer_branch
          %98 = sbr.rel target = $region46
        $region51: #{textcnn_forward.1} parent=43 // loop_exit
          _
      $region44: #{textcnn_forward.1} parent=28 // pred_fallthru
        _
      %p170 = pneg %p94
      // Predicated region
      $region52: #{textcnn_forward.1} parent=28 // pred_check
        _
      $region53: #{textcnn_forward.1} parent=28 // pred_check_branch
        %172 = sbr.rel (%p94) target = $region55
      $region54: #{textcnn_forward.1} parent=28 // pred_region
        %s173 = sand.u32 256, 7
      $region55: #{textcnn_forward.1} parent=28 // pred_fallthru
        _
    $region29: #{textcnn_forward.1} parent=1 // pred_fallthru
      _
    // Predicated region
    $region30: #{textcnn_forward.1} parent=1 // pred_check
      %p79 = pneg %p75
    $region31: #{textcnn_forward.1} parent=1 // pred_check_branch
      %81 = sbr.rel (%p79) target = $region33
    $region32: #{textcnn_forward.1} parent=1 // pred_region
      %s82 = sshllo.u32 0, 256
      loop: start=0, step=1, limit=1
      $region34: #{textcnn_forward.1} parent=32 // loop_pre_header
        _
      $region35: #{textcnn_forward.1} parent=32 // loop_header
        %s84 = sphi 0, %s88
        %p85 = scmp.ge.s32.totalorder %s84, 1
        %s89 = sphi %s5, %s5
        %s90 = sphi [#allocation3], [#allocation3]
      $region36: #{textcnn_forward.1} parent=32 // loop_header_branch
        %87 = sbr.rel (%p85) target = $region40
      $region37: #{textcnn_forward.1} parent=32 // loop_body
        %v91 = vld [vmem:[%s89] sm:%s82]
        %92 = vst [vmem:[%s90] sm:%s82] %v91
      $region38: #{textcnn_forward.1} parent=32 // loop_footer
        %s88 = sadd.s32 1, %s84
      $region39: #{textcnn_forward.1} parent=32 // loop_footer_branch
        %83 = sbr.rel target = $region35
      $region40: #{textcnn_forward.1} parent=32 // loop_exit
        _
    $region33: #{textcnn_forward.1} parent=1 // pred_fallthru
      _
    // Predicated region
    $region56: #{textcnn_forward.1} parent=1 // pred_check
      _
    $region57: #{textcnn_forward.1} parent=1 // pred_check_branch
      %176 = sbr.rel (0) target = $region59
    $region58: #{textcnn_forward.1} parent=1 // pred_region
      %177 = vsyncadd %s73, 4096
    $region59: #{textcnn_forward.1} parent=1 // pred_fallthru
      _
    %v178 = vld [vmem:[%s0] sm:$0xff]
    %v179 = vld [vmem:[%s0 + $0x8] sm:$0xff]
    %v180 = vld [vmem:[%s0 + $0x10] sm:$0xff]
    %v181 = vld [vmem:[%s0 + $0x18] sm:$0xff]
    %v182 = vld [vmem:[%s0 + $0x20] sm:$0xff]
    %v183 = vld [vmem:[%s0 + $0x28] sm:$0xff]
    %v184 = vld [vmem:[%s0 + $0x30] sm:$0xff]
    %v185 = vld [vmem:[%s0 + $0x38] sm:$0xff]
    %v186 = vld [vmem:[%s0 + $0x40] sm:$0xff]
    %v187 = vld [vmem:[%s0 + $0x48] sm:$0xff]
    %v188 = vld [vmem:[%s0 + $0x50] sm:$0xff]
    %v189 = vld [vmem:[%s0 + $0x58] sm:$0xff]
    %v190 = vld [vmem:[%s0 + $0x60] sm:$0xff]
    %v191 = vld [vmem:[%s0 + $0x68] sm:$0xff]
    %v192 = vld [vmem:[%s0 + $0x70] sm:$0xff]
    %v193 = vld [vmem:[%s0 + $0x78] sm:$0xff]
    %v194 = vld [vmem:[%s0 + $0x80] sm:$0xff]
    %v195 = vld [vmem:[%s0 + $0x88] sm:$0xff]
    %v196 = vld [vmem:[%s0 + $0x90] sm:$0xff]
    %v197 = vld [vmem:[%s0 + $0x98] sm:$0xff]
    %v198 = vld [vmem:[%s0 + $0xa0] sm:$0xff]
    %v199 = vld [vmem:[%s0 + $0xa8] sm:$0xff]
    %v200 = vld [vmem:[%s0 + $0xb0] sm:$0xff]
    %v201 = vld [vmem:[%s0 + $0xb8] sm:$0xff]
    %v202 = vld [vmem:[%s0 + $0xc0] sm:$0xff]
    %v203 = vld [vmem:[%s0 + $0xc8] sm:$0xff]
    %v204 = vld [vmem:[%s0 + $0xd0] sm:$0xff]
    %v205 = vld [vmem:[%s0 + $0xd8] sm:$0xff]
    %v206 = vld [vmem:[%s0 + $0xe0] sm:$0xff]
    %v207 = vld [vmem:[%s0 + $0xe8] sm:$0xff]
    %v208 = vld [vmem:[%s0 + $0xf0] sm:$0xff]
    %v209 = vld [vmem:[%s0 + $0xf8] sm:$0xff]
    %v210 = vlaneseq
    %v211 = vand.u32 %v210, 127
    %212 = vset.pattern.permute.xlu0 0
    %213 = vperm.xlu0 %212, %v178
    %v214 = vpop.permute.xlu0 %213
    %215 = vset.pattern.permute.xlu0 0
    %216 = vperm.xlu0 %215, %v179
    %v217 = vpop.permute.xlu0 %216
    %218 = vset.pattern.permute.xlu0 0
    %219 = vperm.xlu0 %218, %v180
    %v220 = vpop.permute.xlu0 %219
    %221 = vset.pattern.permute.xlu0 0
    %222 = vperm.xlu0 %221, %v181
    %v223 = vpop.permute.xlu0 %222
    %224 = vset.pattern.permute.xlu0 0
    %225 = vperm.xlu0 %224, %v182
    %v226 = vpop.permute.xlu0 %225
    %227 = vset.pattern.permute.xlu0 0
    %228 = vperm.xlu0 %227, %v183
    %v229 = vpop.permute.xlu0 %228
    %230 = vset.pattern.permute.xlu0 0
    %231 = vperm.xlu0 %230, %v184
    %v232 = vpop.permute.xlu0 %231
    %233 = vset.pattern.permute.xlu0 0
    %234 = vperm.xlu0 %233, %v185
    %v235 = vpop.permute.xlu0 %234
    %236 = vset.pattern.permute.xlu0 0
    %237 = vperm.xlu0 %236, %v186
    %v238 = vpop.permute.xlu0 %237
    %239 = vset.pattern.permute.xlu0 0
    %240 = vperm.xlu0 %239, %v187
    %v241 = vpop.permute.xlu0 %240
    %242 = vset.pattern.permute.xlu0 0
    %243 = vperm.xlu0 %242, %v188
    %v244 = vpop.permute.xlu0 %243
    %245 = vset.pattern.permute.xlu0 0
    %246 = vperm.xlu0 %245, %v189
    %v247 = vpop.permute.xlu0 %246
    %248 = vset.pattern.permute.xlu0 0
    %249 = vperm.xlu0 %248, %v190
    %v250 = vpop.permute.xlu0 %249
    %251 = vset.pattern.permute.xlu0 0
    %252 = vperm.xlu0 %251, %v191
    %v253 = vpop.permute.xlu0 %252
    %254 = vset.pattern.permute.xlu0 0
    %255 = vperm.xlu0 %254, %v192
    %v256 = vpop.permute.xlu0 %255
    %257 = vset.pattern.permute.xlu0 0
    %258 = vperm.xlu0 %257, %v193
    %v259 = vpop.permute.xlu0 %258
    %260 = vset.pattern.permute.xlu0 0
    %261 = vperm.xlu0 %260, %v194
    %v262 = vpop.permute.xlu0 %261
    %263 = vset.pattern.permute.xlu0 0
    %264 = vperm.xlu0 %263, %v195
    %v265 = vpop.permute.xlu0 %264
    %266 = vset.pattern.permute.xlu0 0
    %267 = vperm.xlu0 %266, %v196
    %v268 = vpop.permute.xlu0 %267
    %269 = vset.pattern.permute.xlu0 0
    %270 = vperm.xlu0 %269, %v197
    %v271 = vpop.permute.xlu0 %270
    %272 = vset.pattern.permute.xlu0 0
    %273 = vperm.xlu0 %272, %v198
    %v274 = vpop.permute.xlu0 %273
    %275 = vset.pattern.permute.xlu0 0
    %276 = vperm.xlu0 %275, %v199
    %v277 = vpop.permute.xlu0 %276
    %278 = vset.pattern.permute.xlu0 0
    %279 = vperm.xlu0 %278, %v200
    %v280 = vpop.permute.xlu0 %279
    %281 = vset.pattern.permute.xlu0 0
    %282 = vperm.xlu0 %281, %v201
    %v283 = vpop.permute.xlu0 %282
    %284 = vset.pattern.permute.xlu0 0
    %285 = vperm.xlu0 %284, %v202
    %v286 = vpop.permute.xlu0 %285
    %287 = vset.pattern.permute.xlu0 0
    %288 = vperm.xlu0 %287, %v203
    %v289 = vpop.permute.xlu0 %288
    %290 = vset.pattern.permute.xlu0 0
    %291 = vperm.xlu0 %290, %v204
    %v292 = vpop.permute.xlu0 %291
    %293 = vset.pattern.permute.xlu0 0
    %294 = vperm.xlu0 %293, %v205
    %v295 = vpop.permute.xlu0 %294
    %296 = vset.pattern.permute.xlu0 0
    %297 = vperm.xlu0 %296, %v206
    %v298 = vpop.permute.xlu0 %297
    %299 = vset.pattern.permute.xlu0 0
    %300 = vperm.xlu0 %299, %v207
    %v301 = vpop.permute.xlu0 %300
    %302 = vset.pattern.permute.xlu0 0
    %303 = vperm.xlu0 %302, %v208
    %v304 = vpop.permute.xlu0 %303
    %305 = vset.pattern.permute.xlu0 0
    %306 = vperm.xlu0 %305, %v209
    %v307 = vpop.permute.xlu0 %306
    %vm308 = vcmp.eq.s32.totalorder %v211, %v214
    %vm309 = vcmp.eq.s32.totalorder %v211, %v217
    %vm310 = vcmp.eq.s32.totalorder %v211, %v220
    %vm311 = vcmp.eq.s32.totalorder %v211, %v223
    %vm312 = vcmp.eq.s32.totalorder %v211, %v226
    %vm313 = vcmp.eq.s32.totalorder %v211, %v229
    %vm314 = vcmp.eq.s32.totalorder %v211, %v232
    %vm315 = vcmp.eq.s32.totalorder %v211, %v235
    %vm316 = vcmp.eq.s32.totalorder %v211, %v238
    %vm317 = vcmp.eq.s32.totalorder %v211, %v241
    %vm318 = vcmp.eq.s32.totalorder %v211, %v244
    %vm319 = vcmp.eq.s32.totalorder %v211, %v247
    %vm320 = vcmp.eq.s32.totalorder %v211, %v250
    %vm321 = vcmp.eq.s32.totalorder %v211, %v253
    %vm322 = vcmp.eq.s32.totalorder %v211, %v256
    %vm323 = vcmp.eq.s32.totalorder %v211, %v259
    %vm324 = vcmp.eq.s32.totalorder %v211, %v262
    %vm325 = vcmp.eq.s32.totalorder %v211, %v265
    %vm326 = vcmp.eq.s32.totalorder %v211, %v268
    %vm327 = vcmp.eq.s32.totalorder %v211, %v271
    %vm328 = vcmp.eq.s32.totalorder %v211, %v274
    %vm329 = vcmp.eq.s32.totalorder %v211, %v277
    %vm330 = vcmp.eq.s32.totalorder %v211, %v280
    %vm331 = vcmp.eq.s32.totalorder %v211, %v283
    %vm332 = vcmp.eq.s32.totalorder %v211, %v286
    %vm333 = vcmp.eq.s32.totalorder %v211, %v289
    %vm334 = vcmp.eq.s32.totalorder %v211, %v292
    %vm335 = vcmp.eq.s32.totalorder %v211, %v295
    %vm336 = vcmp.eq.s32.totalorder %v211, %v298
    %vm337 = vcmp.eq.s32.totalorder %v211, %v301
    %vm338 = vcmp.eq.s32.totalorder %v211, %v304
    %vm339 = vcmp.eq.s32.totalorder %v211, %v307
    %v340 = vsel %vm308, 1, 0
    %v341 = vsel %vm309, 1, 0
    %v342 = vsel %vm310, 1, 0
    %v343 = vsel %vm311, 1, 0
    %v344 = vsel %vm312, 1, 0
    %v345 = vsel %vm313, 1, 0
    %v346 = vsel %vm314, 1, 0
    %v347 = vsel %vm315, 1, 0
    %v348 = vsel %vm316, 1, 0
    %v349 = vsel %vm317, 1, 0
    %v350 = vsel %vm318, 1, 0
    %v351 = vsel %vm319, 1, 0
    %v352 = vsel %vm320, 1, 0
    %v353 = vsel %vm321, 1, 0
    %v354 = vsel %vm322, 1, 0
    %v355 = vsel %vm323, 1, 0
    %v356 = vsel %vm324, 1, 0
    %v357 = vsel %vm325, 1, 0
    %v358 = vsel %vm326, 1, 0
    %v359 = vsel %vm327, 1, 0
    %v360 = vsel %vm328, 1, 0
    %v361 = vsel %vm329, 1, 0
    %v362 = vsel %vm330, 1, 0
    %v363 = vsel %vm331, 1, 0
    %v364 = vsel %vm332, 1, 0
    %v365 = vsel %vm333, 1, 0
    %v366 = vsel %vm334, 1, 0
    %v367 = vsel %vm335, 1, 0
    %v368 = vsel %vm336, 1, 0
    %v369 = vsel %vm337, 1, 0
    %v370 = vsel %vm338, 1, 0
    %v371 = vsel %vm339, 1, 0
    %v372 = vcvt.s32.f32 %v340
    %v373 = vcvt.s32.f32 %v341
    %v374 = vcvt.s32.f32 %v342
    %v375 = vcvt.s32.f32 %v343
    %v376 = vcvt.s32.f32 %v344
    %v377 = vcvt.s32.f32 %v345
    %v378 = vcvt.s32.f32 %v346
    %v379 = vcvt.s32.f32 %v347
    %v380 = vcvt.s32.f32 %v348
    %v381 = vcvt.s32.f32 %v349
    %v382 = vcvt.s32.f32 %v350
    %v383 = vcvt.s32.f32 %v351
    %v384 = vcvt.s32.f32 %v352
    %v385 = vcvt.s32.f32 %v353
    %v386 = vcvt.s32.f32 %v354
    %v387 = vcvt.s32.f32 %v355
    %v388 = vcvt.s32.f32 %v356
    %v389 = vcvt.s32.f32 %v357
    %v390 = vcvt.s32.f32 %v358
    %v391 = vcvt.s32.f32 %v359
    %v392 = vcvt.s32.f32 %v360
    %v393 = vcvt.s32.f32 %v361
    %v394 = vcvt.s32.f32 %v362
    %v395 = vcvt.s32.f32 %v363
    %v396 = vcvt.s32.f32 %v364
    %v397 = vcvt.s32.f32 %v365
    %v398 = vcvt.s32.f32 %v366
    %v399 = vcvt.s32.f32 %v367
    %v400 = vcvt.s32.f32 %v368
    %v401 = vcvt.s32.f32 %v369
    %v402 = vcvt.s32.f32 %v370
    %v403 = vcvt.s32.f32 %v371
    %v404 = vpack.c.bf16 %v373, %v372
    %v405 = vpack.c.bf16 %v375, %v374
    %v406 = vpack.c.bf16 %v377, %v376
    %v407 = vpack.c.bf16 %v379, %v378
    %v408 = vpack.c.bf16 %v381, %v380
    %v409 = vpack.c.bf16 %v383, %v382
    %v410 = vpack.c.bf16 %v385, %v384
    %v411 = vpack.c.bf16 %v387, %v386
    %v412 = vpack.c.bf16 %v389, %v388
    %v413 = vpack.c.bf16 %v391, %v390
    %v414 = vpack.c.bf16 %v393, %v392
    %v415 = vpack.c.bf16 %v395, %v394
    %v416 = vpack.c.bf16 %v397, %v396
    %v417 = vpack.c.bf16 %v399, %v398
    %v418 = vpack.c.bf16 %v401, %v400
    %v419 = vpack.c.bf16 %v403, %v402
    %420 = vset.pattern.permute.xlu0 1
    %421 = vperm.xlu0 %420, %v178
    %v422 = vpop.permute.xlu0 %421
    %423 = vset.pattern.permute.xlu0 1
    %424 = vperm.xlu0 %423, %v179
    %v425 = vpop.permute.xlu0 %424
    %426 = vset.pattern.permute.xlu0 1
    %427 = vperm.xlu0 %426, %v180
    %v428 = vpop.permute.xlu0 %427
    %429 = vset.pattern.permute.xlu0 1
    %430 = vperm.xlu0 %429, %v181
    %v431 = vpop.permute.xlu0 %430
    %432 = vset.pattern.permute.xlu0 1
    %433 = vperm.xlu0 %432, %v182
    %v434 = vpop.permute.xlu0 %433
    %435 = vset.pattern.permute.xlu0 1
    %436 = vperm.xlu0 %435, %v183
    %v437 = vpop.permute.xlu0 %436
    %438 = vset.pattern.permute.xlu0 1
    %439 = vperm.xlu0 %438, %v184
    %v440 = vpop.permute.xlu0 %439
    %441 = vset.pattern.permute.xlu0 1
    %442 = vperm.xlu0 %441, %v185
    %v443 = vpop.permute.xlu0 %442
    %444 = vset.pattern.permute.xlu0 1
    %445 = vperm.xlu0 %444, %v186
    %v446 = vpop.permute.xlu0 %445
    %447 = vset.pattern.permute.xlu0 1
    %448 = vperm.xlu0 %447, %v187
    %v449 = vpop.permute.xlu0 %448
    %450 = vset.pattern.permute.xlu0 1
    %451 = vperm.xlu0 %450, %v188
    %v452 = vpop.permute.xlu0 %451
    %453 = vset.pattern.permute.xlu0 1
    %454 = vperm.xlu0 %453, %v189
    %v455 = vpop.permute.xlu0 %454
    %456 = vset.pattern.permute.xlu0 1
    %457 = vperm.xlu0 %456, %v190
    %v458 = vpop.permute.xlu0 %457
    %459 = vset.pattern.permute.xlu0 1
    %460 = vperm.xlu0 %459, %v191
    %v461 = vpop.permute.xlu0 %460
    %462 = vset.pattern.permute.xlu0 1
    %463 = vperm.xlu0 %462, %v192
    %v464 = vpop.permute.xlu0 %463
    %465 = vset.pattern.permute.xlu0 1
    %466 = vperm.xlu0 %465, %v193
    %v467 = vpop.permute.xlu0 %466
    %468 = vset.pattern.permute.xlu0 1
    %469 = vperm.xlu0 %468, %v194
    %v470 = vpop.permute.xlu0 %469
    %471 = vset.pattern.permute.xlu0 1
    %472 = vperm.xlu0 %471, %v195
    %v473 = vpop.permute.xlu0 %472
    %474 = vset.pattern.permute.xlu0 1
    %475 = vperm.xlu0 %474, %v196
    %v476 = vpop.permute.xlu0 %475
    %477 = vset.pattern.permute.xlu0 1
    %478 = vperm.xlu0 %477, %v197
    %v479 = vpop.permute.xlu0 %478
    %480 = vset.pattern.permute.xlu0 1
    %481 = vperm.xlu0 %480, %v198
    %v482 = vpop.permute.xlu0 %481
    %483 = vset.pattern.permute.xlu0 1
    %484 = vperm.xlu0 %483, %v199
    %v485 = vpop.permute.xlu0 %484
    %486 = vset.pattern.permute.xlu0 1
    %487 = vperm.xlu0 %486, %v200
    %v488 = vpop.permute.xlu0 %487
    %489 = vset.pattern.permute.xlu0 1
    %490 = vperm.xlu0 %489, %v201
    %v491 = vpop.permute.xlu0 %490
    %492 = vset.pattern.permute.xlu0 1
    %493 = vperm.xlu0 %492, %v202
    %v494 = vpop.permute.xlu0 %493
    %495 = vset.pattern.permute.xlu0 1
    %496 = vperm.xlu0 %495, %v203
    %v497 = vpop.permute.xlu0 %496
    %498 = vset.pattern.permute.xlu0 1
    %499 = vperm.xlu0 %498, %v204
    %v500 = vpop.permute.xlu0 %499
    %501 = vset.pattern.permute.xlu0 1
    %502 = vperm.xlu0 %501, %v205
    %v503 = vpop.permute.xlu0 %502
    %504 = vset.pattern.permute.xlu0 1
    %505 = vperm.xlu0 %504, %v206
    %v506 = vpop.permute.xlu0 %505
    %507 = vset.pattern.permute.xlu0 1
    %508 = vperm.xlu0 %507, %v207
    %v509 = vpop.permute.xlu0 %508
    %510 = vset.pattern.permute.xlu0 1
    %511 = vperm.xlu0 %510, %v208
    %v512 = vpop.permute.xlu0 %511
    %513 = vset.pattern.permute.xlu0 1
    %514 = vperm.xlu0 %513, %v209
    %v515 = vpop.permute.xlu0 %514
    %vm516 = vcmp.eq.s32.totalorder %v211, %v422
    %vm517 = vcmp.eq.s32.totalorder %v211, %v425
    %vm518 = vcmp.eq.s32.totalorder %v211, %v428
    %vm519 = vcmp.eq.s32.totalorder %v211, %v431
    %vm520 = vcmp.eq.s32.totalorder %v211, %v434
    %vm521 = vcmp.eq.s32.totalorder %v211, %v437
    %vm522 = vcmp.eq.s32.totalorder %v211, %v440
    %vm523 = vcmp.eq.s32.totalorder %v211, %v443
    %vm524 = vcmp.eq.s32.totalorder %v211, %v446
    %vm525 = vcmp.eq.s32.totalorder %v211, %v449
    %vm526 = vcmp.eq.s32.totalorder %v211, %v452
    %vm527 = vcmp.eq.s32.totalorder %v211, %v455
    %vm528 = vcmp.eq.s32.totalorder %v211, %v458
    %vm529 = vcmp.eq.s32.totalorder %v211, %v461
    %vm530 = vcmp.eq.s32.totalorder %v211, %v464
    %vm531 = vcmp.eq.s32.totalorder %v211, %v467
    %vm532 = vcmp.eq.s32.totalorder %v211, %v470
    %vm533 = vcmp.eq.s32.totalorder %v211, %v473
    %vm534 = vcmp.eq.s32.totalorder %v211, %v476
    %vm535 = vcmp.eq.s32.totalorder %v211, %v479
    %vm536 = vcmp.eq.s32.totalorder %v211, %v482
    %vm537 = vcmp.eq.s32.totalorder %v211, %v485
    %vm538 = vcmp.eq.s32.totalorder %v211, %v488
    %vm539 = vcmp.eq.s32.totalorder %v211, %v491
    %vm540 = vcmp.eq.s32.totalorder %v211, %v494
    %vm541 = vcmp.eq.s32.totalorder %v211, %v497
    %vm542 = vcmp.eq.s32.totalorder %v211, %v500
    %vm543 = vcmp.eq.s32.totalorder %v211, %v503
    %vm544 = vcmp.eq.s32.totalorder %v211, %v506
    %vm545 = vcmp.eq.s32.totalorder %v211, %v509
    %vm546 = vcmp.eq.s32.totalorder %v211, %v512
    %vm547 = vcmp.eq.s32.totalorder %v211, %v515
    %v548 = vsel %vm516, 1, 0
    %v549 = vsel %vm517, 1, 0
    %v550 = vsel %vm518, 1, 0
    %v551 = vsel %vm519, 1, 0
    %v552 = vsel %vm520, 1, 0
    %v553 = vsel %vm521, 1, 0
    %v554 = vsel %vm522, 1, 0
    %v555 = vsel %vm523, 1, 0
    %v556 = vsel %vm524, 1, 0
    %v557 = vsel %vm525, 1, 0
    %v558 = vsel %vm526, 1, 0
    %v559 = vsel %vm527, 1, 0
    %v560 = vsel %vm528, 1, 0
    %v561 = vsel %vm529, 1, 0
    %v562 = vsel %vm530, 1, 0
    %v563 = vsel %vm531, 1, 0
    %v564 = vsel %vm532, 1, 0
    %v565 = vsel %vm533, 1, 0
    %v566 = vsel %vm534, 1, 0
    %v567 = vsel %vm535, 1, 0
    %v568 = vsel %vm536, 1, 0
    %v569 = vsel %vm537, 1, 0
    %v570 = vsel %vm538, 1, 0
    %v571 = vsel %vm539, 1, 0
    %v572 = vsel %vm540, 1, 0
    %v573 = vsel %vm541, 1, 0
    %v574 = vsel %vm542, 1, 0
    %v575 = vsel %vm543, 1, 0
    %v576 = vsel %vm544, 1, 0
    %v577 = vsel %vm545, 1, 0
    %v578 = vsel %vm546, 1, 0
    %v579 = vsel %vm547, 1, 0
    %v580 = vcvt.s32.f32 %v548
    %v581 = vcvt.s32.f32 %v549
    %v582 = vcvt.s32.f32 %v550
    %v583 = vcvt.s32.f32 %v551
    %v584 = vcvt.s32.f32 %v552
    %v585 = vcvt.s32.f32 %v553
    %v586 = vcvt.s32.f32 %v554
    %v587 = vcvt.s32.f32 %v555
    %v588 = vcvt.s32.f32 %v556
    %v589 = vcvt.s32.f32 %v557
    %v590 = vcvt.s32.f32 %v558
    %v591 = vcvt.s32.f32 %v559
    %v592 = vcvt.s32.f32 %v560
    %v593 = vcvt.s32.f32 %v561
    %v594 = vcvt.s32.f32 %v562
    %v595 = vcvt.s32.f32 %v563
    %v596 = vcvt.s32.f32 %v564
    %v597 = vcvt.s32.f32 %v565
    %v598 = vcvt.s32.f32 %v566
    %v599 = vcvt.s32.f32 %v567
    %v600 = vcvt.s32.f32 %v568
    %v601 = vcvt.s32.f32 %v569
    %v602 = vcvt.s32.f32 %v570
    %v603 = vcvt.s32.f32 %v571
    %v604 = vcvt.s32.f32 %v572
    %v605 = vcvt.s32.f32 %v573
    %v606 = vcvt.s32.f32 %v574
    %v607 = vcvt.s32.f32 %v575
    %v608 = vcvt.s32.f32 %v576
    %v609 = vcvt.s32.f32 %v577
    %v610 = vcvt.s32.f32 %v578
    %v611 = vcvt.s32.f32 %v579
    %v612 = vpack.c.bf16 %v581, %v580
    %v613 = vpack.c.bf16 %v583, %v582
    %v614 = vpack.c.bf16 %v585, %v584
    %v615 = vpack.c.bf16 %v587, %v586
    %v616 = vpack.c.bf16 %v589, %v588
    %v617 = vpack.c.bf16 %v591, %v590
    %v618 = vpack.c.bf16 %v593, %v592
    %v619 = vpack.c.bf16 %v595, %v594
    %v620 = vpack.c.bf16 %v597, %v596
    %v621 = vpack.c.bf16 %v599, %v598
    %v622 = vpack.c.bf16 %v601, %v600
    %v623 = vpack.c.bf16 %v603, %v602
    %v624 = vpack.c.bf16 %v605, %v604
    %v625 = vpack.c.bf16 %v607, %v606
    %v626 = vpack.c.bf16 %v609, %v608
    %v627 = vpack.c.bf16 %v611, %v610
    %628 = vset.pattern.permute.xlu0 2
    %629 = vperm.xlu0 %628, %v178
    %v630 = vpop.permute.xlu0 %629
    %631 = vset.pattern.permute.xlu0 2
    %632 = vperm.xlu0 %631, %v179
    %v633 = vpop.permute.xlu0 %632
    %634 = vset.pattern.permute.xlu0 2
    %635 = vperm.xlu0 %634, %v180
    %v636 = vpop.permute.xlu0 %635
    %637 = vset.pattern.permute.xlu0 2
    %638 = vperm.xlu0 %637, %v181
    %v639 = vpop.permute.xlu0 %638
    %640 = vset.pattern.permute.xlu0 2
    %641 = vperm.xlu0 %640, %v182
    %v642 = vpop.permute.xlu0 %641
    %643 = vset.pattern.permute.xlu0 2
    %644 = vperm.xlu0 %643, %v183
    %v645 = vpop.permute.xlu0 %644
    %646 = vset.pattern.permute.xlu0 2
    %647 = vperm.xlu0 %646, %v184
    %v648 = vpop.permute.xlu0 %647
    %649 = vset.pattern.permute.xlu0 2
    %650 = vperm.xlu0 %649, %v185
    %v651 = vpop.permute.xlu0 %650
    %652 = vset.pattern.permute.xlu0 2
    %653 = vperm.xlu0 %652, %v186
    %v654 = vpop.permute.xlu0 %653
    %655 = vset.pattern.permute.xlu0 2
    %656 = vperm.xlu0 %655, %v187
    %v657 = vpop.permute.xlu0 %656
    %658 = vset.pattern.permute.xlu0 2
    %659 = vperm.xlu0 %658, %v188
    %v660 = vpop.permute.xlu0 %659
    %661 = vset.pattern.permute.xlu0 2
    %662 = vperm.xlu0 %661, %v189
    %v663 = vpop.permute.xlu0 %662
    %664 = vset.pattern.permute.xlu0 2
    %665 = vperm.xlu0 %664, %v190
    %v666 = vpop.permute.xlu0 %665
    %667 = vset.pattern.permute.xlu0 2
    %668 = vperm.xlu0 %667, %v191
    %v669 = vpop.permute.xlu0 %668
    %670 = vset.pattern.permute.xlu0 2
    %671 = vperm.xlu0 %670, %v192
    %v672 = vpop.permute.xlu0 %671
    %673 = vset.pattern.permute.xlu0 2
    %674 = vperm.xlu0 %673, %v193
    %v675 = vpop.permute.xlu0 %674
    %676 = vset.pattern.permute.xlu0 2
    %677 = vperm.xlu0 %676, %v194
    %v678 = vpop.permute.xlu0 %677
    %679 = vset.pattern.permute.xlu0 2
    %680 = vperm.xlu0 %679, %v195
    %v681 = vpop.permute.xlu0 %680
    %682 = vset.pattern.permute.xlu0 2
    %683 = vperm.xlu0 %682, %v196
    %v684 = vpop.permute.xlu0 %683
    %685 = vset.pattern.permute.xlu0 2
    %686 = vperm.xlu0 %685, %v197
    %v687 = vpop.permute.xlu0 %686
    %688 = vset.pattern.permute.xlu0 2
    %689 = vperm.xlu0 %688, %v198
    %v690 = vpop.permute.xlu0 %689
    %691 = vset.pattern.permute.xlu0 2
    %692 = vperm.xlu0 %691, %v199
    %v693 = vpop.permute.xlu0 %692
    %694 = vset.pattern.permute.xlu0 2
    %695 = vperm.xlu0 %694, %v200
    %v696 = vpop.permute.xlu0 %695
    %697 = vset.pattern.permute.xlu0 2
    %698 = vperm.xlu0 %697, %v201
    %v699 = vpop.permute.xlu0 %698
    %700 = vset.pattern.permute.xlu0 2
    %701 = vperm.xlu0 %700, %v202
    %v702 = vpop.permute.xlu0 %701
    %703 = vset.pattern.permute.xlu0 2
    %704 = vperm.xlu0 %703, %v203
    %v705 = vpop.permute.xlu0 %704
    %706 = vset.pattern.permute.xlu0 2
    %707 = vperm.xlu0 %706, %v204
    %v708 = vpop.permute.xlu0 %707
    %709 = vset.pattern.permute.xlu0 2
    %710 = vperm.xlu0 %709, %v205
    %v711 = vpop.permute.xlu0 %710
    %712 = vset.pattern.permute.xlu0 2
    %713 = vperm.xlu0 %712, %v206
    %v714 = vpop.permute.xlu0 %713
    %715 = vset.pattern.permute.xlu0 2
    %716 = vperm.xlu0 %715, %v207
    %v717 = vpop.permute.xlu0 %716
    %718 = vset.pattern.permute.xlu0 2
    %719 = vperm.xlu0 %718, %v208
    %v720 = vpop.permute.xlu0 %719
    %721 = vset.pattern.permute.xlu0 2
    %722 = vperm.xlu0 %721, %v209
    %v723 = vpop.permute.xlu0 %722
    %vm724 = vcmp.eq.s32.totalorder %v211, %v630
    %vm725 = vcmp.eq.s32.totalorder %v211, %v633
    %vm726 = vcmp.eq.s32.totalorder %v211, %v636
    %vm727 = vcmp.eq.s32.totalorder %v211, %v639
    %vm728 = vcmp.eq.s32.totalorder %v211, %v642
    %vm729 = vcmp.eq.s32.totalorder %v211, %v645
    %vm730 = vcmp.eq.s32.totalorder %v211, %v648
    %vm731 = vcmp.eq.s32.totalorder %v211, %v651
    %vm732 = vcmp.eq.s32.totalorder %v211, %v654
    %vm733 = vcmp.eq.s32.totalorder %v211, %v657
    %vm734 = vcmp.eq.s32.totalorder %v211, %v660
    %vm735 = vcmp.eq.s32.totalorder %v211, %v663
    %vm736 = vcmp.eq.s32.totalorder %v211, %v666
    %vm737 = vcmp.eq.s32.totalorder %v211, %v669
    %vm738 = vcmp.eq.s32.totalorder %v211, %v672
    %vm739 = vcmp.eq.s32.totalorder %v211, %v675
    %vm740 = vcmp.eq.s32.totalorder %v211, %v678
    %vm741 = vcmp.eq.s32.totalorder %v211, %v681
    %vm742 = vcmp.eq.s32.totalorder %v211, %v684
    %vm743 = vcmp.eq.s32.totalorder %v211, %v687
    %vm744 = vcmp.eq.s32.totalorder %v211, %v690
    %vm745 = vcmp.eq.s32.totalorder %v211, %v693
    %vm746 = vcmp.eq.s32.totalorder %v211, %v696
    %vm747 = vcmp.eq.s32.totalorder %v211, %v699
    %vm748 = vcmp.eq.s32.totalorder %v211, %v702
    %vm749 = vcmp.eq.s32.totalorder %v211, %v705
    %vm750 = vcmp.eq.s32.totalorder %v211, %v708
    %vm751 = vcmp.eq.s32.totalorder %v211, %v711
    %vm752 = vcmp.eq.s32.totalorder %v211, %v714
    %vm753 = vcmp.eq.s32.totalorder %v211, %v717
    %vm754 = vcmp.eq.s32.totalorder %v211, %v720
    %vm755 = vcmp.eq.s32.totalorder %v211, %v723
    %v756 = vsel %vm724, 1, 0
    %v757 = vsel %vm725, 1, 0
    %v758 = vsel %vm726, 1, 0
    %v759 = vsel %vm727, 1, 0
    %v760 = vsel %vm728, 1, 0
    %v761 = vsel %vm729, 1, 0
    %v762 = vsel %vm730, 1, 0
    %v763 = vsel %vm731, 1, 0
    %v764 = vsel %vm732, 1, 0
    %v765 = vsel %vm733, 1, 0
    %v766 = vsel %vm734, 1, 0
    %v767 = vsel %vm735, 1, 0
    %v768 = vsel %vm736, 1, 0
    %v769 = vsel %vm737, 1, 0
    %v770 = vsel %vm738, 1, 0
    %v771 = vsel %vm739, 1, 0
    %v772 = vsel %vm740, 1, 0
    %v773 = vsel %vm741, 1, 0
    %v774 = vsel %vm742, 1, 0
    %v775 = vsel %vm743, 1, 0
    %v776 = vsel %vm744, 1, 0
    %v777 = vsel %vm745, 1, 0
    %v778 = vsel %vm746, 1, 0
    %v779 = vsel %vm747, 1, 0
    %v780 = vsel %vm748, 1, 0
    %v781 = vsel %vm749, 1, 0
    %v782 = vsel %vm750, 1, 0
    %v783 = vsel %vm751, 1, 0
    %v784 = vsel %vm752, 1, 0
    %v785 = vsel %vm753, 1, 0
    %v786 = vsel %vm754, 1, 0
    %v787 = vsel %vm755, 1, 0
    %v788 = vcvt.s32.f32 %v756
    %v789 = vcvt.s32.f32 %v757
    %v790 = vcvt.s32.f32 %v758
    %v791 = vcvt.s32.f32 %v759
    %v792 = vcvt.s32.f32 %v760
    %v793 = vcvt.s32.f32 %v761
    %v794 = vcvt.s32.f32 %v762
    %v795 = vcvt.s32.f32 %v763
    %v796 = vcvt.s32.f32 %v764
    %v797 = vcvt.s32.f32 %v765
    %v798 = vcvt.s32.f32 %v766
    %v799 = vcvt.s32.f32 %v767
    %v800 = vcvt.s32.f32 %v768
    %v801 = vcvt.s32.f32 %v769
    %v802 = vcvt.s32.f32 %v770
    %v803 = vcvt.s32.f32 %v771
    %v804 = vcvt.s32.f32 %v772
    %v805 = vcvt.s32.f32 %v773
    %v806 = vcvt.s32.f32 %v774
    %v807 = vcvt.s32.f32 %v775
    %v808 = vcvt.s32.f32 %v776
    %v809 = vcvt.s32.f32 %v777
    %v810 = vcvt.s32.f32 %v778
    %v811 = vcvt.s32.f32 %v779
    %v812 = vcvt.s32.f32 %v780
    %v813 = vcvt.s32.f32 %v781
    %v814 = vcvt.s32.f32 %v782
    %v815 = vcvt.s32.f32 %v783
    %v816 = vcvt.s32.f32 %v784
    %v817 = vcvt.s32.f32 %v785
    %v818 = vcvt.s32.f32 %v786
    %v819 = vcvt.s32.f32 %v787
    %v820 = vpack.c.bf16 %v789, %v788
    %v821 = vpack.c.bf16 %v791, %v790
    %v822 = vpack.c.bf16 %v793, %v792
    %v823 = vpack.c.bf16 %v795, %v794
    %v824 = vpack.c.bf16 %v797, %v796
    %v825 = vpack.c.bf16 %v799, %v798
    %v826 = vpack.c.bf16 %v801, %v800
    %v827 = vpack.c.bf16 %v803, %v802
    %v828 = vpack.c.bf16 %v805, %v804
    %v829 = vpack.c.bf16 %v807, %v806
    %v830 = vpack.c.bf16 %v809, %v808
    %v831 = vpack.c.bf16 %v811, %v810
    %v832 = vpack.c.bf16 %v813, %v812
    %v833 = vpack.c.bf16 %v815, %v814
    %v834 = vpack.c.bf16 %v817, %v816
    %v835 = vpack.c.bf16 %v819, %v818
    %836 = vset.pattern.permute.xlu0 3
    %837 = vperm.xlu0 %836, %v178
    %v838 = vpop.permute.xlu0 %837
    %839 = vset.pattern.permute.xlu0 3
    %840 = vperm.xlu0 %839, %v179
    %v841 = vpop.permute.xlu0 %840
    %842 = vset.pattern.permute.xlu0 3
    %843 = vperm.xlu0 %842, %v180
    %v844 = vpop.permute.xlu0 %843
    %845 = vset.pattern.permute.xlu0 3
    %846 = vperm.xlu0 %845, %v181
    %v847 = vpop.permute.xlu0 %846
    %848 = vset.pattern.permute.xlu0 3
    %849 = vperm.xlu0 %848, %v182
    %v850 = vpop.permute.xlu0 %849
    %851 = vset.pattern.permute.xlu0 3
    %852 = vperm.xlu0 %851, %v183
    %v853 = vpop.permute.xlu0 %852
    %854 = vset.pattern.permute.xlu0 3
    %855 = vperm.xlu0 %854, %v184
    %v856 = vpop.permute.xlu0 %855
    %857 = vset.pattern.permute.xlu0 3
    %858 = vperm.xlu0 %857, %v185
    %v859 = vpop.permute.xlu0 %858
    %860 = vset.pattern.permute.xlu0 3
    %861 = vperm.xlu0 %860, %v186
    %v862 = vpop.permute.xlu0 %861
    %863 = vset.pattern.permute.xlu0 3
    %864 = vperm.xlu0 %863, %v187
    %v865 = vpop.permute.xlu0 %864
    %866 = vset.pattern.permute.xlu0 3
    %867 = vperm.xlu0 %866, %v188
    %v868 = vpop.permute.xlu0 %867
    %869 = vset.pattern.permute.xlu0 3
    %870 = vperm.xlu0 %869, %v189
    %v871 = vpop.permute.xlu0 %870
    %872 = vset.pattern.permute.xlu0 3
    %873 = vperm.xlu0 %872, %v190
    %v874 = vpop.permute.xlu0 %873
    %875 = vset.pattern.permute.xlu0 3
    %876 = vperm.xlu0 %875, %v191
    %v877 = vpop.permute.xlu0 %876
    %878 = vset.pattern.permute.xlu0 3
    %879 = vperm.xlu0 %878, %v192
    %v880 = vpop.permute.xlu0 %879
    %881 = vset.pattern.permute.xlu0 3
    %882 = vperm.xlu0 %881, %v193
    %v883 = vpop.permute.xlu0 %882
    %884 = vset.pattern.permute.xlu0 3
    %885 = vperm.xlu0 %884, %v194
    %v886 = vpop.permute.xlu0 %885
    %887 = vset.pattern.permute.xlu0 3
    %888 = vperm.xlu0 %887, %v195
    %v889 = vpop.permute.xlu0 %888
    %890 = vset.pattern.permute.xlu0 3
    %891 = vperm.xlu0 %890, %v196
    %v892 = vpop.permute.xlu0 %891
    %893 = vset.pattern.permute.xlu0 3
    %894 = vperm.xlu0 %893, %v197
    %v895 = vpop.permute.xlu0 %894
    %896 = vset.pattern.permute.xlu0 3
    %897 = vperm.xlu0 %896, %v198
    %v898 = vpop.permute.xlu0 %897
    %899 = vset.pattern.permute.xlu0 3
    %900 = vperm.xlu0 %899, %v199
    %v901 = vpop.permute.xlu0 %900
    %902 = vset.pattern.permute.xlu0 3
    %903 = vperm.xlu0 %902, %v200
    %v904 = vpop.permute.xlu0 %903
    %905 = vset.pattern.permute.xlu0 3
    %906 = vperm.xlu0 %905, %v201
    %v907 = vpop.permute.xlu0 %906
    %908 = vset.pattern.permute.xlu0 3
    %909 = vperm.xlu0 %908, %v202
    %v910 = vpop.permute.xlu0 %909
    %911 = vset.pattern.permute.xlu0 3
    %912 = vperm.xlu0 %911, %v203
    %v913 = vpop.permute.xlu0 %912
    %914 = vset.pattern.permute.xlu0 3
    %915 = vperm.xlu0 %914, %v204
    %v916 = vpop.permute.xlu0 %915
    %917 = vset.pattern.permute.xlu0 3
    %918 = vperm.xlu0 %917, %v205
    %v919 = vpop.permute.xlu0 %918
    %920 = vset.pattern.permute.xlu0 3
    %921 = vperm.xlu0 %920, %v206
    %v922 = vpop.permute.xlu0 %921
    %923 = vset.pattern.permute.xlu0 3
    %924 = vperm.xlu0 %923, %v207
    %v925 = vpop.permute.xlu0 %924
    %926 = vset.pattern.permute.xlu0 3
    %927 = vperm.xlu0 %926, %v208
    %v928 = vpop.permute.xlu0 %927
    %929 = vset.pattern.permute.xlu0 3
    %930 = vperm.xlu0 %929, %v209
    %v931 = vpop.permute.xlu0 %930
    %vm932 = vcmp.eq.s32.totalorder %v211, %v838
    %vm933 = vcmp.eq.s32.totalorder %v211, %v841
    %vm934 = vcmp.eq.s32.totalorder %v211, %v844
    %vm935 = vcmp.eq.s32.totalorder %v211, %v847
    %vm936 = vcmp.eq.s32.totalorder %v211, %v850
    %vm937 = vcmp.eq.s32.totalorder %v211, %v853
    %vm938 = vcmp.eq.s32.totalorder %v211, %v856
    %vm939 = vcmp.eq.s32.totalorder %v211, %v859
    %vm940 = vcmp.eq.s32.totalorder %v211, %v862
    %vm941 = vcmp.eq.s32.totalorder %v211, %v865
    %vm942 = vcmp.eq.s32.totalorder %v211, %v868
    %vm943 = vcmp.eq.s32.totalorder %v211, %v871
    %vm944 = vcmp.eq.s32.totalorder %v211, %v874
    %vm945 = vcmp.eq.s32.totalorder %v211, %v877
    %vm946 = vcmp.eq.s32.totalorder %v211, %v880
    %vm947 = vcmp.eq.s32.totalorder %v211, %v883
    %vm948 = vcmp.eq.s32.totalorder %v211, %v886
    %vm949 = vcmp.eq.s32.totalorder %v211, %v889
    %vm950 = vcmp.eq.s32.totalorder %v211, %v892
    %vm951 = vcmp.eq.s32.totalorder %v211, %v895
    %vm952 = vcmp.eq.s32.totalorder %v211, %v898
    %vm953 = vcmp.eq.s32.totalorder %v211, %v901
    %vm954 = vcmp.eq.s32.totalorder %v211, %v904
    %vm955 = vcmp.eq.s32.totalorder %v211, %v907
    %vm956 = vcmp.eq.s32.totalorder %v211, %v910
    %vm957 = vcmp.eq.s32.totalorder %v211, %v913
    %vm958 = vcmp.eq.s32.totalorder %v211, %v916
    %vm959 = vcmp.eq.s32.totalorder %v211, %v919
    %vm960 = vcmp.eq.s32.totalorder %v211, %v922
    %vm961 = vcmp.eq.s32.totalorder %v211, %v925
    %vm962 = vcmp.eq.s32.totalorder %v211, %v928
    %vm963 = vcmp.eq.s32.totalorder %v211, %v931
    %v964 = vsel %vm932, 1, 0
    %v965 = vsel %vm933, 1, 0
    %v966 = vsel %vm934, 1, 0
    %v967 = vsel %vm935, 1, 0
    %v968 = vsel %vm936, 1, 0
    %v969 = vsel %vm937, 1, 0
    %v970 = vsel %vm938, 1, 0
    %v971 = vsel %vm939, 1, 0
    %v972 = vsel %vm940, 1, 0
    %v973 = vsel %vm941, 1, 0
    %v974 = vsel %vm942, 1, 0
    %v975 = vsel %vm943, 1, 0
    %v976 = vsel %vm944, 1, 0
    %v977 = vsel %vm945, 1, 0
    %v978 = vsel %vm946, 1, 0
    %v979 = vsel %vm947, 1, 0
    %v980 = vsel %vm948, 1, 0
    %v981 = vsel %vm949, 1, 0
    %v982 = vsel %vm950, 1, 0
    %v983 = vsel %vm951, 1, 0
    %v984 = vsel %vm952, 1, 0
    %v985 = vsel %vm953, 1, 0
    %v986 = vsel %vm954, 1, 0
    %v987 = vsel %vm955, 1, 0
    %v988 = vsel %vm956, 1, 0
    %v989 = vsel %vm957, 1, 0
    %v990 = vsel %vm958, 1, 0
    %v991 = vsel %vm959, 1, 0
    %v992 = vsel %vm960, 1, 0
    %v993 = vsel %vm961, 1, 0
    %v994 = vsel %vm962, 1, 0
    %v995 = vsel %vm963, 1, 0
    %v996 = vcvt.s32.f32 %v964
    %v997 = vcvt.s32.f32 %v965
    %v998 = vcvt.s32.f32 %v966
    %v999 = vcvt.s32.f32 %v967
    %v1000 = vcvt.s32.f32 %v968
    %v1001 = vcvt.s32.f32 %v969
    %v1002 = vcvt.s32.f32 %v970
    %v1003 = vcvt.s32.f32 %v971
    %v1004 = vcvt.s32.f32 %v972
    %v1005 = vcvt.s32.f32 %v973
    %v1006 = vcvt.s32.f32 %v974
    %v1007 = vcvt.s32.f32 %v975
    %v1008 = vcvt.s32.f32 %v976
    %v1009 = vcvt.s32.f32 %v977
    %v1010 = vcvt.s32.f32 %v978
    %v1011 = vcvt.s32.f32 %v979
    %v1012 = vcvt.s32.f32 %v980
    %v1013 = vcvt.s32.f32 %v981
    %v1014 = vcvt.s32.f32 %v982
    %v1015 = vcvt.s32.f32 %v983
    %v1016 = vcvt.s32.f32 %v984
    %v1017 = vcvt.s32.f32 %v985
    %v1018 = vcvt.s32.f32 %v986
    %v1019 = vcvt.s32.f32 %v987
    %v1020 = vcvt.s32.f32 %v988
    %v1021 = vcvt.s32.f32 %v989
    %v1022 = vcvt.s32.f32 %v990
    %v1023 = vcvt.s32.f32 %v991
    %v1024 = vcvt.s32.f32 %v992
    %v1025 = vcvt.s32.f32 %v993
    %v1026 = vcvt.s32.f32 %v994
    %v1027 = vcvt.s32.f32 %v995
    %v1028 = vpack.c.bf16 %v997, %v996
    %v1029 = vpack.c.bf16 %v999, %v998
    %v1030 = vpack.c.bf16 %v1001, %v1000
    %v1031 = vpack.c.bf16 %v1003, %v1002
    %v1032 = vpack.c.bf16 %v1005, %v1004
    %v1033 = vpack.c.bf16 %v1007, %v1006
    %v1034 = vpack.c.bf16 %v1009, %v1008
    %v1035 = vpack.c.bf16 %v1011, %v1010
    %v1036 = vpack.c.bf16 %v1013, %v1012
    %v1037 = vpack.c.bf16 %v1015, %v1014
    %v1038 = vpack.c.bf16 %v1017, %v1016
    %v1039 = vpack.c.bf16 %v1019, %v1018
    %v1040 = vpack.c.bf16 %v1021, %v1020
    %v1041 = vpack.c.bf16 %v1023, %v1022
    %v1042 = vpack.c.bf16 %v1025, %v1024
    %v1043 = vpack.c.bf16 %v1027, %v1026
    %1044 = vset.pattern.permute.xlu0 4
    %1045 = vperm.xlu0 %1044, %v178
    %v1046 = vpop.permute.xlu0 %1045
    %1047 = vset.pattern.permute.xlu0 4
    %1048 = vperm.xlu0 %1047, %v179
    %v1049 = vpop.permute.xlu0 %1048
    %1050 = vset.pattern.permute.xlu0 4
    %1051 = vperm.xlu0 %1050, %v180
    %v1052 = vpop.permute.xlu0 %1051
    %1053 = vset.pattern.permute.xlu0 4
    %1054 = vperm.xlu0 %1053, %v181
    %v1055 = vpop.permute.xlu0 %1054
    %1056 = vset.pattern.permute.xlu0 4
    %1057 = vperm.xlu0 %1056, %v182
    %v1058 = vpop.permute.xlu0 %1057
    %1059 = vset.pattern.permute.xlu0 4
    %1060 = vperm.xlu0 %1059, %v183
    %v1061 = vpop.permute.xlu0 %1060
    %1062 = vset.pattern.permute.xlu0 4
    %1063 = vperm.xlu0 %1062, %v184
    %v1064 = vpop.permute.xlu0 %1063
    %1065 = vset.pattern.permute.xlu0 4
    %1066 = vperm.xlu0 %1065, %v185
    %v1067 = vpop.permute.xlu0 %1066
    %1068 = vset.pattern.permute.xlu0 4
    %1069 = vperm.xlu0 %1068, %v186
    %v1070 = vpop.permute.xlu0 %1069
    %1071 = vset.pattern.permute.xlu0 4
    %1072 = vperm.xlu0 %1071, %v187
    %v1073 = vpop.permute.xlu0 %1072
    %1074 = vset.pattern.permute.xlu0 4
    %1075 = vperm.xlu0 %1074, %v188
    %v1076 = vpop.permute.xlu0 %1075
    %1077 = vset.pattern.permute.xlu0 4
    %1078 = vperm.xlu0 %1077, %v189
    %v1079 = vpop.permute.xlu0 %1078
    %1080 = vset.pattern.permute.xlu0 4
    %1081 = vperm.xlu0 %1080, %v190
    %v1082 = vpop.permute.xlu0 %1081
    %1083 = vset.pattern.permute.xlu0 4
    %1084 = vperm.xlu0 %1083, %v191
    %v1085 = vpop.permute.xlu0 %1084
    %1086 = vset.pattern.permute.xlu0 4
    %1087 = vperm.xlu0 %1086, %v192
    %v1088 = vpop.permute.xlu0 %1087
    %1089 = vset.pattern.permute.xlu0 4
    %1090 = vperm.xlu0 %1089, %v193
    %v1091 = vpop.permute.xlu0 %1090
    %1092 = vset.pattern.permute.xlu0 4
    %1093 = vperm.xlu0 %1092, %v194
    %v1094 = vpop.permute.xlu0 %1093
    %1095 = vset.pattern.permute.xlu0 4
    %1096 = vperm.xlu0 %1095, %v195
    %v1097 = vpop.permute.xlu0 %1096
    %1098 = vset.pattern.permute.xlu0 4
    %1099 = vperm.xlu0 %1098, %v196
    %v1100 = vpop.permute.xlu0 %1099
    %1101 = vset.pattern.permute.xlu0 4
    %1102 = vperm.xlu0 %1101, %v197
    %v1103 = vpop.permute.xlu0 %1102
    %1104 = vset.pattern.permute.xlu0 4
    %1105 = vperm.xlu0 %1104, %v198
    %v1106 = vpop.permute.xlu0 %1105
    %1107 = vset.pattern.permute.xlu0 4
    %1108 = vperm.xlu0 %1107, %v199
    %v1109 = vpop.permute.xlu0 %1108
    %1110 = vset.pattern.permute.xlu0 4
    %1111 = vperm.xlu0 %1110, %v200
    %v1112 = vpop.permute.xlu0 %1111
    %1113 = vset.pattern.permute.xlu0 4
    %1114 = vperm.xlu0 %1113, %v201
    %v1115 = vpop.permute.xlu0 %1114
    %1116 = vset.pattern.permute.xlu0 4
    %1117 = vperm.xlu0 %1116, %v202
    %v1118 = vpop.permute.xlu0 %1117
    %1119 = vset.pattern.permute.xlu0 4
    %1120 = vperm.xlu0 %1119, %v203
    %v1121 = vpop.permute.xlu0 %1120
    %1122 = vset.pattern.permute.xlu0 4
    %1123 = vperm.xlu0 %1122, %v204
    %v1124 = vpop.permute.xlu0 %1123
    %1125 = vset.pattern.permute.xlu0 4
    %1126 = vperm.xlu0 %1125, %v205
    %v1127 = vpop.permute.xlu0 %1126
    %1128 = vset.pattern.permute.xlu0 4
    %1129 = vperm.xlu0 %1128, %v206
    %v1130 = vpop.permute.xlu0 %1129
    %1131 = vset.pattern.permute.xlu0 4
    %1132 = vperm.xlu0 %1131, %v207
    %v1133 = vpop.permute.xlu0 %1132
    %1134 = vset.pattern.permute.xlu0 4
    %1135 = vperm.xlu0 %1134, %v208
    %v1136 = vpop.permute.xlu0 %1135
    %1137 = vset.pattern.permute.xlu0 4
    %1138 = vperm.xlu0 %1137, %v209
    %v1139 = vpop.permute.xlu0 %1138
    %vm1140 = vcmp.eq.s32.totalorder %v211, %v1046
    %vm1141 = vcmp.eq.s32.totalorder %v211, %v1049
    %vm1142 = vcmp.eq.s32.totalorder %v211, %v1052
    %vm1143 = vcmp.eq.s32.totalorder %v211, %v1055
    %vm1144 = vcmp.eq.s32.totalorder %v211, %v1058
    %vm1145 = vcmp.eq.s32.totalorder %v211, %v1061
    %vm1146 = vcmp.eq.s32.totalorder %v211, %v1064
    %vm1147 = vcmp.eq.s32.totalorder %v211, %v1067
    %vm1148 = vcmp.eq.s32.totalorder %v211, %v1070
    %vm1149 = vcmp.eq.s32.totalorder %v211, %v1073
    %vm1150 = vcmp.eq.s32.totalorder %v211, %v1076
    %vm1151 = vcmp.eq.s32.totalorder %v211, %v1079
    %vm1152 = vcmp.eq.s32.totalorder %v211, %v1082
    %vm1153 = vcmp.eq.s32.totalorder %v211, %v1085
    %vm1154 = vcmp.eq.s32.totalorder %v211, %v1088
    %vm1155 = vcmp.eq.s32.totalorder %v211, %v1091
    %vm1156 = vcmp.eq.s32.totalorder %v211, %v1094
    %vm1157 = vcmp.eq.s32.totalorder %v211, %v1097
    %vm1158 = vcmp.eq.s32.totalorder %v211, %v1100
    %vm1159 = vcmp.eq.s32.totalorder %v211, %v1103
    %vm1160 = vcmp.eq.s32.totalorder %v211, %v1106
    %vm1161 = vcmp.eq.s32.totalorder %v211, %v1109
    %vm1162 = vcmp.eq.s32.totalorder %v211, %v1112
    %vm1163 = vcmp.eq.s32.totalorder %v211, %v1115
    %vm1164 = vcmp.eq.s32.totalorder %v211, %v1118
    %vm1165 = vcmp.eq.s32.totalorder %v211, %v1121
    %vm1166 = vcmp.eq.s32.totalorder %v211, %v1124
    %vm1167 = vcmp.eq.s32.totalorder %v211, %v1127
    %vm1168 = vcmp.eq.s32.totalorder %v211, %v1130
    %vm1169 = vcmp.eq.s32.totalorder %v211, %v1133
    %vm1170 = vcmp.eq.s32.totalorder %v211, %v1136
    %vm1171 = vcmp.eq.s32.totalorder %v211, %v1139
    %v1172 = vsel %vm1140, 1, 0
    %v1173 = vsel %vm1141, 1, 0
    %v1174 = vsel %vm1142, 1, 0
    %v1175 = vsel %vm1143, 1, 0
    %v1176 = vsel %vm1144, 1, 0
    %v1177 = vsel %vm1145, 1, 0
    %v1178 = vsel %vm1146, 1, 0
    %v1179 = vsel %vm1147, 1, 0
    %v1180 = vsel %vm1148, 1, 0
    %v1181 = vsel %vm1149, 1, 0
    %v1182 = vsel %vm1150, 1, 0
    %v1183 = vsel %vm1151, 1, 0
    %v1184 = vsel %vm1152, 1, 0
    %v1185 = vsel %vm1153, 1, 0
    %v1186 = vsel %vm1154, 1, 0
    %v1187 = vsel %vm1155, 1, 0
    %v1188 = vsel %vm1156, 1, 0
    %v1189 = vsel %vm1157, 1, 0
    %v1190 = vsel %vm1158, 1, 0
    %v1191 = vsel %vm1159, 1, 0
    %v1192 = vsel %vm1160, 1, 0
    %v1193 = vsel %vm1161, 1, 0
    %v1194 = vsel %vm1162, 1, 0
    %v1195 = vsel %vm1163, 1, 0
    %v1196 = vsel %vm1164, 1, 0
    %v1197 = vsel %vm1165, 1, 0
    %v1198 = vsel %vm1166, 1, 0
    %v1199 = vsel %vm1167, 1, 0
    %v1200 = vsel %vm1168, 1, 0
    %v1201 = vsel %vm1169, 1, 0
    %v1202 = vsel %vm1170, 1, 0
    %v1203 = vsel %vm1171, 1, 0
    %v1204 = vcvt.s32.f32 %v1172
    %v1205 = vcvt.s32.f32 %v1173
    %v1206 = vcvt.s32.f32 %v1174
    %v1207 = vcvt.s32.f32 %v1175
    %v1208 = vcvt.s32.f32 %v1176
    %v1209 = vcvt.s32.f32 %v1177
    %v1210 = vcvt.s32.f32 %v1178
    %v1211 = vcvt.s32.f32 %v1179
    %v1212 = vcvt.s32.f32 %v1180
    %v1213 = vcvt.s32.f32 %v1181
    %v1214 = vcvt.s32.f32 %v1182
    %v1215 = vcvt.s32.f32 %v1183
    %v1216 = vcvt.s32.f32 %v1184
    %v1217 = vcvt.s32.f32 %v1185
    %v1218 = vcvt.s32.f32 %v1186
    %v1219 = vcvt.s32.f32 %v1187
    %v1220 = vcvt.s32.f32 %v1188
    %v1221 = vcvt.s32.f32 %v1189
    %v1222 = vcvt.s32.f32 %v1190
    %v1223 = vcvt.s32.f32 %v1191
    %v1224 = vcvt.s32.f32 %v1192
    %v1225 = vcvt.s32.f32 %v1193
    %v1226 = vcvt.s32.f32 %v1194
    %v1227 = vcvt.s32.f32 %v1195
    %v1228 = vcvt.s32.f32 %v1196
    %v1229 = vcvt.s32.f32 %v1197
    %v1230 = vcvt.s32.f32 %v1198
    %v1231 = vcvt.s32.f32 %v1199
    %v1232 = vcvt.s32.f32 %v1200
    %v1233 = vcvt.s32.f32 %v1201
    %v1234 = vcvt.s32.f32 %v1202
    %v1235 = vcvt.s32.f32 %v1203
    %v1236 = vpack.c.bf16 %v1205, %v1204
    %v1237 = vpack.c.bf16 %v1207, %v1206
    %v1238 = vpack.c.bf16 %v1209, %v1208
    %v1239 = vpack.c.bf16 %v1211, %v1210
    %v1240 = vpack.c.bf16 %v1213, %v1212
    %v1241 = vpack.c.bf16 %v1215, %v1214
    %v1242 = vpack.c.bf16 %v1217, %v1216
    %v1243 = vpack.c.bf16 %v1219, %v1218
    %v1244 = vpack.c.bf16 %v1221, %v1220
    %v1245 = vpack.c.bf16 %v1223, %v1222
    %v1246 = vpack.c.bf16 %v1225, %v1224
    %v1247 = vpack.c.bf16 %v1227, %v1226
    %v1248 = vpack.c.bf16 %v1229, %v1228
    %v1249 = vpack.c.bf16 %v1231, %v1230
    %v1250 = vpack.c.bf16 %v1233, %v1232
    %v1251 = vpack.c.bf16 %v1235, %v1234
    %1252 = vset.pattern.permute.xlu0 5
    %1253 = vperm.xlu0 %1252, %v178
    %v1254 = vpop.permute.xlu0 %1253
    %1255 = vset.pattern.permute.xlu0 5
    %1256 = vperm.xlu0 %1255, %v179
    %v1257 = vpop.permute.xlu0 %1256
    %1258 = vset.pattern.permute.xlu0 5
    %1259 = vperm.xlu0 %1258, %v180
    %v1260 = vpop.permute.xlu0 %1259
    %1261 = vset.pattern.permute.xlu0 5
    %1262 = vperm.xlu0 %1261, %v181
    %v1263 = vpop.permute.xlu0 %1262
    %1264 = vset.pattern.permute.xlu0 5
    %1265 = vperm.xlu0 %1264, %v182
    %v1266 = vpop.permute.xlu0 %1265
    %1267 = vset.pattern.permute.xlu0 5
    %1268 = vperm.xlu0 %1267, %v183
    %v1269 = vpop.permute.xlu0 %1268
    %1270 = vset.pattern.permute.xlu0 5
    %1271 = vperm.xlu0 %1270, %v184
    %v1272 = vpop.permute.xlu0 %1271
    %1273 = vset.pattern.permute.xlu0 5
    %1274 = vperm.xlu0 %1273, %v185
    %v1275 = vpop.permute.xlu0 %1274
    %1276 = vset.pattern.permute.xlu0 5
    %1277 = vperm.xlu0 %1276, %v186
    %v1278 = vpop.permute.xlu0 %1277
    %1279 = vset.pattern.permute.xlu0 5
    %1280 = vperm.xlu0 %1279, %v187
    %v1281 = vpop.permute.xlu0 %1280
    %1282 = vset.pattern.permute.xlu0 5
    %1283 = vperm.xlu0 %1282, %v188
    %v1284 = vpop.permute.xlu0 %1283
    %1285 = vset.pattern.permute.xlu0 5
    %1286 = vperm.xlu0 %1285, %v189
    %v1287 = vpop.permute.xlu0 %1286
    %1288 = vset.pattern.permute.xlu0 5
    %1289 = vperm.xlu0 %1288, %v190
    %v1290 = vpop.permute.xlu0 %1289
    %1291 = vset.pattern.permute.xlu0 5
    %1292 = vperm.xlu0 %1291, %v191
    %v1293 = vpop.permute.xlu0 %1292
    %1294 = vset.pattern.permute.xlu0 5
    %1295 = vperm.xlu0 %1294, %v192
    %v1296 = vpop.permute.xlu0 %1295
    %1297 = vset.pattern.permute.xlu0 5
    %1298 = vperm.xlu0 %1297, %v193
    %v1299 = vpop.permute.xlu0 %1298
    %1300 = vset.pattern.permute.xlu0 5
    %1301 = vperm.xlu0 %1300, %v194
    %v1302 = vpop.permute.xlu0 %1301
    %1303 = vset.pattern.permute.xlu0 5
    %1304 = vperm.xlu0 %1303, %v195
    %v1305 = vpop.permute.xlu0 %1304
    %1306 = vset.pattern.permute.xlu0 5
    %1307 = vperm.xlu0 %1306, %v196
    %v1308 = vpop.permute.xlu0 %1307
    %1309 = vset.pattern.permute.xlu0 5
    %1310 = vperm.xlu0 %1309, %v197
    %v1311 = vpop.permute.xlu0 %1310
    %1312 = vset.pattern.permute.xlu0 5
    %1313 = vperm.xlu0 %1312, %v198
    %v1314 = vpop.permute.xlu0 %1313
    %1315 = vset.pattern.permute.xlu0 5
    %1316 = vperm.xlu0 %1315, %v199
    %v1317 = vpop.permute.xlu0 %1316
    %1318 = vset.pattern.permute.xlu0 5
    %1319 = vperm.xlu0 %1318, %v200
    %v1320 = vpop.permute.xlu0 %1319
    %1321 = vset.pattern.permute.xlu0 5
    %1322 = vperm.xlu0 %1321, %v201
    %v1323 = vpop.permute.xlu0 %1322
    %1324 = vset.pattern.permute.xlu0 5
    %1325 = vperm.xlu0 %1324, %v202
    %v1326 = vpop.permute.xlu0 %1325
    %1327 = vset.pattern.permute.xlu0 5
    %1328 = vperm.xlu0 %1327, %v203
    %v1329 = vpop.permute.xlu0 %1328
    %1330 = vset.pattern.permute.xlu0 5
    %1331 = vperm.xlu0 %1330, %v204
    %v1332 = vpop.permute.xlu0 %1331
    %1333 = vset.pattern.permute.xlu0 5
    %1334 = vperm.xlu0 %1333, %v205
    %v1335 = vpop.permute.xlu0 %1334
    %1336 = vset.pattern.permute.xlu0 5
    %1337 = vperm.xlu0 %1336, %v206
    %v1338 = vpop.permute.xlu0 %1337
    %1339 = vset.pattern.permute.xlu0 5
    %1340 = vperm.xlu0 %1339, %v207
    %v1341 = vpop.permute.xlu0 %1340
    %1342 = vset.pattern.permute.xlu0 5
    %1343 = vperm.xlu0 %1342, %v208
    %v1344 = vpop.permute.xlu0 %1343
    %1345 = vset.pattern.permute.xlu0 5
    %1346 = vperm.xlu0 %1345, %v209
    %v1347 = vpop.permute.xlu0 %1346
    %vm1348 = vcmp.eq.s32.totalorder %v211, %v1254
    %vm1349 = vcmp.eq.s32.totalorder %v211, %v1257
    %vm1350 = vcmp.eq.s32.totalorder %v211, %v1260
    %vm1351 = vcmp.eq.s32.totalorder %v211, %v1263
    %vm1352 = vcmp.eq.s32.totalorder %v211, %v1266
    %vm1353 = vcmp.eq.s32.totalorder %v211, %v1269
    %vm1354 = vcmp.eq.s32.totalorder %v211, %v1272
    %vm1355 = vcmp.eq.s32.totalorder %v211, %v1275
    %vm1356 = vcmp.eq.s32.totalorder %v211, %v1278
    %vm1357 = vcmp.eq.s32.totalorder %v211, %v1281
    %vm1358 = vcmp.eq.s32.totalorder %v211, %v1284
    %vm1359 = vcmp.eq.s32.totalorder %v211, %v1287
    %vm1360 = vcmp.eq.s32.totalorder %v211, %v1290
    %vm1361 = vcmp.eq.s32.totalorder %v211, %v1293
    %vm1362 = vcmp.eq.s32.totalorder %v211, %v1296
    %vm1363 = vcmp.eq.s32.totalorder %v211, %v1299
    %vm1364 = vcmp.eq.s32.totalorder %v211, %v1302
    %vm1365 = vcmp.eq.s32.totalorder %v211, %v1305
    %vm1366 = vcmp.eq.s32.totalorder %v211, %v1308
    %vm1367 = vcmp.eq.s32.totalorder %v211, %v1311
    %vm1368 = vcmp.eq.s32.totalorder %v211, %v1314
    %vm1369 = vcmp.eq.s32.totalorder %v211, %v1317
    %vm1370 = vcmp.eq.s32.totalorder %v211, %v1320
    %vm1371 = vcmp.eq.s32.totalorder %v211, %v1323
    %vm1372 = vcmp.eq.s32.totalorder %v211, %v1326
    %vm1373 = vcmp.eq.s32.totalorder %v211, %v1329
    %vm1374 = vcmp.eq.s32.totalorder %v211, %v1332
    %vm1375 = vcmp.eq.s32.totalorder %v211, %v1335
    %vm1376 = vcmp.eq.s32.totalorder %v211, %v1338
    %vm1377 = vcmp.eq.s32.totalorder %v211, %v1341
    %vm1378 = vcmp.eq.s32.totalorder %v211, %v1344
    %vm1379 = vcmp.eq.s32.totalorder %v211, %v1347
    %v1380 = vsel %vm1348, 1, 0
    %v1381 = vsel %vm1349, 1, 0
    %v1382 = vsel %vm1350, 1, 0
    %v1383 = vsel %vm1351, 1, 0
    %v1384 = vsel %vm1352, 1, 0
    %v1385 = vsel %vm1353, 1, 0
    %v1386 = vsel %vm1354, 1, 0
    %v1387 = vsel %vm1355, 1, 0
    %v1388 = vsel %vm1356, 1, 0
    %v1389 = vsel %vm1357, 1, 0
    %v1390 = vsel %vm1358, 1, 0
    %v1391 = vsel %vm1359, 1, 0
    %v1392 = vsel %vm1360, 1, 0
    %v1393 = vsel %vm1361, 1, 0
    %v1394 = vsel %vm1362, 1, 0
    %v1395 = vsel %vm1363, 1, 0
    %v1396 = vsel %vm1364, 1, 0
    %v1397 = vsel %vm1365, 1, 0
    %v1398 = vsel %vm1366, 1, 0
    %v1399 = vsel %vm1367, 1, 0
    %v1400 = vsel %vm1368, 1, 0
    %v1401 = vsel %vm1369, 1, 0
    %v1402 = vsel %vm1370, 1, 0
    %v1403 = vsel %vm1371, 1, 0
    %v1404 = vsel %vm1372, 1, 0
    %v1405 = vsel %vm1373, 1, 0
    %v1406 = vsel %vm1374, 1, 0
    %v1407 = vsel %vm1375, 1, 0
    %v1408 = vsel %vm1376, 1, 0
    %v1409 = vsel %vm1377, 1, 0
    %v1410 = vsel %vm1378, 1, 0
    %v1411 = vsel %vm1379, 1, 0
    %v1412 = vcvt.s32.f32 %v1380
    %v1413 = vcvt.s32.f32 %v1381
    %v1414 = vcvt.s32.f32 %v1382
    %v1415 = vcvt.s32.f32 %v1383
    %v1416 = vcvt.s32.f32 %v1384
    %v1417 = vcvt.s32.f32 %v1385
    %v1418 = vcvt.s32.f32 %v1386
    %v1419 = vcvt.s32.f32 %v1387
    %v1420 = vcvt.s32.f32 %v1388
    %v1421 = vcvt.s32.f32 %v1389
    %v1422 = vcvt.s32.f32 %v1390
    %v1423 = vcvt.s32.f32 %v1391
    %v1424 = vcvt.s32.f32 %v1392
    %v1425 = vcvt.s32.f32 %v1393
    %v1426 = vcvt.s32.f32 %v1394
    %v1427 = vcvt.s32.f32 %v1395
    %v1428 = vcvt.s32.f32 %v1396
    %v1429 = vcvt.s32.f32 %v1397
    %v1430 = vcvt.s32.f32 %v1398
    %v1431 = vcvt.s32.f32 %v1399
    %v1432 = vcvt.s32.f32 %v1400
    %v1433 = vcvt.s32.f32 %v1401
    %v1434 = vcvt.s32.f32 %v1402
    %v1435 = vcvt.s32.f32 %v1403
    %v1436 = vcvt.s32.f32 %v1404
    %v1437 = vcvt.s32.f32 %v1405
    %v1438 = vcvt.s32.f32 %v1406
    %v1439 = vcvt.s32.f32 %v1407
    %v1440 = vcvt.s32.f32 %v1408
    %v1441 = vcvt.s32.f32 %v1409
    %v1442 = vcvt.s32.f32 %v1410
    %v1443 = vcvt.s32.f32 %v1411
    %v1444 = vpack.c.bf16 %v1413, %v1412
    %v1445 = vpack.c.bf16 %v1415, %v1414
    %v1446 = vpack.c.bf16 %v1417, %v1416
    %v1447 = vpack.c.bf16 %v1419, %v1418
    %v1448 = vpack.c.bf16 %v1421, %v1420
    %v1449 = vpack.c.bf16 %v1423, %v1422
    %v1450 = vpack.c.bf16 %v1425, %v1424
    %v1451 = vpack.c.bf16 %v1427, %v1426
    %v1452 = vpack.c.bf16 %v1429, %v1428
    %v1453 = vpack.c.bf16 %v1431, %v1430
    %v1454 = vpack.c.bf16 %v1433, %v1432
    %v1455 = vpack.c.bf16 %v1435, %v1434
    %v1456 = vpack.c.bf16 %v1437, %v1436
    %v1457 = vpack.c.bf16 %v1439, %v1438
    %v1458 = vpack.c.bf16 %v1441, %v1440
    %v1459 = vpack.c.bf16 %v1443, %v1442
    %v1460 = vld [vmem:[#allocation5] sm:$0xff]
    %v1461 = vld [vmem:[#allocation5 + $0x8] sm:$0xff]
    %v1462 = vld [vmem:[#allocation5 + $0x10] sm:$0xff]
    %v1463 = vld [vmem:[#allocation5 + $0x18] sm:$0xff]
    %v1464 = vld [vmem:[#allocation5 + $0x20] sm:$0xff]
    %v1465 = vld [vmem:[#allocation5 + $0x28] sm:$0xff]
    %v1466 = vld [vmem:[#allocation5 + $0x30] sm:$0xff]
    %v1467 = vld [vmem:[#allocation5 + $0x38] sm:$0xff]
    %v1468 = vld [vmem:[#allocation5 + $0x40] sm:$0xff]
    %v1469 = vld [vmem:[#allocation5 + $0x48] sm:$0xff]
    %v1470 = vld [vmem:[#allocation5 + $0x50] sm:$0xff]
    %v1471 = vld [vmem:[#allocation5 + $0x58] sm:$0xff]
    %v1472 = vld [vmem:[#allocation5 + $0x60] sm:$0xff]
    %v1473 = vld [vmem:[#allocation5 + $0x68] sm:$0xff]
    %v1474 = vld [vmem:[#allocation5 + $0x70] sm:$0xff]
    %v1475 = vld [vmem:[#allocation5 + $0x78] sm:$0xff]
    %v1476 = vld [vmem:[#allocation5 + $0x80] sm:$0xff]
    %v1477 = vld [vmem:[#allocation5 + $0x88] sm:$0xff]
    %v1478 = vld [vmem:[#allocation5 + $0x90] sm:$0xff]
    %v1479 = vld [vmem:[#allocation5 + $0x98] sm:$0xff]
    %v1480 = vld [vmem:[#allocation5 + $0xa0] sm:$0xff]
    %v1481 = vld [vmem:[#allocation5 + $0xa8] sm:$0xff]
    %v1482 = vld [vmem:[#allocation5 + $0xb0] sm:$0xff]
    %v1483 = vld [vmem:[#allocation5 + $0xb8] sm:$0xff]
    %v1484 = vld [vmem:[#allocation5 + $0xc0] sm:$0xff]
    %v1485 = vld [vmem:[#allocation5 + $0xc8] sm:$0xff]
    %v1486 = vld [vmem:[#allocation5 + $0xd0] sm:$0xff]
    %v1487 = vld [vmem:[#allocation5 + $0xd8] sm:$0xff]
    %v1488 = vld [vmem:[#allocation5 + $0xe0] sm:$0xff]
    %v1489 = vld [vmem:[#allocation5 + $0xe8] sm:$0xff]
    %v1490 = vld [vmem:[#allocation5 + $0xf0] sm:$0xff]
    %v1491 = vld [vmem:[#allocation5 + $0xf8] sm:$0xff]
    %v1492 = vld [vmem:[#allocation5 + $0x100] sm:$0xff]
    %v1493 = vld [vmem:[#allocation5 + $0x108] sm:$0xff]
    %v1494 = vld [vmem:[#allocation5 + $0x110] sm:$0xff]
    %v1495 = vld [vmem:[#allocation5 + $0x118] sm:$0xff]
    %v1496 = vld [vmem:[#allocation5 + $0x120] sm:$0xff]
    %v1497 = vld [vmem:[#allocation5 + $0x128] sm:$0xff]
    %v1498 = vld [vmem:[#allocation5 + $0x130] sm:$0xff]
    %v1499 = vld [vmem:[#allocation5 + $0x138] sm:$0xff]
    %v1500 = vld [vmem:[#allocation5 + $0x140] sm:$0xff]
    %v1501 = vld [vmem:[#allocation5 + $0x148] sm:$0xff]
    %v1502 = vld [vmem:[#allocation5 + $0x150] sm:$0xff]
    %v1503 = vld [vmem:[#allocation5 + $0x158] sm:$0xff]
    %v1504 = vld [vmem:[#allocation5 + $0x160] sm:$0xff]
    %v1505 = vld [vmem:[#allocation5 + $0x168] sm:$0xff]
    %v1506 = vld [vmem:[#allocation5 + $0x170] sm:$0xff]
    %v1507 = vld [vmem:[#allocation5 + $0x178] sm:$0xff]
    %v1508 = vld [vmem:[#allocation5 + $0x180] sm:$0xff]
    %v1509 = vld [vmem:[#allocation5 + $0x188] sm:$0xff]
    %v1510 = vld [vmem:[#allocation5 + $0x190] sm:$0xff]
    %v1511 = vld [vmem:[#allocation5 + $0x198] sm:$0xff]
    %v1512 = vld [vmem:[#allocation5 + $0x1a0] sm:$0xff]
    %v1513 = vld [vmem:[#allocation5 + $0x1a8] sm:$0xff]
    %v1514 = vld [vmem:[#allocation5 + $0x1b0] sm:$0xff]
    %v1515 = vld [vmem:[#allocation5 + $0x1b8] sm:$0xff]
    %v1516 = vld [vmem:[#allocation5 + $0x1c0] sm:$0xff]
    %v1517 = vld [vmem:[#allocation5 + $0x1c8] sm:$0xff]
    %v1518 = vld [vmem:[#allocation5 + $0x1d0] sm:$0xff]
    %v1519 = vld [vmem:[#allocation5 + $0x1d8] sm:$0xff]
    %v1520 = vld [vmem:[#allocation5 + $0x1e0] sm:$0xff]
    %v1521 = vld [vmem:[#allocation5 + $0x1e8] sm:$0xff]
    %v1522 = vld [vmem:[#allocation5 + $0x1f0] sm:$0xff]
    %v1523 = vld [vmem:[#allocation5 + $0x1f8] sm:$0xff]
    %v1524 = vld [vmem:[#allocation5 + $0x200] sm:$0xff]
    %v1525 = vld [vmem:[#allocation5 + $0x208] sm:$0xff]
    %v1526 = vld [vmem:[#allocation5 + $0x210] sm:$0xff]
    %v1527 = vld [vmem:[#allocation5 + $0x218] sm:$0xff]
    %v1528 = vld [vmem:[#allocation5 + $0x220] sm:$0xff]
    %v1529 = vld [vmem:[#allocation5 + $0x228] sm:$0xff]
    %v1530 = vld [vmem:[#allocation5 + $0x230] sm:$0xff]
    %v1531 = vld [vmem:[#allocation5 + $0x238] sm:$0xff]
    %v1532 = vld [vmem:[#allocation5 + $0x240] sm:$0xff]
    %v1533 = vld [vmem:[#allocation5 + $0x248] sm:$0xff]
    %v1534 = vld [vmem:[#allocation5 + $0x250] sm:$0xff]
    %v1535 = vld [vmem:[#allocation5 + $0x258] sm:$0xff]
    %v1536 = vld [vmem:[#allocation5 + $0x260] sm:$0xff]
    %v1537 = vld [vmem:[#allocation5 + $0x268] sm:$0xff]
    %v1538 = vld [vmem:[#allocation5 + $0x270] sm:$0xff]
    %v1539 = vld [vmem:[#allocation5 + $0x278] sm:$0xff]
    %v1540 = vld [vmem:[#allocation5 + $0x280] sm:$0xff]
    %v1541 = vld [vmem:[#allocation5 + $0x288] sm:$0xff]
    %v1542 = vld [vmem:[#allocation5 + $0x290] sm:$0xff]
    %v1543 = vld [vmem:[#allocation5 + $0x298] sm:$0xff]
    %v1544 = vld [vmem:[#allocation5 + $0x2a0] sm:$0xff]
    %v1545 = vld [vmem:[#allocation5 + $0x2a8] sm:$0xff]
    %v1546 = vld [vmem:[#allocation5 + $0x2b0] sm:$0xff]
    %v1547 = vld [vmem:[#allocation5 + $0x2b8] sm:$0xff]
    %v1548 = vld [vmem:[#allocation5 + $0x2c0] sm:$0xff]
    %v1549 = vld [vmem:[#allocation5 + $0x2c8] sm:$0xff]
    %v1550 = vld [vmem:[#allocation5 + $0x2d0] sm:$0xff]
    %v1551 = vld [vmem:[#allocation5 + $0x2d8] sm:$0xff]
    %v1552 = vld [vmem:[#allocation5 + $0x2e0] sm:$0xff]
    %v1553 = vld [vmem:[#allocation5 + $0x2e8] sm:$0xff]
    %v1554 = vld [vmem:[#allocation5 + $0x2f0] sm:$0xff]
    %v1555 = vld [vmem:[#allocation5 + $0x2f8] sm:$0xff]
    %v1556 = vld [vmem:[#allocation5 + $0x300] sm:$0xff]
    %v1557 = vld [vmem:[#allocation5 + $0x308] sm:$0xff]
    %v1558 = vld [vmem:[#allocation5 + $0x310] sm:$0xff]
    %v1559 = vld [vmem:[#allocation5 + $0x318] sm:$0xff]
    %v1560 = vld [vmem:[#allocation5 + $0x320] sm:$0xff]
    %v1561 = vld [vmem:[#allocation5 + $0x328] sm:$0xff]
    %v1562 = vld [vmem:[#allocation5 + $0x330] sm:$0xff]
    %v1563 = vld [vmem:[#allocation5 + $0x338] sm:$0xff]
    %v1564 = vld [vmem:[#allocation5 + $0x340] sm:$0xff]
    %v1565 = vld [vmem:[#allocation5 + $0x348] sm:$0xff]
    %v1566 = vld [vmem:[#allocation5 + $0x350] sm:$0xff]
    %v1567 = vld [vmem:[#allocation5 + $0x358] sm:$0xff]
    %v1568 = vld [vmem:[#allocation5 + $0x360] sm:$0xff]
    %v1569 = vld [vmem:[#allocation5 + $0x368] sm:$0xff]
    %v1570 = vld [vmem:[#allocation5 + $0x370] sm:$0xff]
    %v1571 = vld [vmem:[#allocation5 + $0x378] sm:$0xff]
    %v1572 = vld [vmem:[#allocation5 + $0x380] sm:$0xff]
    %v1573 = vld [vmem:[#allocation5 + $0x388] sm:$0xff]
    %v1574 = vld [vmem:[#allocation5 + $0x390] sm:$0xff]
    %v1575 = vld [vmem:[#allocation5 + $0x398] sm:$0xff]
    %v1576 = vld [vmem:[#allocation5 + $0x3a0] sm:$0xff]
    %v1577 = vld [vmem:[#allocation5 + $0x3a8] sm:$0xff]
    %v1578 = vld [vmem:[#allocation5 + $0x3b0] sm:$0xff]
    %v1579 = vld [vmem:[#allocation5 + $0x3b8] sm:$0xff]
    %v1580 = vld [vmem:[#allocation5 + $0x3c0] sm:$0xff]
    %v1581 = vld [vmem:[#allocation5 + $0x3c8] sm:$0xff]
    %v1582 = vld [vmem:[#allocation5 + $0x3d0] sm:$0xff]
    %v1583 = vld [vmem:[#allocation5 + $0x3d8] sm:$0xff]
    %v1584 = vld [vmem:[#allocation5 + $0x3e0] sm:$0xff]
    %v1585 = vld [vmem:[#allocation5 + $0x3e8] sm:$0xff]
    %v1586 = vld [vmem:[#allocation5 + $0x3f0] sm:$0xff]
    %v1587 = vld [vmem:[#allocation5 + $0x3f8] sm:$0xff]
    %v1588 = vld [vmem:[#allocation5 + $0x400] sm:$0xff]
    %v1589 = vld [vmem:[#allocation5 + $0x408] sm:$0xff]
    %v1590 = vld [vmem:[#allocation5 + $0x410] sm:$0xff]
    %v1591 = vld [vmem:[#allocation5 + $0x418] sm:$0xff]
    %v1592 = vld [vmem:[#allocation5 + $0x420] sm:$0xff]
    %v1593 = vld [vmem:[#allocation5 + $0x428] sm:$0xff]
    %v1594 = vld [vmem:[#allocation5 + $0x430] sm:$0xff]
    %v1595 = vld [vmem:[#allocation5 + $0x438] sm:$0xff]
    %v1596 = vld [vmem:[#allocation5 + $0x440] sm:$0xff]
    %v1597 = vld [vmem:[#allocation5 + $0x448] sm:$0xff]
    %v1598 = vld [vmem:[#allocation5 + $0x450] sm:$0xff]
    %v1599 = vld [vmem:[#allocation5 + $0x458] sm:$0xff]
    %v1600 = vld [vmem:[#allocation5 + $0x460] sm:$0xff]
    %v1601 = vld [vmem:[#allocation5 + $0x468] sm:$0xff]
    %v1602 = vld [vmem:[#allocation5 + $0x470] sm:$0xff]
    %v1603 = vld [vmem:[#allocation5 + $0x478] sm:$0xff]
    %v1604 = vld [vmem:[#allocation5 + $0x480] sm:$0xff]
    %v1605 = vld [vmem:[#allocation5 + $0x488] sm:$0xff]
    %v1606 = vld [vmem:[#allocation5 + $0x490] sm:$0xff]
    %v1607 = vld [vmem:[#allocation5 + $0x498] sm:$0xff]
    %v1608 = vld [vmem:[#allocation5 + $0x4a0] sm:$0xff]
    %v1609 = vld [vmem:[#allocation5 + $0x4a8] sm:$0xff]
    %v1610 = vld [vmem:[#allocation5 + $0x4b0] sm:$0xff]
    %v1611 = vld [vmem:[#allocation5 + $0x4b8] sm:$0xff]
    %v1612 = vld [vmem:[#allocation5 + $0x4c0] sm:$0xff]
    %v1613 = vld [vmem:[#allocation5 + $0x4c8] sm:$0xff]
    %v1614 = vld [vmem:[#allocation5 + $0x4d0] sm:$0xff]
    %v1615 = vld [vmem:[#allocation5 + $0x4d8] sm:$0xff]
    %v1616 = vld [vmem:[#allocation5 + $0x4e0] sm:$0xff]
    %v1617 = vld [vmem:[#allocation5 + $0x4e8] sm:$0xff]
    %v1618 = vld [vmem:[#allocation5 + $0x4f0] sm:$0xff]
    %v1619 = vld [vmem:[#allocation5 + $0x4f8] sm:$0xff]
    %v1620 = vld [vmem:[#allocation5 + $0x500] sm:$0xff]
    %v1621 = vld [vmem:[#allocation5 + $0x508] sm:$0xff]
    %v1622 = vld [vmem:[#allocation5 + $0x510] sm:$0xff]
    %v1623 = vld [vmem:[#allocation5 + $0x518] sm:$0xff]
    %v1624 = vld [vmem:[#allocation5 + $0x520] sm:$0xff]
    %v1625 = vld [vmem:[#allocation5 + $0x528] sm:$0xff]
    %v1626 = vld [vmem:[#allocation5 + $0x530] sm:$0xff]
    %v1627 = vld [vmem:[#allocation5 + $0x538] sm:$0xff]
    %v1628 = vld [vmem:[#allocation5 + $0x540] sm:$0xff]
    %v1629 = vld [vmem:[#allocation5 + $0x548] sm:$0xff]
    %v1630 = vld [vmem:[#allocation5 + $0x550] sm:$0xff]
    %v1631 = vld [vmem:[#allocation5 + $0x558] sm:$0xff]
    %v1632 = vld [vmem:[#allocation5 + $0x560] sm:$0xff]
    %v1633 = vld [vmem:[#allocation5 + $0x568] sm:$0xff]
    %v1634 = vld [vmem:[#allocation5 + $0x570] sm:$0xff]
    %v1635 = vld [vmem:[#allocation5 + $0x578] sm:$0xff]
    %v1636 = vld [vmem:[#allocation5 + $0x580] sm:$0xff]
    %v1637 = vld [vmem:[#allocation5 + $0x588] sm:$0xff]
    %v1638 = vld [vmem:[#allocation5 + $0x590] sm:$0xff]
    %v1639 = vld [vmem:[#allocation5 + $0x598] sm:$0xff]
    %v1640 = vld [vmem:[#allocation5 + $0x5a0] sm:$0xff]
    %v1641 = vld [vmem:[#allocation5 + $0x5a8] sm:$0xff]
    %v1642 = vld [vmem:[#allocation5 + $0x5b0] sm:$0xff]
    %v1643 = vld [vmem:[#allocation5 + $0x5b8] sm:$0xff]
    %v1644 = vld [vmem:[#allocation5 + $0x5c0] sm:$0xff]
    %v1645 = vld [vmem:[#allocation5 + $0x5c8] sm:$0xff]
    %v1646 = vld [vmem:[#allocation5 + $0x5d0] sm:$0xff]
    %v1647 = vld [vmem:[#allocation5 + $0x5d8] sm:$0xff]
    %v1648 = vld [vmem:[#allocation5 + $0x5e0] sm:$0xff]
    %v1649 = vld [vmem:[#allocation5 + $0x5e8] sm:$0xff]
    %v1650 = vld [vmem:[#allocation5 + $0x5f0] sm:$0xff]
    %v1651 = vld [vmem:[#allocation5 + $0x5f8] sm:$0xff]
    %v1652 = vlaneseq
    %v1653 = vshrl.u32 %v1652, 7
    %v1654 = vadd.s32 %v1653, 8
    %v1655 = vadd.s32 %v1653, 16
    %v1656 = vadd.s32 %v1653, 24
    %v1657 = vadd.s32 %v1653, 32
    %v1658 = vadd.s32 %v1653, 40
    %v1659 = vadd.s32 %v1653, 48
    %v1660 = vadd.s32 %v1653, 56
    %v1661 = vadd.s32 %v1653, 64
    %v1662 = vadd.s32 %v1653, 72
    %v1663 = vadd.s32 %v1653, 80
    %v1664 = vadd.s32 %v1653, 88
    %v1665 = vadd.s32 %v1653, 96
    %v1666 = vadd.s32 %v1653, 104
    %v1667 = vadd.s32 %v1653, 112
    %v1668 = vadd.s32 %v1653, 120
    %v1669 = vadd.s32 %v1653, 128
    %v1670 = vadd.s32 %v1653, 136
    %v1671 = vadd.s32 %v1653, 144
    %v1672 = vadd.s32 %v1653, 152
    %v1673 = vadd.s32 %v1653, 160
    %v1674 = vadd.s32 %v1653, 168
    %v1675 = vadd.s32 %v1653, 176
    %v1676 = vadd.s32 %v1653, 184
    %v1677 = vadd.s32 %v1653, 192
    %v1678 = vadd.s32 %v1653, 200
    %v1679 = vadd.s32 %v1653, 208
    %v1680 = vadd.s32 %v1653, 216
    %v1681 = vadd.s32 %v1653, 224
    %v1682 = vadd.s32 %v1653, 232
    %v1683 = vadd.s32 %v1653, 240
    %v1684 = vadd.s32 %v1653, 248
    %v1685 = vand.u32 %v1653, 127
    %v1686 = vand.u32 %v1654, 127
    %v1687 = vand.u32 %v1655, 127
    %v1688 = vand.u32 %v1656, 127
    %v1689 = vand.u32 %v1657, 127
    %v1690 = vand.u32 %v1658, 127
    %v1691 = vand.u32 %v1659, 127
    %v1692 = vand.u32 %v1660, 127
    %v1693 = vand.u32 %v1661, 127
    %v1694 = vand.u32 %v1662, 127
    %v1695 = vand.u32 %v1663, 127
    %v1696 = vand.u32 %v1664, 127
    %v1697 = vand.u32 %v1665, 127
    %v1698 = vand.u32 %v1666, 127
    %v1699 = vand.u32 %v1667, 127
    %v1700 = vand.u32 %v1668, 127
    %v1701 = vand.u32 %v1669, 127
    %v1702 = vand.u32 %v1670, 127
    %v1703 = vand.u32 %v1671, 127
    %v1704 = vand.u32 %v1672, 127
    %v1705 = vand.u32 %v1673, 127
    %v1706 = vand.u32 %v1674, 127
    %v1707 = vand.u32 %v1675, 127
    %v1708 = vand.u32 %v1676, 127
    %v1709 = vand.u32 %v1677, 127
    %v1710 = vand.u32 %v1678, 127
    %v1711 = vand.u32 %v1679, 127
    %v1712 = vand.u32 %v1680, 127
    %v1713 = vand.u32 %v1681, 127
    %v1714 = vand.u32 %v1682, 127
    %v1715 = vand.u32 %v1683, 127
    %v1716 = vand.u32 %v1684, 127
    %vm1717 = vcmp.lt.s32.totalorder %v1685, 98
    %vm1718 = vcmp.lt.s32.totalorder %v1686, 98
    %vm1719 = vcmp.lt.s32.totalorder %v1687, 98
    %vm1720 = vcmp.lt.s32.totalorder %v1688, 98
    %vm1721 = vcmp.lt.s32.totalorder %v1689, 98
    %vm1722 = vcmp.lt.s32.totalorder %v1690, 98
    %vm1723 = vcmp.lt.s32.totalorder %v1691, 98
    %vm1724 = vcmp.lt.s32.totalorder %v1692, 98
    %vm1725 = vcmp.lt.s32.totalorder %v1693, 98
    %vm1726 = vcmp.lt.s32.totalorder %v1694, 98
    %vm1727 = vcmp.lt.s32.totalorder %v1695, 98
    %vm1728 = vcmp.lt.s32.totalorder %v1696, 98
    %vm1729 = vcmp.lt.s32.totalorder %v1697, 98
    %vm1730 = vcmp.lt.s32.totalorder %v1698, 98
    %vm1731 = vcmp.lt.s32.totalorder %v1699, 98
    %vm1732 = vcmp.lt.s32.totalorder %v1700, 98
    %vm1733 = vcmp.lt.s32.totalorder %v1701, 98
    %vm1734 = vcmp.lt.s32.totalorder %v1702, 98
    %vm1735 = vcmp.lt.s32.totalorder %v1703, 98
    %vm1736 = vcmp.lt.s32.totalorder %v1704, 98
    %vm1737 = vcmp.lt.s32.totalorder %v1705, 98
    %vm1738 = vcmp.lt.s32.totalorder %v1706, 98
    %vm1739 = vcmp.lt.s32.totalorder %v1707, 98
    %vm1740 = vcmp.lt.s32.totalorder %v1708, 98
    %vm1741 = vcmp.lt.s32.totalorder %v1709, 98
    %vm1742 = vcmp.lt.s32.totalorder %v1710, 98
    %vm1743 = vcmp.lt.s32.totalorder %v1711, 98
    %vm1744 = vcmp.lt.s32.totalorder %v1712, 98
    %vm1745 = vcmp.lt.s32.totalorder %v1713, 98
    %vm1746 = vcmp.lt.s32.totalorder %v1714, 98
    %vm1747 = vcmp.lt.s32.totalorder %v1715, 98
    %vm1748 = vcmp.lt.s32.totalorder %v1716, 98
    %vm1749 = vcmp.lt.s32.totalorder %v1685, 97
    %vm1750 = vcmp.lt.s32.totalorder %v1686, 97
    %vm1751 = vcmp.lt.s32.totalorder %v1687, 97
    %vm1752 = vcmp.lt.s32.totalorder %v1688, 97
    %vm1753 = vcmp.lt.s32.totalorder %v1689, 97
    %vm1754 = vcmp.lt.s32.totalorder %v1690, 97
    %vm1755 = vcmp.lt.s32.totalorder %v1691, 97
    %vm1756 = vcmp.lt.s32.totalorder %v1692, 97
    %vm1757 = vcmp.lt.s32.totalorder %v1693, 97
    %vm1758 = vcmp.lt.s32.totalorder %v1694, 97
    %vm1759 = vcmp.lt.s32.totalorder %v1695, 97
    %vm1760 = vcmp.lt.s32.totalorder %v1696, 97
    %vm1761 = vcmp.lt.s32.totalorder %v1697, 97
    %vm1762 = vcmp.lt.s32.totalorder %v1698, 97
    %vm1763 = vcmp.lt.s32.totalorder %v1699, 97
    %vm1764 = vcmp.lt.s32.totalorder %v1700, 97
    %vm1765 = vcmp.lt.s32.totalorder %v1701, 97
    %vm1766 = vcmp.lt.s32.totalorder %v1702, 97
    %vm1767 = vcmp.lt.s32.totalorder %v1703, 97
    %vm1768 = vcmp.lt.s32.totalorder %v1704, 97
    %vm1769 = vcmp.lt.s32.totalorder %v1705, 97
    %vm1770 = vcmp.lt.s32.totalorder %v1706, 97
    %vm1771 = vcmp.lt.s32.totalorder %v1707, 97
    %vm1772 = vcmp.lt.s32.totalorder %v1708, 97
    %vm1773 = vcmp.lt.s32.totalorder %v1709, 97
    %vm1774 = vcmp.lt.s32.totalorder %v1710, 97
    %vm1775 = vcmp.lt.s32.totalorder %v1711, 97
    %vm1776 = vcmp.lt.s32.totalorder %v1712, 97
    %vm1777 = vcmp.lt.s32.totalorder %v1713, 97
    %vm1778 = vcmp.lt.s32.totalorder %v1714, 97
    %vm1779 = vcmp.lt.s32.totalorder %v1715, 97
    %vm1780 = vcmp.lt.s32.totalorder %v1716, 97
    %vm1781 = vcmp.lt.s32.totalorder %v1685, 96
    %vm1782 = vcmp.lt.s32.totalorder %v1686, 96
    %vm1783 = vcmp.lt.s32.totalorder %v1687, 96
    %vm1784 = vcmp.lt.s32.totalorder %v1688, 96
    %vm1785 = vcmp.lt.s32.totalorder %v1689, 96
    %vm1786 = vcmp.lt.s32.totalorder %v1690, 96
    %vm1787 = vcmp.lt.s32.totalorder %v1691, 96
    %vm1788 = vcmp.lt.s32.totalorder %v1692, 96
    %vm1789 = vcmp.lt.s32.totalorder %v1693, 96
    %vm1790 = vcmp.lt.s32.totalorder %v1694, 96
    %vm1791 = vcmp.lt.s32.totalorder %v1695, 96
    %vm1792 = vcmp.lt.s32.totalorder %v1696, 96
    %vm1793 = vcmp.lt.s32.totalorder %v1697, 96
    %vm1794 = vcmp.lt.s32.totalorder %v1698, 96
    %vm1795 = vcmp.lt.s32.totalorder %v1699, 96
    %vm1796 = vcmp.lt.s32.totalorder %v1700, 96
    %vm1797 = vcmp.lt.s32.totalorder %v1701, 96
    %vm1798 = vcmp.lt.s32.totalorder %v1702, 96
    %vm1799 = vcmp.lt.s32.totalorder %v1703, 96
    %vm1800 = vcmp.lt.s32.totalorder %v1704, 96
    %vm1801 = vcmp.lt.s32.totalorder %v1705, 96
    %vm1802 = vcmp.lt.s32.totalorder %v1706, 96
    %vm1803 = vcmp.lt.s32.totalorder %v1707, 96
    %vm1804 = vcmp.lt.s32.totalorder %v1708, 96
    %vm1805 = vcmp.lt.s32.totalorder %v1709, 96
    %vm1806 = vcmp.lt.s32.totalorder %v1710, 96
    %vm1807 = vcmp.lt.s32.totalorder %v1711, 96
    %vm1808 = vcmp.lt.s32.totalorder %v1712, 96
    %vm1809 = vcmp.lt.s32.totalorder %v1713, 96
    %vm1810 = vcmp.lt.s32.totalorder %v1714, 96
    %vm1811 = vcmp.lt.s32.totalorder %v1715, 96
    %vm1812 = vcmp.lt.s32.totalorder %v1716, 96
    %vm1813 = vcmp.lt.s32.totalorder %v1685, 95
    %vm1814 = vcmp.lt.s32.totalorder %v1686, 95
    %vm1815 = vcmp.lt.s32.totalorder %v1687, 95
    %vm1816 = vcmp.lt.s32.totalorder %v1688, 95
    %vm1817 = vcmp.lt.s32.totalorder %v1689, 95
    %vm1818 = vcmp.lt.s32.totalorder %v1690, 95
    %vm1819 = vcmp.lt.s32.totalorder %v1691, 95
    %vm1820 = vcmp.lt.s32.totalorder %v1692, 95
    %vm1821 = vcmp.lt.s32.totalorder %v1693, 95
    %vm1822 = vcmp.lt.s32.totalorder %v1694, 95
    %vm1823 = vcmp.lt.s32.totalorder %v1695, 95
    %vm1824 = vcmp.lt.s32.totalorder %v1696, 95
    %vm1825 = vcmp.lt.s32.totalorder %v1697, 95
    %vm1826 = vcmp.lt.s32.totalorder %v1698, 95
    %vm1827 = vcmp.lt.s32.totalorder %v1699, 95
    %vm1828 = vcmp.lt.s32.totalorder %v1700, 95
    %vm1829 = vcmp.lt.s32.totalorder %v1701, 95
    %vm1830 = vcmp.lt.s32.totalorder %v1702, 95
    %vm1831 = vcmp.lt.s32.totalorder %v1703, 95
    %vm1832 = vcmp.lt.s32.totalorder %v1704, 95
    %vm1833 = vcmp.lt.s32.totalorder %v1705, 95
    %vm1834 = vcmp.lt.s32.totalorder %v1706, 95
    %vm1835 = vcmp.lt.s32.totalorder %v1707, 95
    %vm1836 = vcmp.lt.s32.totalorder %v1708, 95
    %vm1837 = vcmp.lt.s32.totalorder %v1709, 95
    %vm1838 = vcmp.lt.s32.totalorder %v1710, 95
    %vm1839 = vcmp.lt.s32.totalorder %v1711, 95
    %vm1840 = vcmp.lt.s32.totalorder %v1712, 95
    %vm1841 = vcmp.lt.s32.totalorder %v1713, 95
    %vm1842 = vcmp.lt.s32.totalorder %v1714, 95
    %vm1843 = vcmp.lt.s32.totalorder %v1715, 95
    %vm1844 = vcmp.lt.s32.totalorder %v1716, 95
    %v1845 = vld [vmem:[%s2] sm:$0xf]
    %v1847 = vlaneseq
    %v1848 = vshrl.u32 %v1847, 7
    %v1849 = vsub.s32 0, %v1848
    %v1850 = vrot.slane %v1845, %v1849
    %v1851 = vlaneseq
    %v1852 = vshrl.u32 %v1851, 7
    %v1853 = vsub.s32 1, %v1852
    %v1854 = vrot.slane %v1845, %v1853
    %v1855 = vlaneseq
    %v1856 = vshrl.u32 %v1855, 7
    %v1857 = vsub.s32 2, %v1856
    %v1858 = vrot.slane %v1845, %v1857
    %v1859 = vlaneseq
    %v1860 = vshrl.u32 %v1859, 7
    %v1861 = vsub.s32 3, %v1860
    %v1862 = vrot.slane %v1845, %v1861
    %v2059 = vunpack.c.l.b16 %v1460
    %v2060 = vunpack.c.h.b16 %v1460
    %v2061 = vunpack.c.l.b16 %v1461
    %v2062 = vunpack.c.h.b16 %v1461
    %v2063 = vunpack.c.l.b16 %v1462
    %v2064 = vunpack.c.h.b16 %v1462
    %v2065 = vunpack.c.l.b16 %v1463
    %v2066 = vunpack.c.h.b16 %v1463
    %v2067 = vunpack.c.l.b16 %v1464
    %v2068 = vunpack.c.h.b16 %v1464
    %v2069 = vunpack.c.l.b16 %v1465
    %v2070 = vunpack.c.h.b16 %v1465
    %v2071 = vunpack.c.l.b16 %v1466
    %v2072 = vunpack.c.h.b16 %v1466
    %v2073 = vunpack.c.l.b16 %v1467
    %v2074 = vunpack.c.h.b16 %v1467
    %v2075 = vunpack.c.l.b16 %v1468
    %v2076 = vunpack.c.h.b16 %v1468
    %v2077 = vunpack.c.l.b16 %v1469
    %v2078 = vunpack.c.h.b16 %v1469
    %v2079 = vunpack.c.l.b16 %v1470
    %v2080 = vunpack.c.h.b16 %v1470
    %v2081 = vunpack.c.l.b16 %v1471
    %v2082 = vunpack.c.h.b16 %v1471
    %v2083 = vunpack.c.l.b16 %v1472
    %v2084 = vunpack.c.h.b16 %v1472
    %v2085 = vunpack.c.l.b16 %v1473
    %v2086 = vunpack.c.h.b16 %v1473
    %v2087 = vunpack.c.l.b16 %v1474
    %v2088 = vunpack.c.h.b16 %v1474
    %v2089 = vunpack.c.l.b16 %v1475
    %v2090 = vunpack.c.h.b16 %v1475
    %v2091 = vunpack.c.l.b16 %v1476
    %v2092 = vunpack.c.h.b16 %v1476
    %v2093 = vunpack.c.l.b16 %v1477
    %v2094 = vunpack.c.h.b16 %v1477
    %v2095 = vunpack.c.l.b16 %v1478
    %v2096 = vunpack.c.h.b16 %v1478
    %v2097 = vunpack.c.l.b16 %v1479
    %v2098 = vunpack.c.h.b16 %v1479
    %v2099 = vunpack.c.l.b16 %v1480
    %v2100 = vunpack.c.h.b16 %v1480
    %v2101 = vunpack.c.l.b16 %v1481
    %v2102 = vunpack.c.h.b16 %v1481
    %v2103 = vunpack.c.l.b16 %v1482
    %v2104 = vunpack.c.h.b16 %v1482
    %v2105 = vunpack.c.l.b16 %v1483
    %v2106 = vunpack.c.h.b16 %v1483
    %v2107 = vunpack.c.l.b16 %v1484
    %v2108 = vunpack.c.h.b16 %v1484
    %v2109 = vunpack.c.l.b16 %v1485
    %v2110 = vunpack.c.h.b16 %v1485
    %v2111 = vunpack.c.l.b16 %v1486
    %v2112 = vunpack.c.h.b16 %v1486
    %v2113 = vunpack.c.l.b16 %v1487
    %v2114 = vunpack.c.h.b16 %v1487
    %v2115 = vunpack.c.l.b16 %v1488
    %v2116 = vunpack.c.h.b16 %v1488
    %v2117 = vunpack.c.l.b16 %v1489
    %v2118 = vunpack.c.h.b16 %v1489
    %v2119 = vunpack.c.l.b16 %v1490
    %v2120 = vunpack.c.h.b16 %v1490
    %v2121 = vunpack.c.l.b16 %v1491
    %v2122 = vunpack.c.h.b16 %v1491
    %v2123 = vunpack.c.l.b16 %v1492
    %v2124 = vunpack.c.h.b16 %v1492
    %v2125 = vunpack.c.l.b16 %v1493
    %v2126 = vunpack.c.h.b16 %v1493
    %v2127 = vunpack.c.l.b16 %v1494
    %v2128 = vunpack.c.h.b16 %v1494
    %v2129 = vunpack.c.l.b16 %v1495
    %v2130 = vunpack.c.h.b16 %v1495
    %v2131 = vunpack.c.l.b16 %v1496
    %v2132 = vunpack.c.h.b16 %v1496
    %v2133 = vunpack.c.l.b16 %v1497
    %v2134 = vunpack.c.h.b16 %v1497
    %v2135 = vunpack.c.l.b16 %v1498
    %v2136 = vunpack.c.h.b16 %v1498
    %v2137 = vunpack.c.l.b16 %v1499
    %v2138 = vunpack.c.h.b16 %v1499
    %v2139 = vunpack.c.l.b16 %v1500
    %v2140 = vunpack.c.h.b16 %v1500
    %v2141 = vunpack.c.l.b16 %v1501
    %v2142 = vunpack.c.h.b16 %v1501
    %v2143 = vunpack.c.l.b16 %v1502
    %v2144 = vunpack.c.h.b16 %v1502
    %v2145 = vunpack.c.l.b16 %v1503
    %v2146 = vunpack.c.h.b16 %v1503
    %v2147 = vunpack.c.l.b16 %v1504
    %v2148 = vunpack.c.h.b16 %v1504
    %v2149 = vunpack.c.l.b16 %v1505
    %v2150 = vunpack.c.h.b16 %v1505
    %v2151 = vunpack.c.l.b16 %v1506
    %v2152 = vunpack.c.h.b16 %v1506
    %v2153 = vunpack.c.l.b16 %v1507
    %v2154 = vunpack.c.h.b16 %v1507
    %v2155 = vunpack.c.l.b16 %v1508
    %v2156 = vunpack.c.h.b16 %v1508
    %v2157 = vunpack.c.l.b16 %v1509
    %v2158 = vunpack.c.h.b16 %v1509
    %v2159 = vunpack.c.l.b16 %v1510
    %v2160 = vunpack.c.h.b16 %v1510
    %v2161 = vunpack.c.l.b16 %v1511
    %v2162 = vunpack.c.h.b16 %v1511
    %v2163 = vunpack.c.l.b16 %v1512
    %v2164 = vunpack.c.h.b16 %v1512
    %v2165 = vunpack.c.l.b16 %v1513
    %v2166 = vunpack.c.h.b16 %v1513
    %v2167 = vunpack.c.l.b16 %v1514
    %v2168 = vunpack.c.h.b16 %v1514
    %v2169 = vunpack.c.l.b16 %v1515
    %v2170 = vunpack.c.h.b16 %v1515
    %v2171 = vunpack.c.l.b16 %v1516
    %v2172 = vunpack.c.h.b16 %v1516
    %v2173 = vunpack.c.l.b16 %v1517
    %v2174 = vunpack.c.h.b16 %v1517
    %v2175 = vunpack.c.l.b16 %v1518
    %v2176 = vunpack.c.h.b16 %v1518
    %v2177 = vunpack.c.l.b16 %v1519
    %v2178 = vunpack.c.h.b16 %v1519
    %v2179 = vunpack.c.l.b16 %v1520
    %v2180 = vunpack.c.h.b16 %v1520
    %v2181 = vunpack.c.l.b16 %v1521
    %v2182 = vunpack.c.h.b16 %v1521
    %v2183 = vunpack.c.l.b16 %v1522
    %v2184 = vunpack.c.h.b16 %v1522
    %v2185 = vunpack.c.l.b16 %v1523
    %v2186 = vunpack.c.h.b16 %v1523
    %v2187 = vunpack.c.l.b16 %v1524
    %v2188 = vunpack.c.h.b16 %v1524
    %v2189 = vunpack.c.l.b16 %v1525
    %v2190 = vunpack.c.h.b16 %v1525
    %v2191 = vunpack.c.l.b16 %v1526
    %v2192 = vunpack.c.h.b16 %v1526
    %v2193 = vunpack.c.l.b16 %v1527
    %v2194 = vunpack.c.h.b16 %v1527
    %v2195 = vunpack.c.l.b16 %v1528
    %v2196 = vunpack.c.h.b16 %v1528
    %v2197 = vunpack.c.l.b16 %v1529
    %v2198 = vunpack.c.h.b16 %v1529
    %v2199 = vunpack.c.l.b16 %v1530
    %v2200 = vunpack.c.h.b16 %v1530
    %v2201 = vunpack.c.l.b16 %v1531
    %v2202 = vunpack.c.h.b16 %v1531
    %v2203 = vunpack.c.l.b16 %v1532
    %v2204 = vunpack.c.h.b16 %v1532
    %v2205 = vunpack.c.l.b16 %v1533
    %v2206 = vunpack.c.h.b16 %v1533
    %v2207 = vunpack.c.l.b16 %v1534
    %v2208 = vunpack.c.h.b16 %v1534
    %v2209 = vunpack.c.l.b16 %v1535
    %v2210 = vunpack.c.h.b16 %v1535
    %v2211 = vunpack.c.l.b16 %v1536
    %v2212 = vunpack.c.h.b16 %v1536
    %v2213 = vunpack.c.l.b16 %v1537
    %v2214 = vunpack.c.h.b16 %v1537
    %v2215 = vunpack.c.l.b16 %v1538
    %v2216 = vunpack.c.h.b16 %v1538
    %v2217 = vunpack.c.l.b16 %v1539
    %v2218 = vunpack.c.h.b16 %v1539
    %v2219 = vunpack.c.l.b16 %v1540
    %v2220 = vunpack.c.h.b16 %v1540
    %v2221 = vunpack.c.l.b16 %v1541
    %v2222 = vunpack.c.h.b16 %v1541
    %v2223 = vunpack.c.l.b16 %v1542
    %v2224 = vunpack.c.h.b16 %v1542
    %v2225 = vunpack.c.l.b16 %v1543
    %v2226 = vunpack.c.h.b16 %v1543
    %v2227 = vunpack.c.l.b16 %v1544
    %v2228 = vunpack.c.h.b16 %v1544
    %v2229 = vunpack.c.l.b16 %v1545
    %v2230 = vunpack.c.h.b16 %v1545
    %v2231 = vunpack.c.l.b16 %v1546
    %v2232 = vunpack.c.h.b16 %v1546
    %v2233 = vunpack.c.l.b16 %v1547
    %v2234 = vunpack.c.h.b16 %v1547
    %v2235 = vunpack.c.l.b16 %v1548
    %v2236 = vunpack.c.h.b16 %v1548
    %v2237 = vunpack.c.l.b16 %v1549
    %v2238 = vunpack.c.h.b16 %v1549
    %v2239 = vunpack.c.l.b16 %v1550
    %v2240 = vunpack.c.h.b16 %v1550
    %v2241 = vunpack.c.l.b16 %v1551
    %v2242 = vunpack.c.h.b16 %v1551
    %v2243 = vunpack.c.l.b16 %v1552
    %v2244 = vunpack.c.h.b16 %v1552
    %v2245 = vunpack.c.l.b16 %v1553
    %v2246 = vunpack.c.h.b16 %v1553
    %v2247 = vunpack.c.l.b16 %v1554
    %v2248 = vunpack.c.h.b16 %v1554
    %v2249 = vunpack.c.l.b16 %v1555
    %v2250 = vunpack.c.h.b16 %v1555
    %v2251 = vunpack.c.l.b16 %v1556
    %v2252 = vunpack.c.h.b16 %v1556
    %v2253 = vunpack.c.l.b16 %v1557
    %v2254 = vunpack.c.h.b16 %v1557
    %v2255 = vunpack.c.l.b16 %v1558
    %v2256 = vunpack.c.h.b16 %v1558
    %v2257 = vunpack.c.l.b16 %v1559
    %v2258 = vunpack.c.h.b16 %v1559
    %v2259 = vunpack.c.l.b16 %v1560
    %v2260 = vunpack.c.h.b16 %v1560
    %v2261 = vunpack.c.l.b16 %v1561
    %v2262 = vunpack.c.h.b16 %v1561
    %v2263 = vunpack.c.l.b16 %v1562
    %v2264 = vunpack.c.h.b16 %v1562
    %v2265 = vunpack.c.l.b16 %v1563
    %v2266 = vunpack.c.h.b16 %v1563
    %v2267 = vunpack.c.l.b16 %v1564
    %v2268 = vunpack.c.h.b16 %v1564
    %v2269 = vunpack.c.l.b16 %v1565
    %v2270 = vunpack.c.h.b16 %v1565
    %v2271 = vunpack.c.l.b16 %v1566
    %v2272 = vunpack.c.h.b16 %v1566
    %v2273 = vunpack.c.l.b16 %v1567
    %v2274 = vunpack.c.h.b16 %v1567
    %v2275 = vunpack.c.l.b16 %v1568
    %v2276 = vunpack.c.h.b16 %v1568
    %v2277 = vunpack.c.l.b16 %v1569
    %v2278 = vunpack.c.h.b16 %v1569
    %v2279 = vunpack.c.l.b16 %v1570
    %v2280 = vunpack.c.h.b16 %v1570
    %v2281 = vunpack.c.l.b16 %v1571
    %v2282 = vunpack.c.h.b16 %v1571
    %v2283 = vunpack.c.l.b16 %v1572
    %v2284 = vunpack.c.h.b16 %v1572
    %v2285 = vunpack.c.l.b16 %v1573
    %v2286 = vunpack.c.h.b16 %v1573
    %v2287 = vunpack.c.l.b16 %v1574
    %v2288 = vunpack.c.h.b16 %v1574
    %v2289 = vunpack.c.l.b16 %v1575
    %v2290 = vunpack.c.h.b16 %v1575
    %v2291 = vunpack.c.l.b16 %v1576
    %v2292 = vunpack.c.h.b16 %v1576
    %v2293 = vunpack.c.l.b16 %v1577
    %v2294 = vunpack.c.h.b16 %v1577
    %v2295 = vunpack.c.l.b16 %v1578
    %v2296 = vunpack.c.h.b16 %v1578
    %v2297 = vunpack.c.l.b16 %v1579
    %v2298 = vunpack.c.h.b16 %v1579
    %v2299 = vunpack.c.l.b16 %v1580
    %v2300 = vunpack.c.h.b16 %v1580
    %v2301 = vunpack.c.l.b16 %v1581
    %v2302 = vunpack.c.h.b16 %v1581
    %v2303 = vunpack.c.l.b16 %v1582
    %v2304 = vunpack.c.h.b16 %v1582
    %v2305 = vunpack.c.l.b16 %v1583
    %v2306 = vunpack.c.h.b16 %v1583
    %v2307 = vunpack.c.l.b16 %v1584
    %v2308 = vunpack.c.h.b16 %v1584
    %v2309 = vunpack.c.l.b16 %v1585
    %v2310 = vunpack.c.h.b16 %v1585
    %v2311 = vunpack.c.l.b16 %v1586
    %v2312 = vunpack.c.h.b16 %v1586
    %v2313 = vunpack.c.l.b16 %v1587
    %v2314 = vunpack.c.h.b16 %v1587
    %v2315 = vunpack.c.l.b16 %v1588
    %v2316 = vunpack.c.h.b16 %v1588
    %v2317 = vunpack.c.l.b16 %v1589
    %v2318 = vunpack.c.h.b16 %v1589
    %v2319 = vunpack.c.l.b16 %v1590
    %v2320 = vunpack.c.h.b16 %v1590
    %v2321 = vunpack.c.l.b16 %v1591
    %v2322 = vunpack.c.h.b16 %v1591
    %v2323 = vunpack.c.l.b16 %v1592
    %v2324 = vunpack.c.h.b16 %v1592
    %v2325 = vunpack.c.l.b16 %v1593
    %v2326 = vunpack.c.h.b16 %v1593
    %v2327 = vunpack.c.l.b16 %v1594
    %v2328 = vunpack.c.h.b16 %v1594
    %v2329 = vunpack.c.l.b16 %v1595
    %v2330 = vunpack.c.h.b16 %v1595
    %v2331 = vunpack.c.l.b16 %v1596
    %v2332 = vunpack.c.h.b16 %v1596
    %v2333 = vunpack.c.l.b16 %v1597
    %v2334 = vunpack.c.h.b16 %v1597
    %v2335 = vunpack.c.l.b16 %v1598
    %v2336 = vunpack.c.h.b16 %v1598
    %v2337 = vunpack.c.l.b16 %v1599
    %v2338 = vunpack.c.h.b16 %v1599
    %v2339 = vunpack.c.l.b16 %v1600
    %v2340 = vunpack.c.h.b16 %v1600
    %v2341 = vunpack.c.l.b16 %v1601
    %v2342 = vunpack.c.h.b16 %v1601
    %v2343 = vunpack.c.l.b16 %v1602
    %v2344 = vunpack.c.h.b16 %v1602
    %v2345 = vunpack.c.l.b16 %v1603
    %v2346 = vunpack.c.h.b16 %v1603
    %v2347 = vunpack.c.l.b16 %v1604
    %v2348 = vunpack.c.h.b16 %v1604
    %v2349 = vunpack.c.l.b16 %v1605
    %v2350 = vunpack.c.h.b16 %v1605
    %v2351 = vunpack.c.l.b16 %v1606
    %v2352 = vunpack.c.h.b16 %v1606
    %v2353 = vunpack.c.l.b16 %v1607
    %v2354 = vunpack.c.h.b16 %v1607
    %v2355 = vunpack.c.l.b16 %v1608
    %v2356 = vunpack.c.h.b16 %v1608
    %v2357 = vunpack.c.l.b16 %v1609
    %v2358 = vunpack.c.h.b16 %v1609
    %v2359 = vunpack.c.l.b16 %v1610
    %v2360 = vunpack.c.h.b16 %v1610
    %v2361 = vunpack.c.l.b16 %v1611
    %v2362 = vunpack.c.h.b16 %v1611
    %v2363 = vunpack.c.l.b16 %v1612
    %v2364 = vunpack.c.h.b16 %v1612
    %v2365 = vunpack.c.l.b16 %v1613
    %v2366 = vunpack.c.h.b16 %v1613
    %v2367 = vunpack.c.l.b16 %v1614
    %v2368 = vunpack.c.h.b16 %v1614
    %v2369 = vunpack.c.l.b16 %v1615
    %v2370 = vunpack.c.h.b16 %v1615
    %v2371 = vunpack.c.l.b16 %v1616
    %v2372 = vunpack.c.h.b16 %v1616
    %v2373 = vunpack.c.l.b16 %v1617
    %v2374 = vunpack.c.h.b16 %v1617
    %v2375 = vunpack.c.l.b16 %v1618
    %v2376 = vunpack.c.h.b16 %v1618
    %v2377 = vunpack.c.l.b16 %v1619
    %v2378 = vunpack.c.h.b16 %v1619
    %v2379 = vunpack.c.l.b16 %v1620
    %v2380 = vunpack.c.h.b16 %v1620
    %v2381 = vunpack.c.l.b16 %v1621
    %v2382 = vunpack.c.h.b16 %v1621
    %v2383 = vunpack.c.l.b16 %v1622
    %v2384 = vunpack.c.h.b16 %v1622
    %v2385 = vunpack.c.l.b16 %v1623
    %v2386 = vunpack.c.h.b16 %v1623
    %v2387 = vunpack.c.l.b16 %v1624
    %v2388 = vunpack.c.h.b16 %v1624
    %v2389 = vunpack.c.l.b16 %v1625
    %v2390 = vunpack.c.h.b16 %v1625
    %v2391 = vunpack.c.l.b16 %v1626
    %v2392 = vunpack.c.h.b16 %v1626
    %v2393 = vunpack.c.l.b16 %v1627
    %v2394 = vunpack.c.h.b16 %v1627
    %v2395 = vunpack.c.l.b16 %v1628
    %v2396 = vunpack.c.h.b16 %v1628
    %v2397 = vunpack.c.l.b16 %v1629
    %v2398 = vunpack.c.h.b16 %v1629
    %v2399 = vunpack.c.l.b16 %v1630
    %v2400 = vunpack.c.h.b16 %v1630
    %v2401 = vunpack.c.l.b16 %v1631
    %v2402 = vunpack.c.h.b16 %v1631
    %v2403 = vunpack.c.l.b16 %v1632
    %v2404 = vunpack.c.h.b16 %v1632
    %v2405 = vunpack.c.l.b16 %v1633
    %v2406 = vunpack.c.h.b16 %v1633
    %v2407 = vunpack.c.l.b16 %v1634
    %v2408 = vunpack.c.h.b16 %v1634
    %v2409 = vunpack.c.l.b16 %v1635
    %v2410 = vunpack.c.h.b16 %v1635
    %v2411 = vunpack.c.l.b16 %v1636
    %v2412 = vunpack.c.h.b16 %v1636
    %v2413 = vunpack.c.l.b16 %v1637
    %v2414 = vunpack.c.h.b16 %v1637
    %v2415 = vunpack.c.l.b16 %v1638
    %v2416 = vunpack.c.h.b16 %v1638
    %v2417 = vunpack.c.l.b16 %v1639
    %v2418 = vunpack.c.h.b16 %v1639
    %v2419 = vunpack.c.l.b16 %v1640
    %v2420 = vunpack.c.h.b16 %v1640
    %v2421 = vunpack.c.l.b16 %v1641
    %v2422 = vunpack.c.h.b16 %v1641
    %v2423 = vunpack.c.l.b16 %v1642
    %v2424 = vunpack.c.h.b16 %v1642
    %v2425 = vunpack.c.l.b16 %v1643
    %v2426 = vunpack.c.h.b16 %v1643
    %v2427 = vunpack.c.l.b16 %v1644
    %v2428 = vunpack.c.h.b16 %v1644
    %v2429 = vunpack.c.l.b16 %v1645
    %v2430 = vunpack.c.h.b16 %v1645
    %v2431 = vunpack.c.l.b16 %v1646
    %v2432 = vunpack.c.h.b16 %v1646
    %v2433 = vunpack.c.l.b16 %v1647
    %v2434 = vunpack.c.h.b16 %v1647
    %v2435 = vunpack.c.l.b16 %v1648
    %v2436 = vunpack.c.h.b16 %v1648
    %v2437 = vunpack.c.l.b16 %v1649
    %v2438 = vunpack.c.h.b16 %v1649
    %v2439 = vunpack.c.l.b16 %v1650
    %v2440 = vunpack.c.h.b16 %v1650
    %v2441 = vunpack.c.l.b16 %v1651
    %v2442 = vunpack.c.h.b16 %v1651
    %v2443 = vpack.c.b16 %v2063, %v2059
    %v2444 = vpack.c.b16 %v2064, %v2060
    %v2445 = vpack.c.b16 %v2065, %v2061
    %v2446 = vpack.c.b16 %v2066, %v2062
    %v2447 = vpack.c.b16 %v2071, %v2067
    %v2448 = vpack.c.b16 %v2072, %v2068
    %v2449 = vpack.c.b16 %v2073, %v2069
    %v2450 = vpack.c.b16 %v2074, %v2070
    %v2451 = vpack.c.b16 %v2079, %v2075
    %v2452 = vpack.c.b16 %v2080, %v2076
    %v2453 = vpack.c.b16 %v2081, %v2077
    %v2454 = vpack.c.b16 %v2082, %v2078
    %v2455 = vpack.c.b16 %v2087, %v2083
    %v2456 = vpack.c.b16 %v2088, %v2084
    %v2457 = vpack.c.b16 %v2089, %v2085
    %v2458 = vpack.c.b16 %v2090, %v2086
    %v2459 = vpack.c.b16 %v2095, %v2091
    %v2460 = vpack.c.b16 %v2096, %v2092
    %v2461 = vpack.c.b16 %v2097, %v2093
    %v2462 = vpack.c.b16 %v2098, %v2094
    %v2463 = vpack.c.b16 %v2103, %v2099
    %v2464 = vpack.c.b16 %v2104, %v2100
    %v2465 = vpack.c.b16 %v2105, %v2101
    %v2466 = vpack.c.b16 %v2106, %v2102
    %v2467 = vpack.c.b16 %v2111, %v2107
    %v2468 = vpack.c.b16 %v2112, %v2108
    %v2469 = vpack.c.b16 %v2113, %v2109
    %v2470 = vpack.c.b16 %v2114, %v2110
    %v2471 = vpack.c.b16 %v2119, %v2115
    %v2472 = vpack.c.b16 %v2120, %v2116
    %v2473 = vpack.c.b16 %v2121, %v2117
    %v2474 = vpack.c.b16 %v2122, %v2118
    %v2475 = vpack.c.b16 %v2127, %v2123
    %v2476 = vpack.c.b16 %v2128, %v2124
    %v2477 = vpack.c.b16 %v2129, %v2125
    %v2478 = vpack.c.b16 %v2130, %v2126
    %v2479 = vpack.c.b16 %v2135, %v2131
    %v2480 = vpack.c.b16 %v2136, %v2132
    %v2481 = vpack.c.b16 %v2137, %v2133
    %v2482 = vpack.c.b16 %v2138, %v2134
    %v2483 = vpack.c.b16 %v2143, %v2139
    %v2484 = vpack.c.b16 %v2144, %v2140
    %v2485 = vpack.c.b16 %v2145, %v2141
    %v2486 = vpack.c.b16 %v2146, %v2142
    %v2487 = vpack.c.b16 %v2151, %v2147
    %v2488 = vpack.c.b16 %v2152, %v2148
    %v2489 = vpack.c.b16 %v2153, %v2149
    %v2490 = vpack.c.b16 %v2154, %v2150
    %v2491 = vpack.c.b16 %v2159, %v2155
    %v2492 = vpack.c.b16 %v2160, %v2156
    %v2493 = vpack.c.b16 %v2161, %v2157
    %v2494 = vpack.c.b16 %v2162, %v2158
    %v2495 = vpack.c.b16 %v2167, %v2163
    %v2496 = vpack.c.b16 %v2168, %v2164
    %v2497 = vpack.c.b16 %v2169, %v2165
    %v2498 = vpack.c.b16 %v2170, %v2166
    %v2499 = vpack.c.b16 %v2175, %v2171
    %v2500 = vpack.c.b16 %v2176, %v2172
    %v2501 = vpack.c.b16 %v2177, %v2173
    %v2502 = vpack.c.b16 %v2178, %v2174
    %v2503 = vpack.c.b16 %v2183, %v2179
    %v2504 = vpack.c.b16 %v2184, %v2180
    %v2505 = vpack.c.b16 %v2185, %v2181
    %v2506 = vpack.c.b16 %v2186, %v2182
    %v2507 = vpack.c.b16 %v2191, %v2187
    %v2508 = vpack.c.b16 %v2192, %v2188
    %v2509 = vpack.c.b16 %v2193, %v2189
    %v2510 = vpack.c.b16 %v2194, %v2190
    %v2511 = vpack.c.b16 %v2199, %v2195
    %v2512 = vpack.c.b16 %v2200, %v2196
    %v2513 = vpack.c.b16 %v2201, %v2197
    %v2514 = vpack.c.b16 %v2202, %v2198
    %v2515 = vpack.c.b16 %v2207, %v2203
    %v2516 = vpack.c.b16 %v2208, %v2204
    %v2517 = vpack.c.b16 %v2209, %v2205
    %v2518 = vpack.c.b16 %v2210, %v2206
    %v2519 = vpack.c.b16 %v2215, %v2211
    %v2520 = vpack.c.b16 %v2216, %v2212
    %v2521 = vpack.c.b16 %v2217, %v2213
    %v2522 = vpack.c.b16 %v2218, %v2214
    %v2523 = vpack.c.b16 %v2223, %v2219
    %v2524 = vpack.c.b16 %v2224, %v2220
    %v2525 = vpack.c.b16 %v2225, %v2221
    %v2526 = vpack.c.b16 %v2226, %v2222
    %v2527 = vpack.c.b16 %v2231, %v2227
    %v2528 = vpack.c.b16 %v2232, %v2228
    %v2529 = vpack.c.b16 %v2233, %v2229
    %v2530 = vpack.c.b16 %v2234, %v2230
    %v2531 = vpack.c.b16 %v2239, %v2235
    %v2532 = vpack.c.b16 %v2240, %v2236
    %v2533 = vpack.c.b16 %v2241, %v2237
    %v2534 = vpack.c.b16 %v2242, %v2238
    %v2535 = vpack.c.b16 %v2247, %v2243
    %v2536 = vpack.c.b16 %v2248, %v2244
    %v2537 = vpack.c.b16 %v2249, %v2245
    %v2538 = vpack.c.b16 %v2250, %v2246
    %v2539 = vpack.c.b16 %v2255, %v2251
    %v2540 = vpack.c.b16 %v2256, %v2252
    %v2541 = vpack.c.b16 %v2257, %v2253
    %v2542 = vpack.c.b16 %v2258, %v2254
    %v2543 = vpack.c.b16 %v2263, %v2259
    %v2544 = vpack.c.b16 %v2264, %v2260
    %v2545 = vpack.c.b16 %v2265, %v2261
    %v2546 = vpack.c.b16 %v2266, %v2262
    %v2547 = vpack.c.b16 %v2271, %v2267
    %v2548 = vpack.c.b16 %v2272, %v2268
    %v2549 = vpack.c.b16 %v2273, %v2269
    %v2550 = vpack.c.b16 %v2274, %v2270
    %v2551 = vpack.c.b16 %v2279, %v2275
    %v2552 = vpack.c.b16 %v2280, %v2276
    %v2553 = vpack.c.b16 %v2281, %v2277
    %v2554 = vpack.c.b16 %v2282, %v2278
    %v2555 = vpack.c.b16 %v2287, %v2283
    %v2556 = vpack.c.b16 %v2288, %v2284
    %v2557 = vpack.c.b16 %v2289, %v2285
    %v2558 = vpack.c.b16 %v2290, %v2286
    %v2559 = vpack.c.b16 %v2295, %v2291
    %v2560 = vpack.c.b16 %v2296, %v2292
    %v2561 = vpack.c.b16 %v2297, %v2293
    %v2562 = vpack.c.b16 %v2298, %v2294
    %v2563 = vpack.c.b16 %v2303, %v2299
    %v2564 = vpack.c.b16 %v2304, %v2300
    %v2565 = vpack.c.b16 %v2305, %v2301
    %v2566 = vpack.c.b16 %v2306, %v2302
    %v2567 = vpack.c.b16 %v2311, %v2307
    %v2568 = vpack.c.b16 %v2312, %v2308
    %v2569 = vpack.c.b16 %v2313, %v2309
    %v2570 = vpack.c.b16 %v2314, %v2310
    %v2571 = vpack.c.b16 %v2319, %v2315
    %v2572 = vpack.c.b16 %v2320, %v2316
    %v2573 = vpack.c.b16 %v2321, %v2317
    %v2574 = vpack.c.b16 %v2322, %v2318
    %v2575 = vpack.c.b16 %v2327, %v2323
    %v2576 = vpack.c.b16 %v2328, %v2324
    %v2577 = vpack.c.b16 %v2329, %v2325
    %v2578 = vpack.c.b16 %v2330, %v2326
    %v2579 = vpack.c.b16 %v2335, %v2331
    %v2580 = vpack.c.b16 %v2336, %v2332
    %v2581 = vpack.c.b16 %v2337, %v2333
    %v2582 = vpack.c.b16 %v2338, %v2334
    %v2583 = vpack.c.b16 %v2343, %v2339
    %v2584 = vpack.c.b16 %v2344, %v2340
    %v2585 = vpack.c.b16 %v2345, %v2341
    %v2586 = vpack.c.b16 %v2346, %v2342
    %v2587 = vpack.c.b16 %v2351, %v2347
    %v2588 = vpack.c.b16 %v2352, %v2348
    %v2589 = vpack.c.b16 %v2353, %v2349
    %v2590 = vpack.c.b16 %v2354, %v2350
    %v2591 = vpack.c.b16 %v2359, %v2355
    %v2592 = vpack.c.b16 %v2360, %v2356
    %v2593 = vpack.c.b16 %v2361, %v2357
    %v2594 = vpack.c.b16 %v2362, %v2358
    %v2595 = vpack.c.b16 %v2367, %v2363
    %v2596 = vpack.c.b16 %v2368, %v2364
    %v2597 = vpack.c.b16 %v2369, %v2365
    %v2598 = vpack.c.b16 %v2370, %v2366
    %v2599 = vpack.c.b16 %v2375, %v2371
    %v2600 = vpack.c.b16 %v2376, %v2372
    %v2601 = vpack.c.b16 %v2377, %v2373
    %v2602 = vpack.c.b16 %v2378, %v2374
    %v2603 = vpack.c.b16 %v2383, %v2379
    %v2604 = vpack.c.b16 %v2384, %v2380
    %v2605 = vpack.c.b16 %v2385, %v2381
    %v2606 = vpack.c.b16 %v2386, %v2382
    %v2607 = vpack.c.b16 %v2391, %v2387
    %v2608 = vpack.c.b16 %v2392, %v2388
    %v2609 = vpack.c.b16 %v2393, %v2389
    %v2610 = vpack.c.b16 %v2394, %v2390
    %v2611 = vpack.c.b16 %v2399, %v2395
    %v2612 = vpack.c.b16 %v2400, %v2396
    %v2613 = vpack.c.b16 %v2401, %v2397
    %v2614 = vpack.c.b16 %v2402, %v2398
    %v2615 = vpack.c.b16 %v2407, %v2403
    %v2616 = vpack.c.b16 %v2408, %v2404
    %v2617 = vpack.c.b16 %v2409, %v2405
    %v2618 = vpack.c.b16 %v2410, %v2406
    %v2619 = vpack.c.b16 %v2415, %v2411
    %v2620 = vpack.c.b16 %v2416, %v2412
    %v2621 = vpack.c.b16 %v2417, %v2413
    %v2622 = vpack.c.b16 %v2418, %v2414
    %v2623 = vpack.c.b16 %v2423, %v2419
    %v2624 = vpack.c.b16 %v2424, %v2420
    %v2625 = vpack.c.b16 %v2425, %v2421
    %v2626 = vpack.c.b16 %v2426, %v2422
    %v2627 = vpack.c.b16 %v2431, %v2427
    %v2628 = vpack.c.b16 %v2432, %v2428
    %v2629 = vpack.c.b16 %v2433, %v2429
    %v2630 = vpack.c.b16 %v2434, %v2430
    %v2631 = vpack.c.b16 %v2439, %v2435
    %v2632 = vpack.c.b16 %v2440, %v2436
    %v2633 = vpack.c.b16 %v2441, %v2437
    %v2634 = vpack.c.b16 %v2442, %v2438
    %2827 = vmatprep.subr.bf16.mxu0 %v2444
    %2828 = vmatpush1.bf16.msra.mxu0 %v2443
    %2829 = vmatprep.subr.bf16.mxu0 %v2448
    %2830 = vmatpush1.bf16.msra.mxu0 %v2447
    %2831 = vmatprep.subr.bf16.mxu0 %v2452
    %2832 = vmatpush1.bf16.msra.mxu0 %v2451
    %2833 = vmatprep.subr.bf16.mxu0 %v2456
    %2834 = vmatpush1.bf16.msra.mxu0 %v2455
    %2835 = vmatprep.subr.bf16.mxu0 %v2460
    %2836 = vmatpush1.bf16.msra.mxu0 %v2459
    %2837 = vmatprep.subr.bf16.mxu0 %v2464
    %2838 = vmatpush1.bf16.msra.mxu0 %v2463
    %2839 = vmatprep.subr.bf16.mxu0 %v2468
    %2840 = vmatpush1.bf16.msra.mxu0 %v2467
    %2841 = vmatprep.subr.bf16.mxu0 %v2472
    %2842 = vmatpush1.bf16.msra.mxu0 %v2471
    %2843 = vmatprep.subr.bf16.mxu0 %v2476
    %2844 = vmatpush1.bf16.msra.mxu0 %v2475
    %2845 = vmatprep.subr.bf16.mxu0 %v2480
    %2846 = vmatpush1.bf16.msra.mxu0 %v2479
    %2847 = vmatprep.subr.bf16.mxu0 %v2484
    %2848 = vmatpush1.bf16.msra.mxu0 %v2483
    %2849 = vmatprep.subr.bf16.mxu0 %v2488
    %2850 = vmatpush1.bf16.msra.mxu0 %v2487
    %2851 = vmatprep.subr.bf16.mxu0 %v2492
    %2852 = vmatpush1.bf16.msra.mxu0 %v2491
    %2853 = vmatprep.subr.bf16.mxu0 %v2496
    %2854 = vmatpush1.bf16.msra.mxu0 %v2495
    %2855 = vmatprep.subr.bf16.mxu0 %v2500
    %2856 = vmatpush1.bf16.msra.mxu0 %v2499
    %2857 = vmatprep.subr.bf16.mxu0 %v2504
    %2858 = vmatpush1.bf16.msra.mxu0 %v2503
    %2859 = vmatprep.mubr.bf16.mxu0 %v612
    %2860 = vmatmul.mubr.bf16.gmra.mrb[0].mxu0 %v404
    %v2861 = vpop.f32.mrb[0].mxu0
    %v2862 = vadd.f32 %v1850, %v2861
    %v2863 = vpop.f32.mrb[0].mxu0
    %v2864 = vadd.f32 %v1854, %v2863
    %v2865 = vpop.f32.mrb[0].mxu0
    %v2866 = vadd.f32 %v1850, %v2865
    %v2867 = vpop.f32.mrb[0].mxu0
    %v2868 = vadd.f32 %v1854, %v2867
    %2869 = vmatprep.mubr.bf16.mxu0 %v613
    %2870 = vmatmul.mubr.bf16.gmra.mrb[0].mxu0 %v405
    %v2871 = vpop.f32.mrb[0].mxu0
    %v2872 = vadd.f32 %v1850, %v2871
    %v2873 = vpop.f32.mrb[0].mxu0
    %v2874 = vadd.f32 %v1854, %v2873
    %v2875 = vpop.f32.mrb[0].mxu0
    %v2876 = vadd.f32 %v1850, %v2875
    %v2877 = vpop.f32.mrb[0].mxu0
    %v2878 = vadd.f32 %v1854, %v2877
    %2879 = vmatprep.mubr.bf16.mxu0 %v614
    %2880 = vmatmul.mubr.bf16.gmra.mrb[0].mxu0 %v406
    %v2881 = vpop.f32.mrb[0].mxu0
    %v2882 = vadd.f32 %v1850, %v2881
    %v2883 = vpop.f32.mrb[0].mxu0
    %v2884 = vadd.f32 %v1854, %v2883
    %v2885 = vpop.f32.mrb[0].mxu0
    %v2886 = vadd.f32 %v1850, %v2885
    %v2887 = vpop.f32.mrb[0].mxu0
    %v2888 = vadd.f32 %v1854, %v2887
    %2889 = vmatprep.mubr.bf16.mxu0 %v615
    %2890 = vmatmul.mubr.bf16.gmra.mrb[0].mxu0 %v407
    %v2891 = vpop.f32.mrb[0].mxu0
    %v2892 = vadd.f32 %v1850, %v2891
    %v2893 = vpop.f32.mrb[0].mxu0
    %v2894 = vadd.f32 %v1854, %v2893
    %v2895 = vpop.f32.mrb[0].mxu0
    %v2896 = vadd.f32 %v1850, %v2895
    %v2897 = vpop.f32.mrb[0].mxu0
    %v2898 = vadd.f32 %v1854, %v2897
    %2899 = vmatprep.mubr.bf16.mxu0 %v616
    %2900 = vmatmul.mubr.bf16.gmra.mrb[0].mxu0 %v408
    %v2901 = vpop.f32.mrb[0].mxu0
    %v2902 = vadd.f32 %v1850, %v2901
    %v2903 = vpop.f32.mrb[0].mxu0
    %v2904 = vadd.f32 %v1854, %v2903
    %v2905 = vpop.f32.mrb[0].mxu0
    %v2906 = vadd.f32 %v1850, %v2905
    %v2907 = vpop.f32.mrb[0].mxu0
    %v2908 = vadd.f32 %v1854, %v2907
    %2909 = vmatprep.mubr.bf16.mxu0 %v617
    %2910 = vmatmul.mubr.bf16.gmra.mrb[0].mxu0 %v409
    %v2911 = vpop.f32.mrb[0].mxu0
    %v2912 = vadd.f32 %v1850, %v2911
    %v2913 = vpop.f32.mrb[0].mxu0
    %v2914 = vadd.f32 %v1854, %v2913
    %v2915 = vpop.f32.mrb[0].mxu0
    %v2916 = vadd.f32 %v1850, %v2915
    %v2917 = vpop.f32.mrb[0].mxu0
    %v2918 = vadd.f32 %v1854, %v2917
    %2919 = vmatprep.mubr.bf16.mxu0 %v618
    %2920 = vmatmul.mubr.bf16.gmra.mrb[0].mxu0 %v410
    %v2921 = vpop.f32.mrb[0].mxu0
    %v2922 = vadd.f32 %v1850, %v2921
    %v2923 = vpop.f32.mrb[0].mxu0
    %v2924 = vadd.f32 %v1854, %v2923
    %v2925 = vpop.f32.mrb[0].mxu0
    %v2926 = vadd.f32 %v1850, %v2925
    %v2927 = vpop.f32.mrb[0].mxu0
    %v2928 = vadd.f32 %v1854, %v2927
    %2929 = vmatprep.mubr.bf16.mxu0 %v619
    %2930 = vmatmul.mubr.bf16.gmra.mrb[0].mxu0 %v411
    %v2931 = vpop.f32.mrb[0].mxu0
    %v2932 = vadd.f32 %v1850, %v2931
    %v2933 = vpop.f32.mrb[0].mxu0
    %v2934 = vadd.f32 %v1854, %v2933
    %v2935 = vpop.f32.mrb[0].mxu0
    %v2936 = vadd.f32 %v1850, %v2935
    %v2937 = vpop.f32.mrb[0].mxu0
    %v2938 = vadd.f32 %v1854, %v2937
    %2939 = vmatprep.mubr.bf16.mxu0 %v620
    %2940 = vmatmul.mubr.bf16.gmra.mrb[0].mxu0 %v412
    %v2941 = vpop.f32.mrb[0].mxu0
    %v2942 = vadd.f32 %v1850, %v2941
    %v2943 = vpop.f32.mrb[0].mxu0
    %v2944 = vadd.f32 %v1854, %v2943
    %v2945 = vpop.f32.mrb[0].mxu0
    %v2946 = vadd.f32 %v1850, %v2945
    %v2947 = vpop.f32.mrb[0].mxu0
    %v2948 = vadd.f32 %v1854, %v2947
    %2949 = vmatprep.mubr.bf16.mxu0 %v621
    %2950 = vmatmul.mubr.bf16.gmra.mrb[0].mxu0 %v413
    %v2951 = vpop.f32.mrb[0].mxu0
    %v2952 = vadd.f32 %v1850, %v2951
    %v2953 = vpop.f32.mrb[0].mxu0
    %v2954 = vadd.f32 %v1854, %v2953
    %v2955 = vpop.f32.mrb[0].mxu0
    %v2956 = vadd.f32 %v1850, %v2955
    %v2957 = vpop.f32.mrb[0].mxu0
    %v2958 = vadd.f32 %v1854, %v2957
    %2959 = vmatprep.mubr.bf16.mxu0 %v622
    %2960 = vmatmul.mubr.bf16.gmra.mrb[0].mxu0 %v414
    %v2961 = vpop.f32.mrb[0].mxu0
    %v2962 = vadd.f32 %v1850, %v2961
    %v2963 = vpop.f32.mrb[0].mxu0
    %v2964 = vadd.f32 %v1854, %v2963
    %v2965 = vpop.f32.mrb[0].mxu0
    %v2966 = vadd.f32 %v1850, %v2965
    %v2967 = vpop.f32.mrb[0].mxu0
    %v2968 = vadd.f32 %v1854, %v2967
    %2969 = vmatprep.mubr.bf16.mxu0 %v623
    %2970 = vmatmul.mubr.bf16.gmra.mrb[0].mxu0 %v415
    %v2971 = vpop.f32.mrb[0].mxu0
    %v2972 = vadd.f32 %v1850, %v2971
    %v2973 = vpop.f32.mrb[0].mxu0
    %v2974 = vadd.f32 %v1854, %v2973
    %v2975 = vpop.f32.mrb[0].mxu0
    %v2976 = vadd.f32 %v1850, %v2975
    %v2977 = vpop.f32.mrb[0].mxu0
    %v2978 = vadd.f32 %v1854, %v2977
    %2979 = vmatprep.mubr.bf16.mxu0 %v624
    %2980 = vmatmul.mubr.bf16.gmra.mrb[0].mxu0 %v416
    %v2981 = vpop.f32.mrb[0].mxu0
    %v2982 = vadd.f32 %v1850, %v2981
    %v2983 = vpop.f32.mrb[0].mxu0
    %v2984 = vadd.f32 %v1854, %v2983
    %v2985 = vpop.f32.mrb[0].mxu0
    %v2986 = vadd.f32 %v1850, %v2985
    %v2987 = vpop.f32.mrb[0].mxu0
    %v2988 = vadd.f32 %v1854, %v2987
    %2989 = vmatprep.mubr.bf16.mxu0 %v625
    %2990 = vmatmul.mubr.bf16.gmra.mrb[0].mxu0 %v417
    %v2991 = vpop.f32.mrb[0].mxu0
    %v2992 = vadd.f32 %v1850, %v2991
    %v2993 = vpop.f32.mrb[0].mxu0
    %v2994 = vadd.f32 %v1854, %v2993
    %v2995 = vpop.f32.mrb[0].mxu0
    %v2996 = vadd.f32 %v1850, %v2995
    %v2997 = vpop.f32.mrb[0].mxu0
    %v2998 = vadd.f32 %v1854, %v2997
    %2999 = vmatprep.mubr.bf16.mxu0 %v626
    %3000 = vmatmul.mubr.bf16.gmra.mrb[0].mxu0 %v418
    %v3001 = vpop.f32.mrb[0].mxu0
    %v3002 = vadd.f32 %v1850, %v3001
    %v3003 = vpop.f32.mrb[0].mxu0
    %v3004 = vadd.f32 %v1854, %v3003
    %v3005 = vpop.f32.mrb[0].mxu0
    %v3006 = vadd.f32 %v1850, %v3005
    %v3007 = vpop.f32.mrb[0].mxu0
    %v3008 = vadd.f32 %v1854, %v3007
    %3009 = vmatprep.mubr.bf16.mxu0 %v627
    %3010 = vmatmul.mubr.bf16.gmra.mrb[0].mxu0 %v419
    %v3011 = vpop.f32.mrb[0].mxu0
    %v3012 = vadd.f32 %v1850, %v3011
    %v3013 = vpop.f32.mrb[0].mxu0
    %v3014 = vadd.f32 %v1854, %v3013
    %v3015 = vpop.f32.mrb[0].mxu0
    %v3016 = vadd.f32 %v1850, %v3015
    %v3017 = vpop.f32.mrb[0].mxu0
    %v3018 = vadd.f32 %v1854, %v3017
    %3019 = vdwg.mxu0
    %3020 = vmatprep.subr.bf16.mxu0 %v2508
    %3021 = vmatpush1.bf16.msra.mxu0 %v2507
    %3022 = vmatprep.subr.bf16.mxu0 %v2512
    %3023 = vmatpush1.bf16.msra.mxu0 %v2511
    %3024 = vmatprep.subr.bf16.mxu0 %v2516
    %3025 = vmatpush1.bf16.msra.mxu0 %v2515
    %3026 = vmatprep.subr.bf16.mxu0 %v2520
    %3027 = vmatpush1.bf16.msra.mxu0 %v2519
    %3028 = vmatprep.subr.bf16.mxu0 %v2524
    %3029 = vmatpush1.bf16.msra.mxu0 %v2523
    %3030 = vmatprep.subr.bf16.mxu0 %v2528
    %3031 = vmatpush1.bf16.msra.mxu0 %v2527
    %3032 = vmatprep.subr.bf16.mxu0 %v2532
    %3033 = vmatpush1.bf16.msra.mxu0 %v2531
    %3034 = vmatprep.subr.bf16.mxu0 %v2536
    %3035 = vmatpush1.bf16.msra.mxu0 %v2535
    %3036 = vmatprep.subr.bf16.mxu0 %v2540
    %3037 = vmatpush1.bf16.msra.mxu0 %v2539
    %3038 = vmatprep.subr.bf16.mxu0 %v2544
    %3039 = vmatpush1.bf16.msra.mxu0 %v2543
    %3040 = vmatprep.subr.bf16.mxu0 %v2548
    %3041 = vmatpush1.bf16.msra.mxu0 %v2547
    %3042 = vmatprep.subr.bf16.mxu0 %v2552
    %3043 = vmatpush1.bf16.msra.mxu0 %v2551
    %3044 = vmatprep.subr.bf16.mxu0 %v2556
    %3045 = vmatpush1.bf16.msra.mxu0 %v2555
    %3046 = vmatprep.subr.bf16.mxu0 %v2560
    %3047 = vmatpush1.bf16.msra.mxu0 %v2559
    %3048 = vmatprep.subr.bf16.mxu0 %v2564
    %3049 = vmatpush1.bf16.msra.mxu0 %v2563
    %3050 = vmatprep.subr.bf16.mxu0 %v2568
    %3051 = vmatpush1.bf16.msra.mxu0 %v2567
    %3052 = vmatprep.mubr.bf16.mxu0 %v1028
    %3053 = vmatmul.mubr.bf16.gmra.mrb[0].mxu0 %v820
    %v3054 = vpop.f32.mrb[0].mxu0
    %v3055 = vadd.f32 %v2862, %v3054
    %v3056 = vpop.f32.mrb[0].mxu0
    %v3057 = vadd.f32 %v2864, %v3056
    %v3058 = vpop.f32.mrb[0].mxu0
    %v3059 = vadd.f32 %v2866, %v3058
    %v3060 = vpop.f32.mrb[0].mxu0
    %v3061 = vadd.f32 %v2868, %v3060
    %3062 = vmatprep.mubr.bf16.mxu0 %v1029
    %3063 = vmatmul.mubr.bf16.gmra.mrb[0].mxu0 %v821
    %v3064 = vpop.f32.mrb[0].mxu0
    %v3065 = vadd.f32 %v2872, %v3064
    %v3066 = vpop.f32.mrb[0].mxu0
    %v3067 = vadd.f32 %v2874, %v3066
    %v3068 = vpop.f32.mrb[0].mxu0
    %v3069 = vadd.f32 %v2876, %v3068
    %v3070 = vpop.f32.mrb[0].mxu0
    %v3071 = vadd.f32 %v2878, %v3070
    %3072 = vmatprep.mubr.bf16.mxu0 %v1030
    %3073 = vmatmul.mubr.bf16.gmra.mrb[0].mxu0 %v822
    %v3074 = vpop.f32.mrb[0].mxu0
    %v3075 = vadd.f32 %v2882, %v3074
    %v3076 = vpop.f32.mrb[0].mxu0
    %v3077 = vadd.f32 %v2884, %v3076
    %v3078 = vpop.f32.mrb[0].mxu0
    %v3079 = vadd.f32 %v2886, %v3078
    %v3080 = vpop.f32.mrb[0].mxu0
    %v3081 = vadd.f32 %v2888, %v3080
    %3082 = vmatprep.mubr.bf16.mxu0 %v1031
    %3083 = vmatmul.mubr.bf16.gmra.mrb[0].mxu0 %v823
    %v3084 = vpop.f32.mrb[0].mxu0
    %v3085 = vadd.f32 %v2892, %v3084
    %v3086 = vpop.f32.mrb[0].mxu0
    %v3087 = vadd.f32 %v2894, %v3086
    %v3088 = vpop.f32.mrb[0].mxu0
    %v3089 = vadd.f32 %v2896, %v3088
    %v3090 = vpop.f32.mrb[0].mxu0
    %v3091 = vadd.f32 %v2898, %v3090
    %3092 = vmatprep.mubr.bf16.mxu0 %v1032
    %3093 = vmatmul.mubr.bf16.gmra.mrb[0].mxu0 %v824
    %v3094 = vpop.f32.mrb[0].mxu0
    %v3095 = vadd.f32 %v2902, %v3094
    %v3096 = vpop.f32.mrb[0].mxu0
    %v3097 = vadd.f32 %v2904, %v3096
    %v3098 = vpop.f32.mrb[0].mxu0
    %v3099 = vadd.f32 %v2906, %v3098
    %v3100 = vpop.f32.mrb[0].mxu0
    %v3101 = vadd.f32 %v2908, %v3100
    %3102 = vmatprep.mubr.bf16.mxu0 %v1033
    %3103 = vmatmul.mubr.bf16.gmra.mrb[0].mxu0 %v825
    %v3104 = vpop.f32.mrb[0].mxu0
    %v3105 = vadd.f32 %v2912, %v3104
    %v3106 = vpop.f32.mrb[0].mxu0
    %v3107 = vadd.f32 %v2914, %v3106
    %v3108 = vpop.f32.mrb[0].mxu0
    %v3109 = vadd.f32 %v2916, %v3108
    %v3110 = vpop.f32.mrb[0].mxu0
    %v3111 = vadd.f32 %v2918, %v3110
    %3112 = vmatprep.mubr.bf16.mxu0 %v1034
    %3113 = vmatmul.mubr.bf16.gmra.mrb[0].mxu0 %v826
    %v3114 = vpop.f32.mrb[0].mxu0
    %v3115 = vadd.f32 %v2922, %v3114
    %v3116 = vpop.f32.mrb[0].mxu0
    %v3117 = vadd.f32 %v2924, %v3116
    %v3118 = vpop.f32.mrb[0].mxu0
    %v3119 = vadd.f32 %v2926, %v3118
    %v3120 = vpop.f32.mrb[0].mxu0
    %v3121 = vadd.f32 %v2928, %v3120
    %3122 = vmatprep.mubr.bf16.mxu0 %v1035
    %3123 = vmatmul.mubr.bf16.gmra.mrb[0].mxu0 %v827
    %v3124 = vpop.f32.mrb[0].mxu0
    %v3125 = vadd.f32 %v2932, %v3124
    %v3126 = vpop.f32.mrb[0].mxu0
    %v3127 = vadd.f32 %v2934, %v3126
    %v3128 = vpop.f32.mrb[0].mxu0
    %v3129 = vadd.f32 %v2936, %v3128
    %v3130 = vpop.f32.mrb[0].mxu0
    %v3131 = vadd.f32 %v2938, %v3130
    %3132 = vmatprep.mubr.bf16.mxu0 %v1036
    %3133 = vmatmul.mubr.bf16.gmra.mrb[0].mxu0 %v828
    %v3134 = vpop.f32.mrb[0].mxu0
    %v3135 = vadd.f32 %v2942, %v3134
    %v3136 = vpop.f32.mrb[0].mxu0
    %v3137 = vadd.f32 %v2944, %v3136
    %v3138 = vpop.f32.mrb[0].mxu0
    %v3139 = vadd.f32 %v2946, %v3138
    %v3140 = vpop.f32.mrb[0].mxu0
    %v3141 = vadd.f32 %v2948, %v3140
    %3142 = vmatprep.mubr.bf16.mxu0 %v1037
    %3143 = vmatmul.mubr.bf16.gmra.mrb[0].mxu0 %v829
    %v3144 = vpop.f32.mrb[0].mxu0
    %v3145 = vadd.f32 %v2952, %v3144
    %v3146 = vpop.f32.mrb[0].mxu0
    %v3147 = vadd.f32 %v2954, %v3146
    %v3148 = vpop.f32.mrb[0].mxu0
    %v3149 = vadd.f32 %v2956, %v3148
    %v3150 = vpop.f32.mrb[0].mxu0
    %v3151 = vadd.f32 %v2958, %v3150
    %3152 = vmatprep.mubr.bf16.mxu0 %v1038
    %3153 = vmatmul.mubr.bf16.gmra.mrb[0].mxu0 %v830
    %v3154 = vpop.f32.mrb[0].mxu0
    %v3155 = vadd.f32 %v2962, %v3154
    %v3156 = vpop.f32.mrb[0].mxu0
    %v3157 = vadd.f32 %v2964, %v3156
    %v3158 = vpop.f32.mrb[0].mxu0
    %v3159 = vadd.f32 %v2966, %v3158
    %v3160 = vpop.f32.mrb[0].mxu0
    %v3161 = vadd.f32 %v2968, %v3160
    %3162 = vmatprep.mubr.bf16.mxu0 %v1039
    %3163 = vmatmul.mubr.bf16.gmra.mrb[0].mxu0 %v831
    %v3164 = vpop.f32.mrb[0].mxu0
    %v3165 = vadd.f32 %v2972, %v3164
    %v3166 = vpop.f32.mrb[0].mxu0
    %v3167 = vadd.f32 %v2974, %v3166
    %v3168 = vpop.f32.mrb[0].mxu0
    %v3169 = vadd.f32 %v2976, %v3168
    %v3170 = vpop.f32.mrb[0].mxu0
    %v3171 = vadd.f32 %v2978, %v3170
    %3172 = vmatprep.mubr.bf16.mxu0 %v1040
    %3173 = vmatmul.mubr.bf16.gmra.mrb[0].mxu0 %v832
    %v3174 = vpop.f32.mrb[0].mxu0
    %v3175 = vadd.f32 %v2982, %v3174
    %v3176 = vpop.f32.mrb[0].mxu0
    %v3177 = vadd.f32 %v2984, %v3176
    %v3178 = vpop.f32.mrb[0].mxu0
    %v3179 = vadd.f32 %v2986, %v3178
    %v3180 = vpop.f32.mrb[0].mxu0
    %v3181 = vadd.f32 %v2988, %v3180
    %3182 = vmatprep.mubr.bf16.mxu0 %v1041
    %3183 = vmatmul.mubr.bf16.gmra.mrb[0].mxu0 %v833
    %v3184 = vpop.f32.mrb[0].mxu0
    %v3185 = vadd.f32 %v2992, %v3184
    %v3186 = vpop.f32.mrb[0].mxu0
    %v3187 = vadd.f32 %v2994, %v3186
    %v3188 = vpop.f32.mrb[0].mxu0
    %v3189 = vadd.f32 %v2996, %v3188
    %v3190 = vpop.f32.mrb[0].mxu0
    %v3191 = vadd.f32 %v2998, %v3190
    %3192 = vmatprep.mubr.bf16.mxu0 %v1042
    %3193 = vmatmul.mubr.bf16.gmra.mrb[0].mxu0 %v834
    %v3194 = vpop.f32.mrb[0].mxu0
    %v3195 = vadd.f32 %v3002, %v3194
    %v3196 = vpop.f32.mrb[0].mxu0
    %v3197 = vadd.f32 %v3004, %v3196
    %v3198 = vpop.f32.mrb[0].mxu0
    %v3199 = vadd.f32 %v3006, %v3198
    %v3200 = vpop.f32.mrb[0].mxu0
    %v3201 = vadd.f32 %v3008, %v3200
    %3202 = vmatprep.mubr.bf16.mxu0 %v1043
    %3203 = vmatmul.mubr.bf16.gmra.mrb[0].mxu0 %v835
    %v3204 = vpop.f32.mrb[0].mxu0
    %v3205 = vadd.f32 %v3012, %v3204
    %v3206 = vpop.f32.mrb[0].mxu0
    %v3207 = vadd.f32 %v3014, %v3206
    %v3208 = vpop.f32.mrb[0].mxu0
    %v3209 = vadd.f32 %v3016, %v3208
    %v3210 = vpop.f32.mrb[0].mxu0
    %v3211 = vadd.f32 %v3018, %v3210
    %3212 = vdwg.mxu0
    %3213 = vmatprep.subr.bf16.mxu0 %v2572
    %3214 = vmatpush1.bf16.msra.mxu0 %v2571
    %3215 = vmatprep.subr.bf16.mxu0 %v2576
    %3216 = vmatpush1.bf16.msra.mxu0 %v2575
    %3217 = vmatprep.subr.bf16.mxu0 %v2580
    %3218 = vmatpush1.bf16.msra.mxu0 %v2579
    %3219 = vmatprep.subr.bf16.mxu0 %v2584
    %3220 = vmatpush1.bf16.msra.mxu0 %v2583
    %3221 = vmatprep.subr.bf16.mxu0 %v2588
    %3222 = vmatpush1.bf16.msra.mxu0 %v2587
    %3223 = vmatprep.subr.bf16.mxu0 %v2592
    %3224 = vmatpush1.bf16.msra.mxu0 %v2591
    %3225 = vmatprep.subr.bf16.mxu0 %v2596
    %3226 = vmatpush1.bf16.msra.mxu0 %v2595
    %3227 = vmatprep.subr.bf16.mxu0 %v2600
    %3228 = vmatpush1.bf16.msra.mxu0 %v2599
    %3229 = vmatprep.subr.bf16.mxu0 %v2604
    %3230 = vmatpush1.bf16.msra.mxu0 %v2603
    %3231 = vmatprep.subr.bf16.mxu0 %v2608
    %3232 = vmatpush1.bf16.msra.mxu0 %v2607
    %3233 = vmatprep.subr.bf16.mxu0 %v2612
    %3234 = vmatpush1.bf16.msra.mxu0 %v2611
    %3235 = vmatprep.subr.bf16.mxu0 %v2616
    %3236 = vmatpush1.bf16.msra.mxu0 %v2615
    %3237 = vmatprep.subr.bf16.mxu0 %v2620
    %3238 = vmatpush1.bf16.msra.mxu0 %v2619
    %3239 = vmatprep.subr.bf16.mxu0 %v2624
    %3240 = vmatpush1.bf16.msra.mxu0 %v2623
    %3241 = vmatprep.subr.bf16.mxu0 %v2628
    %3242 = vmatpush1.bf16.msra.mxu0 %v2627
    %3243 = vmatprep.subr.bf16.mxu0 %v2632
    %3244 = vmatpush1.bf16.msra.mxu0 %v2631
    %3245 = vmatprep.mubr.bf16.mxu0 %v1444
    %3246 = vmatmul.mubr.bf16.gmra.mrb[0].mxu0 %v1236
    %v3247 = vpop.f32.mrb[0].mxu0
    %v3248 = vadd.f32 %v3055, %v3247
    %v3249 = vpop.f32.mrb[0].mxu0
    %v3250 = vadd.f32 %v3057, %v3249
    %v3251 = vpop.f32.mrb[0].mxu0
    %v3252 = vadd.f32 %v3059, %v3251
    %v3253 = vpop.f32.mrb[0].mxu0
    %v3254 = vadd.f32 %v3061, %v3253
    %3255 = vmatprep.mubr.bf16.mxu0 %v1445
    %3256 = vmatmul.mubr.bf16.gmra.mrb[0].mxu0 %v1237
    %v3257 = vpop.f32.mrb[0].mxu0
    %v3258 = vadd.f32 %v3065, %v3257
    %v3259 = vpop.f32.mrb[0].mxu0
    %v3260 = vadd.f32 %v3067, %v3259
    %v3261 = vpop.f32.mrb[0].mxu0
    %v3262 = vadd.f32 %v3069, %v3261
    %v3263 = vpop.f32.mrb[0].mxu0
    %v3264 = vadd.f32 %v3071, %v3263
    %3265 = vmatprep.mubr.bf16.mxu0 %v1446
    %3266 = vmatmul.mubr.bf16.gmra.mrb[0].mxu0 %v1238
    %v3267 = vpop.f32.mrb[0].mxu0
    %v3268 = vadd.f32 %v3075, %v3267
    %v3269 = vpop.f32.mrb[0].mxu0
    %v3270 = vadd.f32 %v3077, %v3269
    %v3271 = vpop.f32.mrb[0].mxu0
    %v3272 = vadd.f32 %v3079, %v3271
    %v3273 = vpop.f32.mrb[0].mxu0
    %v3274 = vadd.f32 %v3081, %v3273
    %3275 = vmatprep.mubr.bf16.mxu0 %v1447
    %3276 = vmatmul.mubr.bf16.gmra.mrb[0].mxu0 %v1239
    %v3277 = vpop.f32.mrb[0].mxu0
    %v3278 = vadd.f32 %v3085, %v3277
    %v3279 = vpop.f32.mrb[0].mxu0
    %v3280 = vadd.f32 %v3087, %v3279
    %v3281 = vpop.f32.mrb[0].mxu0
    %v3282 = vadd.f32 %v3089, %v3281
    %v3283 = vpop.f32.mrb[0].mxu0
    %v3284 = vadd.f32 %v3091, %v3283
    %3285 = vmatprep.mubr.bf16.mxu0 %v1448
    %3286 = vmatmul.mubr.bf16.gmra.mrb[0].mxu0 %v1240
    %v3287 = vpop.f32.mrb[0].mxu0
    %v3288 = vadd.f32 %v3095, %v3287
    %v3289 = vpop.f32.mrb[0].mxu0
    %v3290 = vadd.f32 %v3097, %v3289
    %v3291 = vpop.f32.mrb[0].mxu0
    %v3292 = vadd.f32 %v3099, %v3291
    %v3293 = vpop.f32.mrb[0].mxu0
    %v3294 = vadd.f32 %v3101, %v3293
    %3295 = vmatprep.mubr.bf16.mxu0 %v1449
    %3296 = vmatmul.mubr.bf16.gmra.mrb[0].mxu0 %v1241
    %v3297 = vpop.f32.mrb[0].mxu0
    %v3298 = vadd.f32 %v3105, %v3297
    %v3299 = vpop.f32.mrb[0].mxu0
    %v3300 = vadd.f32 %v3107, %v3299
    %v3301 = vpop.f32.mrb[0].mxu0
    %v3302 = vadd.f32 %v3109, %v3301
    %v3303 = vpop.f32.mrb[0].mxu0
    %v3304 = vadd.f32 %v3111, %v3303
    %3305 = vmatprep.mubr.bf16.mxu0 %v1450
    %3306 = vmatmul.mubr.bf16.gmra.mrb[0].mxu0 %v1242
    %v3307 = vpop.f32.mrb[0].mxu0
    %v3308 = vadd.f32 %v3115, %v3307
    %v3309 = vpop.f32.mrb[0].mxu0
    %v3310 = vadd.f32 %v3117, %v3309
    %v3311 = vpop.f32.mrb[0].mxu0
    %v3312 = vadd.f32 %v3119, %v3311
    %v3313 = vpop.f32.mrb[0].mxu0
    %v3314 = vadd.f32 %v3121, %v3313
    %3315 = vmatprep.mubr.bf16.mxu0 %v1451
    %3316 = vmatmul.mubr.bf16.gmra.mrb[0].mxu0 %v1243
    %v3317 = vpop.f32.mrb[0].mxu0
    %v3318 = vadd.f32 %v3125, %v3317
    %v3319 = vpop.f32.mrb[0].mxu0
    %v3320 = vadd.f32 %v3127, %v3319
    %v3321 = vpop.f32.mrb[0].mxu0
    %v3322 = vadd.f32 %v3129, %v3321
    %v3323 = vpop.f32.mrb[0].mxu0
    %v3324 = vadd.f32 %v3131, %v3323
    %3325 = vmatprep.mubr.bf16.mxu0 %v1452
    %3326 = vmatmul.mubr.bf16.gmra.mrb[0].mxu0 %v1244
    %v3327 = vpop.f32.mrb[0].mxu0
    %v3328 = vadd.f32 %v3135, %v3327
    %v3329 = vpop.f32.mrb[0].mxu0
    %v3330 = vadd.f32 %v3137, %v3329
    %v3331 = vpop.f32.mrb[0].mxu0
    %v3332 = vadd.f32 %v3139, %v3331
    %v3333 = vpop.f32.mrb[0].mxu0
    %v3334 = vadd.f32 %v3141, %v3333
    %3335 = vmatprep.mubr.bf16.mxu0 %v1453
    %3336 = vmatmul.mubr.bf16.gmra.mrb[0].mxu0 %v1245
    %v3337 = vpop.f32.mrb[0].mxu0
    %v3338 = vadd.f32 %v3145, %v3337
    %v3339 = vpop.f32.mrb[0].mxu0
    %v3340 = vadd.f32 %v3147, %v3339
    %v3341 = vpop.f32.mrb[0].mxu0
    %v3342 = vadd.f32 %v3149, %v3341
    %v3343 = vpop.f32.mrb[0].mxu0
    %v3344 = vadd.f32 %v3151, %v3343
    %3345 = vmatprep.mubr.bf16.mxu0 %v1454
    %3346 = vmatmul.mubr.bf16.gmra.mrb[0].mxu0 %v1246
    %v3347 = vpop.f32.mrb[0].mxu0
    %v3348 = vadd.f32 %v3155, %v3347
    %v3349 = vpop.f32.mrb[0].mxu0
    %v3350 = vadd.f32 %v3157, %v3349
    %v3351 = vpop.f32.mrb[0].mxu0
    %v3352 = vadd.f32 %v3159, %v3351
    %v3353 = vpop.f32.mrb[0].mxu0
    %v3354 = vadd.f32 %v3161, %v3353
    %3355 = vmatprep.mubr.bf16.mxu0 %v1455
    %3356 = vmatmul.mubr.bf16.gmra.mrb[0].mxu0 %v1247
    %v3357 = vpop.f32.mrb[0].mxu0
    %v3358 = vadd.f32 %v3165, %v3357
    %v3359 = vpop.f32.mrb[0].mxu0
    %v3360 = vadd.f32 %v3167, %v3359
    %v3361 = vpop.f32.mrb[0].mxu0
    %v3362 = vadd.f32 %v3169, %v3361
    %v3363 = vpop.f32.mrb[0].mxu0
    %v3364 = vadd.f32 %v3171, %v3363
    %3365 = vmatprep.mubr.bf16.mxu0 %v1456
    %3366 = vmatmul.mubr.bf16.gmra.mrb[0].mxu0 %v1248
    %v3367 = vpop.f32.mrb[0].mxu0
    %v3368 = vadd.f32 %v3175, %v3367
    %v3369 = vpop.f32.mrb[0].mxu0
    %v3370 = vadd.f32 %v3177, %v3369
    %v3371 = vpop.f32.mrb[0].mxu0
    %v3372 = vadd.f32 %v3179, %v3371
    %v3373 = vpop.f32.mrb[0].mxu0
    %v3374 = vadd.f32 %v3181, %v3373
    %3375 = vmatprep.mubr.bf16.mxu0 %v1457
    %3376 = vmatmul.mubr.bf16.gmra.mrb[0].mxu0 %v1249
    %v3377 = vpop.f32.mrb[0].mxu0
    %v3378 = vadd.f32 %v3185, %v3377
    %v3379 = vpop.f32.mrb[0].mxu0
    %v3380 = vadd.f32 %v3187, %v3379
    %v3381 = vpop.f32.mrb[0].mxu0
    %v3382 = vadd.f32 %v3189, %v3381
    %v3383 = vpop.f32.mrb[0].mxu0
    %v3384 = vadd.f32 %v3191, %v3383
    %3385 = vmatprep.mubr.bf16.mxu0 %v1458
    %3386 = vmatmul.mubr.bf16.gmra.mrb[0].mxu0 %v1250
    %v3387 = vpop.f32.mrb[0].mxu0
    %v3388 = vadd.f32 %v3195, %v3387
    %v3389 = vpop.f32.mrb[0].mxu0
    %v3390 = vadd.f32 %v3197, %v3389
    %v3391 = vpop.f32.mrb[0].mxu0
    %v3392 = vadd.f32 %v3199, %v3391
    %v3393 = vpop.f32.mrb[0].mxu0
    %v3394 = vadd.f32 %v3201, %v3393
    %3395 = vmatprep.mubr.bf16.mxu0 %v1459
    %3396 = vmatmul.mubr.bf16.gmra.mrb[0].mxu0 %v1251
    %v3397 = vpop.f32.mrb[0].mxu0
    %v3398 = vadd.f32 %v3205, %v3397
    %v3399 = vpop.f32.mrb[0].mxu0
    %v3400 = vadd.f32 %v3207, %v3399
    %v3401 = vpop.f32.mrb[0].mxu0
    %v3402 = vadd.f32 %v3209, %v3401
    %v3403 = vpop.f32.mrb[0].mxu0
    %v3404 = vadd.f32 %v3211, %v3403
    %3405 = vdwg.mxu0
    %3406 = vmatprep.subr.bf16.mxu0 %v2446
    %3407 = vmatpush1.bf16.msra.mxu0 %v2445
    %3408 = vmatprep.subr.bf16.mxu0 %v2450
    %3409 = vmatpush1.bf16.msra.mxu0 %v2449
    %3410 = vmatprep.subr.bf16.mxu0 %v2454
    %3411 = vmatpush1.bf16.msra.mxu0 %v2453
    %3412 = vmatprep.subr.bf16.mxu0 %v2458
    %3413 = vmatpush1.bf16.msra.mxu0 %v2457
    %3414 = vmatprep.subr.bf16.mxu0 %v2462
    %3415 = vmatpush1.bf16.msra.mxu0 %v2461
    %3416 = vmatprep.subr.bf16.mxu0 %v2466
    %3417 = vmatpush1.bf16.msra.mxu0 %v2465
    %3418 = vmatprep.subr.bf16.mxu0 %v2470
    %3419 = vmatpush1.bf16.msra.mxu0 %v2469
    %3420 = vmatprep.subr.bf16.mxu0 %v2474
    %3421 = vmatpush1.bf16.msra.mxu0 %v2473
    %3422 = vmatprep.subr.bf16.mxu0 %v2478
    %3423 = vmatpush1.bf16.msra.mxu0 %v2477
    %3424 = vmatprep.subr.bf16.mxu0 %v2482
    %3425 = vmatpush1.bf16.msra.mxu0 %v2481
    %3426 = vmatprep.subr.bf16.mxu0 %v2486
    %3427 = vmatpush1.bf16.msra.mxu0 %v2485
    %3428 = vmatprep.subr.bf16.mxu0 %v2490
    %3429 = vmatpush1.bf16.msra.mxu0 %v2489
    %3430 = vmatprep.subr.bf16.mxu0 %v2494
    %3431 = vmatpush1.bf16.msra.mxu0 %v2493
    %3432 = vmatprep.subr.bf16.mxu0 %v2498
    %3433 = vmatpush1.bf16.msra.mxu0 %v2497
    %3434 = vmatprep.subr.bf16.mxu0 %v2502
    %3435 = vmatpush1.bf16.msra.mxu0 %v2501
    %3436 = vmatprep.subr.bf16.mxu0 %v2506
    %3437 = vmatpush1.bf16.msra.mxu0 %v2505
    %3438 = vmatprep.mubr.bf16.mxu0 %v612
    %3439 = vmatmul.mubr.bf16.gmra.mrb[0].mxu0 %v404
    %v3440 = vpop.f32.mrb[0].mxu0
    %v3441 = vadd.f32 %v1858, %v3440
    %v3442 = vpop.f32.mrb[0].mxu0
    %v3443 = vadd.f32 %v1862, %v3442
    %v3444 = vpop.f32.mrb[0].mxu0
    %v3445 = vadd.f32 %v1858, %v3444
    %v3446 = vpop.f32.mrb[0].mxu0
    %v3447 = vadd.f32 %v1862, %v3446
    %3448 = vmatprep.mubr.bf16.mxu0 %v613
    %3449 = vmatmul.mubr.bf16.gmra.mrb[0].mxu0 %v405
    %v3450 = vpop.f32.mrb[0].mxu0
    %v3451 = vadd.f32 %v1858, %v3450
    %v3452 = vpop.f32.mrb[0].mxu0
    %v3453 = vadd.f32 %v1862, %v3452
    %v3454 = vpop.f32.mrb[0].mxu0
    %v3455 = vadd.f32 %v1858, %v3454
    %v3456 = vpop.f32.mrb[0].mxu0
    %v3457 = vadd.f32 %v1862, %v3456
    %3458 = vmatprep.mubr.bf16.mxu0 %v614
    %3459 = vmatmul.mubr.bf16.gmra.mrb[0].mxu0 %v406
    %v3460 = vpop.f32.mrb[0].mxu0
    %v3461 = vadd.f32 %v1858, %v3460
    %v3462 = vpop.f32.mrb[0].mxu0
    %v3463 = vadd.f32 %v1862, %v3462
    %v3464 = vpop.f32.mrb[0].mxu0
    %v3465 = vadd.f32 %v1858, %v3464
    %v3466 = vpop.f32.mrb[0].mxu0
    %v3467 = vadd.f32 %v1862, %v3466
    %3468 = vmatprep.mubr.bf16.mxu0 %v615
    %3469 = vmatmul.mubr.bf16.gmra.mrb[0].mxu0 %v407
    %v3470 = vpop.f32.mrb[0].mxu0
    %v3471 = vadd.f32 %v1858, %v3470
    %v3472 = vpop.f32.mrb[0].mxu0
    %v3473 = vadd.f32 %v1862, %v3472
    %v3474 = vpop.f32.mrb[0].mxu0
    %v3475 = vadd.f32 %v1858, %v3474
    %v3476 = vpop.f32.mrb[0].mxu0
    %v3477 = vadd.f32 %v1862, %v3476
    %3478 = vmatprep.mubr.bf16.mxu0 %v616
    %3479 = vmatmul.mubr.bf16.gmra.mrb[0].mxu0 %v408
    %v3480 = vpop.f32.mrb[0].mxu0
    %v3481 = vadd.f32 %v1858, %v3480
    %v3482 = vpop.f32.mrb[0].mxu0
    %v3483 = vadd.f32 %v1862, %v3482
    %v3484 = vpop.f32.mrb[0].mxu0
    %v3485 = vadd.f32 %v1858, %v3484
    %v3486 = vpop.f32.mrb[0].mxu0
    %v3487 = vadd.f32 %v1862, %v3486
    %3488 = vmatprep.mubr.bf16.mxu0 %v617
    %3489 = vmatmul.mubr.bf16.gmra.mrb[0].mxu0 %v409
    %v3490 = vpop.f32.mrb[0].mxu0
    %v3491 = vadd.f32 %v1858, %v3490
    %v3492 = vpop.f32.mrb[0].mxu0
    %v3493 = vadd.f32 %v1862, %v3492
    %v3494 = vpop.f32.mrb[0].mxu0
    %v3495 = vadd.f32 %v1858, %v3494
    %v3496 = vpop.f32.mrb[0].mxu0
    %v3497 = vadd.f32 %v1862, %v3496
    %3498 = vmatprep.mubr.bf16.mxu0 %v618
    %3499 = vmatmul.mubr.bf16.gmra.mrb[0].mxu0 %v410
    %v3500 = vpop.f32.mrb[0].mxu0
    %v3501 = vadd.f32 %v1858, %v3500
    %v3502 = vpop.f32.mrb[0].mxu0
    %v3503 = vadd.f32 %v1862, %v3502
    %v3504 = vpop.f32.mrb[0].mxu0
    %v3505 = vadd.f32 %v1858, %v3504
    %v3506 = vpop.f32.mrb[0].mxu0
    %v3507 = vadd.f32 %v1862, %v3506
    %3508 = vmatprep.mubr.bf16.mxu0 %v619
    %3509 = vmatmul.mubr.bf16.gmra.mrb[0].mxu0 %v411
    %v3510 = vpop.f32.mrb[0].mxu0
    %v3511 = vadd.f32 %v1858, %v3510
    %v3512 = vpop.f32.mrb[0].mxu0
    %v3513 = vadd.f32 %v1862, %v3512
    %v3514 = vpop.f32.mrb[0].mxu0
    %v3515 = vadd.f32 %v1858, %v3514
    %v3516 = vpop.f32.mrb[0].mxu0
    %v3517 = vadd.f32 %v1862, %v3516
    %3518 = vmatprep.mubr.bf16.mxu0 %v620
    %3519 = vmatmul.mubr.bf16.gmra.mrb[0].mxu0 %v412
    %v3520 = vpop.f32.mrb[0].mxu0
    %v3521 = vadd.f32 %v1858, %v3520
    %v3522 = vpop.f32.mrb[0].mxu0
    %v3523 = vadd.f32 %v1862, %v3522
    %v3524 = vpop.f32.mrb[0].mxu0
    %v3525 = vadd.f32 %v1858, %v3524
    %v3526 = vpop.f32.mrb[0].mxu0
    %v3527 = vadd.f32 %v1862, %v3526
    %3528 = vmatprep.mubr.bf16.mxu0 %v621
    %3529 = vmatmul.mubr.bf16.gmra.mrb[0].mxu0 %v413
    %v3530 = vpop.f32.mrb[0].mxu0
    %v3531 = vadd.f32 %v1858, %v3530
    %v3532 = vpop.f32.mrb[0].mxu0
    %v3533 = vadd.f32 %v1862, %v3532
    %v3534 = vpop.f32.mrb[0].mxu0
    %v3535 = vadd.f32 %v1858, %v3534
    %v3536 = vpop.f32.mrb[0].mxu0
    %v3537 = vadd.f32 %v1862, %v3536
    %3538 = vmatprep.mubr.bf16.mxu0 %v622
    %3539 = vmatmul.mubr.bf16.gmra.mrb[0].mxu0 %v414
    %v3540 = vpop.f32.mrb[0].mxu0
    %v3541 = vadd.f32 %v1858, %v3540
    %v3542 = vpop.f32.mrb[0].mxu0
    %v3543 = vadd.f32 %v1862, %v3542
    %v3544 = vpop.f32.mrb[0].mxu0
    %v3545 = vadd.f32 %v1858, %v3544
    %v3546 = vpop.f32.mrb[0].mxu0
    %v3547 = vadd.f32 %v1862, %v3546
    %3548 = vmatprep.mubr.bf16.mxu0 %v623
    %3549 = vmatmul.mubr.bf16.gmra.mrb[0].mxu0 %v415
    %v3550 = vpop.f32.mrb[0].mxu0
    %v3551 = vadd.f32 %v1858, %v3550
    %v3552 = vpop.f32.mrb[0].mxu0
    %v3553 = vadd.f32 %v1862, %v3552
    %v3554 = vpop.f32.mrb[0].mxu0
    %v3555 = vadd.f32 %v1858, %v3554
    %v3556 = vpop.f32.mrb[0].mxu0
    %v3557 = vadd.f32 %v1862, %v3556
    %3558 = vmatprep.mubr.bf16.mxu0 %v624
    %3559 = vmatmul.mubr.bf16.gmra.mrb[0].mxu0 %v416
    %v3560 = vpop.f32.mrb[0].mxu0
    %v3561 = vadd.f32 %v1858, %v3560
    %v3562 = vpop.f32.mrb[0].mxu0
    %v3563 = vadd.f32 %v1862, %v3562
    %v3564 = vpop.f32.mrb[0].mxu0
    %v3565 = vadd.f32 %v1858, %v3564
    %v3566 = vpop.f32.mrb[0].mxu0
    %v3567 = vadd.f32 %v1862, %v3566
    %3568 = vmatprep.mubr.bf16.mxu0 %v625
    %3569 = vmatmul.mubr.bf16.gmra.mrb[0].mxu0 %v417
    %v3570 = vpop.f32.mrb[0].mxu0
    %v3571 = vadd.f32 %v1858, %v3570
    %v3572 = vpop.f32.mrb[0].mxu0
    %v3573 = vadd.f32 %v1862, %v3572
    %v3574 = vpop.f32.mrb[0].mxu0
    %v3575 = vadd.f32 %v1858, %v3574
    %v3576 = vpop.f32.mrb[0].mxu0
    %v3577 = vadd.f32 %v1862, %v3576
    %3578 = vmatprep.mubr.bf16.mxu0 %v626
    %3579 = vmatmul.mubr.bf16.gmra.mrb[0].mxu0 %v418
    %v3580 = vpop.f32.mrb[0].mxu0
    %v3581 = vadd.f32 %v1858, %v3580
    %v3582 = vpop.f32.mrb[0].mxu0
    %v3583 = vadd.f32 %v1862, %v3582
    %v3584 = vpop.f32.mrb[0].mxu0
    %v3585 = vadd.f32 %v1858, %v3584
    %v3586 = vpop.f32.mrb[0].mxu0
    %v3587 = vadd.f32 %v1862, %v3586
    %3588 = vmatprep.mubr.bf16.mxu0 %v627
    %3589 = vmatmul.mubr.bf16.gmra.mrb[0].mxu0 %v419
    %v3590 = vpop.f32.mrb[0].mxu0
    %v3591 = vadd.f32 %v1858, %v3590
    %v3592 = vpop.f32.mrb[0].mxu0
    %v3593 = vadd.f32 %v1862, %v3592
    %v3594 = vpop.f32.mrb[0].mxu0
    %v3595 = vadd.f32 %v1858, %v3594
    %v3596 = vpop.f32.mrb[0].mxu0
    %v3597 = vadd.f32 %v1862, %v3596
    %3598 = vdwg.mxu0
    %3599 = vmatprep.subr.bf16.mxu0 %v2510
    %3600 = vmatpush1.bf16.msra.mxu0 %v2509
    %3601 = vmatprep.subr.bf16.mxu0 %v2514
    %3602 = vmatpush1.bf16.msra.mxu0 %v2513
    %3603 = vmatprep.subr.bf16.mxu0 %v2518
    %3604 = vmatpush1.bf16.msra.mxu0 %v2517
    %3605 = vmatprep.subr.bf16.mxu0 %v2522
    %3606 = vmatpush1.bf16.msra.mxu0 %v2521
    %3607 = vmatprep.subr.bf16.mxu0 %v2526
    %3608 = vmatpush1.bf16.msra.mxu0 %v2525
    %3609 = vmatprep.subr.bf16.mxu0 %v2530
    %3610 = vmatpush1.bf16.msra.mxu0 %v2529
    %3611 = vmatprep.subr.bf16.mxu0 %v2534
    %3612 = vmatpush1.bf16.msra.mxu0 %v2533
    %3613 = vmatprep.subr.bf16.mxu0 %v2538
    %3614 = vmatpush1.bf16.msra.mxu0 %v2537
    %3615 = vmatprep.subr.bf16.mxu0 %v2542
    %3616 = vmatpush1.bf16.msra.mxu0 %v2541
    %3617 = vmatprep.subr.bf16.mxu0 %v2546
    %3618 = vmatpush1.bf16.msra.mxu0 %v2545
    %3619 = vmatprep.subr.bf16.mxu0 %v2550
    %3620 = vmatpush1.bf16.msra.mxu0 %v2549
    %3621 = vmatprep.subr.bf16.mxu0 %v2554
    %3622 = vmatpush1.bf16.msra.mxu0 %v2553
    %3623 = vmatprep.subr.bf16.mxu0 %v2558
    %3624 = vmatpush1.bf16.msra.mxu0 %v2557
    %3625 = vmatprep.subr.bf16.mxu0 %v2562
    %3626 = vmatpush1.bf16.msra.mxu0 %v2561
    %3627 = vmatprep.subr.bf16.mxu0 %v2566
    %3628 = vmatpush1.bf16.msra.mxu0 %v2565
    %3629 = vmatprep.subr.bf16.mxu0 %v2570
    %3630 = vmatpush1.bf16.msra.mxu0 %v2569
    %3631 = vmatprep.mubr.bf16.mxu0 %v1028
    %3632 = vmatmul.mubr.bf16.gmra.mrb[0].mxu0 %v820
    %v3633 = vpop.f32.mrb[0].mxu0
    %v3634 = vadd.f32 %v3441, %v3633
    %v3635 = vpop.f32.mrb[0].mxu0
    %v3636 = vadd.f32 %v3443, %v3635
    %v3637 = vpop.f32.mrb[0].mxu0
    %v3638 = vadd.f32 %v3445, %v3637
    %v3639 = vpop.f32.mrb[0].mxu0
    %v3640 = vadd.f32 %v3447, %v3639
    %3641 = vmatprep.mubr.bf16.mxu0 %v1029
    %3642 = vmatmul.mubr.bf16.gmra.mrb[0].mxu0 %v821
    %v3643 = vpop.f32.mrb[0].mxu0
    %v3644 = vadd.f32 %v3451, %v3643
    %v3645 = vpop.f32.mrb[0].mxu0
    %v3646 = vadd.f32 %v3453, %v3645
    %v3647 = vpop.f32.mrb[0].mxu0
    %v3648 = vadd.f32 %v3455, %v3647
    %v3649 = vpop.f32.mrb[0].mxu0
    %v3650 = vadd.f32 %v3457, %v3649
    %3651 = vmatprep.mubr.bf16.mxu0 %v1030
    %3652 = vmatmul.mubr.bf16.gmra.mrb[0].mxu0 %v822
    %v3653 = vpop.f32.mrb[0].mxu0
    %v3654 = vadd.f32 %v3461, %v3653
    %v3655 = vpop.f32.mrb[0].mxu0
    %v3656 = vadd.f32 %v3463, %v3655
    %v3657 = vpop.f32.mrb[0].mxu0
    %v3658 = vadd.f32 %v3465, %v3657
    %v3659 = vpop.f32.mrb[0].mxu0
    %v3660 = vadd.f32 %v3467, %v3659
    %3661 = vmatprep.mubr.bf16.mxu0 %v1031
    %3662 = vmatmul.mubr.bf16.gmra.mrb[0].mxu0 %v823
    %v3663 = vpop.f32.mrb[0].mxu0
    %v3664 = vadd.f32 %v3471, %v3663
    %v3665 = vpop.f32.mrb[0].mxu0
    %v3666 = vadd.f32 %v3473, %v3665
    %v3667 = vpop.f32.mrb[0].mxu0
    %v3668 = vadd.f32 %v3475, %v3667
    %v3669 = vpop.f32.mrb[0].mxu0
    %v3670 = vadd.f32 %v3477, %v3669
    %3671 = vmatprep.mubr.bf16.mxu0 %v1032
    %3672 = vmatmul.mubr.bf16.gmra.mrb[0].mxu0 %v824
    %v3673 = vpop.f32.mrb[0].mxu0
    %v3674 = vadd.f32 %v3481, %v3673
    %v3675 = vpop.f32.mrb[0].mxu0
    %v3676 = vadd.f32 %v3483, %v3675
    %v3677 = vpop.f32.mrb[0].mxu0
    %v3678 = vadd.f32 %v3485, %v3677
    %v3679 = vpop.f32.mrb[0].mxu0
    %v3680 = vadd.f32 %v3487, %v3679
    %3681 = vmatprep.mubr.bf16.mxu0 %v1033
    %3682 = vmatmul.mubr.bf16.gmra.mrb[0].mxu0 %v825
    %v3683 = vpop.f32.mrb[0].mxu0
    %v3684 = vadd.f32 %v3491, %v3683
    %v3685 = vpop.f32.mrb[0].mxu0
    %v3686 = vadd.f32 %v3493, %v3685
    %v3687 = vpop.f32.mrb[0].mxu0
    %v3688 = vadd.f32 %v3495, %v3687
    %v3689 = vpop.f32.mrb[0].mxu0
    %v3690 = vadd.f32 %v3497, %v3689
    %3691 = vmatprep.mubr.bf16.mxu0 %v1034
    %3692 = vmatmul.mubr.bf16.gmra.mrb[0].mxu0 %v826
    %v3693 = vpop.f32.mrb[0].mxu0
    %v3694 = vadd.f32 %v3501, %v3693
    %v3695 = vpop.f32.mrb[0].mxu0
    %v3696 = vadd.f32 %v3503, %v3695
    %v3697 = vpop.f32.mrb[0].mxu0
    %v3698 = vadd.f32 %v3505, %v3697
    %v3699 = vpop.f32.mrb[0].mxu0
    %v3700 = vadd.f32 %v3507, %v3699
    %3701 = vmatprep.mubr.bf16.mxu0 %v1035
    %3702 = vmatmul.mubr.bf16.gmra.mrb[0].mxu0 %v827
    %v3703 = vpop.f32.mrb[0].mxu0
    %v3704 = vadd.f32 %v3511, %v3703
    %v3705 = vpop.f32.mrb[0].mxu0
    %v3706 = vadd.f32 %v3513, %v3705
    %v3707 = vpop.f32.mrb[0].mxu0
    %v3708 = vadd.f32 %v3515, %v3707
    %v3709 = vpop.f32.mrb[0].mxu0
    %v3710 = vadd.f32 %v3517, %v3709
    %3711 = vmatprep.mubr.bf16.mxu0 %v1036
    %3712 = vmatmul.mubr.bf16.gmra.mrb[0].mxu0 %v828
    %v3713 = vpop.f32.mrb[0].mxu0
    %v3714 = vadd.f32 %v3521, %v3713
    %v3715 = vpop.f32.mrb[0].mxu0
    %v3716 = vadd.f32 %v3523, %v3715
    %v3717 = vpop.f32.mrb[0].mxu0
    %v3718 = vadd.f32 %v3525, %v3717
    %v3719 = vpop.f32.mrb[0].mxu0
    %v3720 = vadd.f32 %v3527, %v3719
    %3721 = vmatprep.mubr.bf16.mxu0 %v1037
    %3722 = vmatmul.mubr.bf16.gmra.mrb[0].mxu0 %v829
    %v3723 = vpop.f32.mrb[0].mxu0
    %v3724 = vadd.f32 %v3531, %v3723
    %v3725 = vpop.f32.mrb[0].mxu0
    %v3726 = vadd.f32 %v3533, %v3725
    %v3727 = vpop.f32.mrb[0].mxu0
    %v3728 = vadd.f32 %v3535, %v3727
    %v3729 = vpop.f32.mrb[0].mxu0
    %v3730 = vadd.f32 %v3537, %v3729
    %3731 = vmatprep.mubr.bf16.mxu0 %v1038
    %3732 = vmatmul.mubr.bf16.gmra.mrb[0].mxu0 %v830
    %v3733 = vpop.f32.mrb[0].mxu0
    %v3734 = vadd.f32 %v3541, %v3733
    %v3735 = vpop.f32.mrb[0].mxu0
    %v3736 = vadd.f32 %v3543, %v3735
    %v3737 = vpop.f32.mrb[0].mxu0
    %v3738 = vadd.f32 %v3545, %v3737
    %v3739 = vpop.f32.mrb[0].mxu0
    %v3740 = vadd.f32 %v3547, %v3739
    %3741 = vmatprep.mubr.bf16.mxu0 %v1039
    %3742 = vmatmul.mubr.bf16.gmra.mrb[0].mxu0 %v831
    %v3743 = vpop.f32.mrb[0].mxu0
    %v3744 = vadd.f32 %v3551, %v3743
    %v3745 = vpop.f32.mrb[0].mxu0
    %v3746 = vadd.f32 %v3553, %v3745
    %v3747 = vpop.f32.mrb[0].mxu0
    %v3748 = vadd.f32 %v3555, %v3747
    %v3749 = vpop.f32.mrb[0].mxu0
    %v3750 = vadd.f32 %v3557, %v3749
    %3751 = vmatprep.mubr.bf16.mxu0 %v1040
    %3752 = vmatmul.mubr.bf16.gmra.mrb[0].mxu0 %v832
    %v3753 = vpop.f32.mrb[0].mxu0
    %v3754 = vadd.f32 %v3561, %v3753
    %v3755 = vpop.f32.mrb[0].mxu0
    %v3756 = vadd.f32 %v3563, %v3755
    %v3757 = vpop.f32.mrb[0].mxu0
    %v3758 = vadd.f32 %v3565, %v3757
    %v3759 = vpop.f32.mrb[0].mxu0
    %v3760 = vadd.f32 %v3567, %v3759
    %3761 = vmatprep.mubr.bf16.mxu0 %v1041
    %3762 = vmatmul.mubr.bf16.gmra.mrb[0].mxu0 %v833
    %v3763 = vpop.f32.mrb[0].mxu0
    %v3764 = vadd.f32 %v3571, %v3763
    %v3765 = vpop.f32.mrb[0].mxu0
    %v3766 = vadd.f32 %v3573, %v3765
    %v3767 = vpop.f32.mrb[0].mxu0
    %v3768 = vadd.f32 %v3575, %v3767
    %v3769 = vpop.f32.mrb[0].mxu0
    %v3770 = vadd.f32 %v3577, %v3769
    %3771 = vmatprep.mubr.bf16.mxu0 %v1042
    %3772 = vmatmul.mubr.bf16.gmra.mrb[0].mxu0 %v834
    %v3773 = vpop.f32.mrb[0].mxu0
    %v3774 = vadd.f32 %v3581, %v3773
    %v3775 = vpop.f32.mrb[0].mxu0
    %v3776 = vadd.f32 %v3583, %v3775
    %v3777 = vpop.f32.mrb[0].mxu0
    %v3778 = vadd.f32 %v3585, %v3777
    %v3779 = vpop.f32.mrb[0].mxu0
    %v3780 = vadd.f32 %v3587, %v3779
    %3781 = vmatprep.mubr.bf16.mxu0 %v1043
    %3782 = vmatmul.mubr.bf16.gmra.mrb[0].mxu0 %v835
    %v3783 = vpop.f32.mrb[0].mxu0
    %v3784 = vadd.f32 %v3591, %v3783
    %v3785 = vpop.f32.mrb[0].mxu0
    %v3786 = vadd.f32 %v3593, %v3785
    %v3787 = vpop.f32.mrb[0].mxu0
    %v3788 = vadd.f32 %v3595, %v3787
    %v3789 = vpop.f32.mrb[0].mxu0
    %v3790 = vadd.f32 %v3597, %v3789
    %3791 = vdwg.mxu0
    %3792 = vmatprep.subr.bf16.mxu0 %v2574
    %3793 = vmatpush1.bf16.msra.mxu0 %v2573
    %3794 = vmatprep.subr.bf16.mxu0 %v2578
    %3795 = vmatpush1.bf16.msra.mxu0 %v2577
    %3796 = vmatprep.subr.bf16.mxu0 %v2582
    %3797 = vmatpush1.bf16.msra.mxu0 %v2581
    %3798 = vmatprep.subr.bf16.mxu0 %v2586
    %3799 = vmatpush1.bf16.msra.mxu0 %v2585
    %3800 = vmatprep.subr.bf16.mxu0 %v2590
    %3801 = vmatpush1.bf16.msra.mxu0 %v2589
    %3802 = vmatprep.subr.bf16.mxu0 %v2594
    %3803 = vmatpush1.bf16.msra.mxu0 %v2593
    %3804 = vmatprep.subr.bf16.mxu0 %v2598
    %3805 = vmatpush1.bf16.msra.mxu0 %v2597
    %3806 = vmatprep.subr.bf16.mxu0 %v2602
    %3807 = vmatpush1.bf16.msra.mxu0 %v2601
    %3808 = vmatprep.subr.bf16.mxu0 %v2606
    %3809 = vmatpush1.bf16.msra.mxu0 %v2605
    %3810 = vmatprep.subr.bf16.mxu0 %v2610
    %3811 = vmatpush1.bf16.msra.mxu0 %v2609
    %3812 = vmatprep.subr.bf16.mxu0 %v2614
    %3813 = vmatpush1.bf16.msra.mxu0 %v2613
    %3814 = vmatprep.subr.bf16.mxu0 %v2618
    %3815 = vmatpush1.bf16.msra.mxu0 %v2617
    %3816 = vmatprep.subr.bf16.mxu0 %v2622
    %3817 = vmatpush1.bf16.msra.mxu0 %v2621
    %3818 = vmatprep.subr.bf16.mxu0 %v2626
    %3819 = vmatpush1.bf16.msra.mxu0 %v2625
    %3820 = vmatprep.subr.bf16.mxu0 %v2630
    %3821 = vmatpush1.bf16.msra.mxu0 %v2629
    %3822 = vmatprep.subr.bf16.mxu0 %v2634
    %3823 = vmatpush1.bf16.msra.mxu0 %v2633
    %3824 = vmatprep.mubr.bf16.mxu0 %v1444
    %3825 = vmatmul.mubr.bf16.gmra.mrb[0].mxu0 %v1236
    %v3826 = vpop.f32.mrb[0].mxu0
    %v3827 = vadd.f32 %v3634, %v3826
    %v3828 = vpop.f32.mrb[0].mxu0
    %v3829 = vadd.f32 %v3636, %v3828
    %v3830 = vpop.f32.mrb[0].mxu0
    %v3831 = vadd.f32 %v3638, %v3830
    %v3832 = vpop.f32.mrb[0].mxu0
    %v3833 = vadd.f32 %v3640, %v3832
    %3834 = vmatprep.mubr.bf16.mxu0 %v1445
    %3835 = vmatmul.mubr.bf16.gmra.mrb[0].mxu0 %v1237
    %v3836 = vpop.f32.mrb[0].mxu0
    %v3837 = vadd.f32 %v3644, %v3836
    %v3838 = vpop.f32.mrb[0].mxu0
    %v3839 = vadd.f32 %v3646, %v3838
    %v3840 = vpop.f32.mrb[0].mxu0
    %v3841 = vadd.f32 %v3648, %v3840
    %v3842 = vpop.f32.mrb[0].mxu0
    %v3843 = vadd.f32 %v3650, %v3842
    %3844 = vmatprep.mubr.bf16.mxu0 %v1446
    %3845 = vmatmul.mubr.bf16.gmra.mrb[0].mxu0 %v1238
    %v3846 = vpop.f32.mrb[0].mxu0
    %v3847 = vadd.f32 %v3654, %v3846
    %v3848 = vpop.f32.mrb[0].mxu0
    %v3849 = vadd.f32 %v3656, %v3848
    %v3850 = vpop.f32.mrb[0].mxu0
    %v3851 = vadd.f32 %v3658, %v3850
    %v3852 = vpop.f32.mrb[0].mxu0
    %v3853 = vadd.f32 %v3660, %v3852
    %3854 = vmatprep.mubr.bf16.mxu0 %v1447
    %3855 = vmatmul.mubr.bf16.gmra.mrb[0].mxu0 %v1239
    %v3856 = vpop.f32.mrb[0].mxu0
    %v3857 = vadd.f32 %v3664, %v3856
    %v3858 = vpop.f32.mrb[0].mxu0
    %v3859 = vadd.f32 %v3666, %v3858
    %v3860 = vpop.f32.mrb[0].mxu0
    %v3861 = vadd.f32 %v3668, %v3860
    %v3862 = vpop.f32.mrb[0].mxu0
    %v3863 = vadd.f32 %v3670, %v3862
    %3864 = vmatprep.mubr.bf16.mxu0 %v1448
    %3865 = vmatmul.mubr.bf16.gmra.mrb[0].mxu0 %v1240
    %v3866 = vpop.f32.mrb[0].mxu0
    %v3867 = vadd.f32 %v3674, %v3866
    %v3868 = vpop.f32.mrb[0].mxu0
    %v3869 = vadd.f32 %v3676, %v3868
    %v3870 = vpop.f32.mrb[0].mxu0
    %v3871 = vadd.f32 %v3678, %v3870
    %v3872 = vpop.f32.mrb[0].mxu0
    %v3873 = vadd.f32 %v3680, %v3872
    %3874 = vmatprep.mubr.bf16.mxu0 %v1449
    %3875 = vmatmul.mubr.bf16.gmra.mrb[0].mxu0 %v1241
    %v3876 = vpop.f32.mrb[0].mxu0
    %v3877 = vadd.f32 %v3684, %v3876
    %v3878 = vpop.f32.mrb[0].mxu0
    %v3879 = vadd.f32 %v3686, %v3878
    %v3880 = vpop.f32.mrb[0].mxu0
    %v3881 = vadd.f32 %v3688, %v3880
    %v3882 = vpop.f32.mrb[0].mxu0
    %v3883 = vadd.f32 %v3690, %v3882
    %3884 = vmatprep.mubr.bf16.mxu0 %v1450
    %3885 = vmatmul.mubr.bf16.gmra.mrb[0].mxu0 %v1242
    %v3886 = vpop.f32.mrb[0].mxu0
    %v3887 = vadd.f32 %v3694, %v3886
    %v3888 = vpop.f32.mrb[0].mxu0
    %v3889 = vadd.f32 %v3696, %v3888
    %v3890 = vpop.f32.mrb[0].mxu0
    %v3891 = vadd.f32 %v3698, %v3890
    %v3892 = vpop.f32.mrb[0].mxu0
    %v3893 = vadd.f32 %v3700, %v3892
    %3894 = vmatprep.mubr.bf16.mxu0 %v1451
    %3895 = vmatmul.mubr.bf16.gmra.mrb[0].mxu0 %v1243
    %v3896 = vpop.f32.mrb[0].mxu0
    %v3897 = vadd.f32 %v3704, %v3896
    %v3898 = vpop.f32.mrb[0].mxu0
    %v3899 = vadd.f32 %v3706, %v3898
    %v3900 = vpop.f32.mrb[0].mxu0
    %v3901 = vadd.f32 %v3708, %v3900
    %v3902 = vpop.f32.mrb[0].mxu0
    %v3903 = vadd.f32 %v3710, %v3902
    %3904 = vmatprep.mubr.bf16.mxu0 %v1452
    %3905 = vmatmul.mubr.bf16.gmra.mrb[0].mxu0 %v1244
    %v3906 = vpop.f32.mrb[0].mxu0
    %v3907 = vadd.f32 %v3714, %v3906
    %v3908 = vpop.f32.mrb[0].mxu0
    %v3909 = vadd.f32 %v3716, %v3908
    %v3910 = vpop.f32.mrb[0].mxu0
    %v3911 = vadd.f32 %v3718, %v3910
    %v3912 = vpop.f32.mrb[0].mxu0
    %v3913 = vadd.f32 %v3720, %v3912
    %3914 = vmatprep.mubr.bf16.mxu0 %v1453
    %3915 = vmatmul.mubr.bf16.gmra.mrb[0].mxu0 %v1245
    %v3916 = vpop.f32.mrb[0].mxu0
    %v3917 = vadd.f32 %v3724, %v3916
    %v3918 = vpop.f32.mrb[0].mxu0
    %v3919 = vadd.f32 %v3726, %v3918
    %v3920 = vpop.f32.mrb[0].mxu0
    %v3921 = vadd.f32 %v3728, %v3920
    %v3922 = vpop.f32.mrb[0].mxu0
    %v3923 = vadd.f32 %v3730, %v3922
    %3924 = vmatprep.mubr.bf16.mxu0 %v1454
    %3925 = vmatmul.mubr.bf16.gmra.mrb[0].mxu0 %v1246
    %v3926 = vpop.f32.mrb[0].mxu0
    %v3927 = vadd.f32 %v3734, %v3926
    %v3928 = vpop.f32.mrb[0].mxu0
    %v3929 = vadd.f32 %v3736, %v3928
    %v3930 = vpop.f32.mrb[0].mxu0
    %v3931 = vadd.f32 %v3738, %v3930
    %v3932 = vpop.f32.mrb[0].mxu0
    %v3933 = vadd.f32 %v3740, %v3932
    %3934 = vmatprep.mubr.bf16.mxu0 %v1455
    %3935 = vmatmul.mubr.bf16.gmra.mrb[0].mxu0 %v1247
    %v3936 = vpop.f32.mrb[0].mxu0
    %v3937 = vadd.f32 %v3744, %v3936
    %v3938 = vpop.f32.mrb[0].mxu0
    %v3939 = vadd.f32 %v3746, %v3938
    %v3940 = vpop.f32.mrb[0].mxu0
    %v3941 = vadd.f32 %v3748, %v3940
    %v3942 = vpop.f32.mrb[0].mxu0
    %v3943 = vadd.f32 %v3750, %v3942
    %3944 = vmatprep.mubr.bf16.mxu0 %v1456
    %3945 = vmatmul.mubr.bf16.gmra.mrb[0].mxu0 %v1248
    %v3946 = vpop.f32.mrb[0].mxu0
    %v3947 = vadd.f32 %v3754, %v3946
    %v3948 = vpop.f32.mrb[0].mxu0
    %v3949 = vadd.f32 %v3756, %v3948
    %v3950 = vpop.f32.mrb[0].mxu0
    %v3951 = vadd.f32 %v3758, %v3950
    %v3952 = vpop.f32.mrb[0].mxu0
    %v3953 = vadd.f32 %v3760, %v3952
    %3954 = vmatprep.mubr.bf16.mxu0 %v1457
    %3955 = vmatmul.mubr.bf16.gmra.mrb[0].mxu0 %v1249
    %v3956 = vpop.f32.mrb[0].mxu0
    %v3957 = vadd.f32 %v3764, %v3956
    %v3958 = vpop.f32.mrb[0].mxu0
    %v3959 = vadd.f32 %v3766, %v3958
    %v3960 = vpop.f32.mrb[0].mxu0
    %v3961 = vadd.f32 %v3768, %v3960
    %v3962 = vpop.f32.mrb[0].mxu0
    %v3963 = vadd.f32 %v3770, %v3962
    %3964 = vmatprep.mubr.bf16.mxu0 %v1458
    %3965 = vmatmul.mubr.bf16.gmra.mrb[0].mxu0 %v1250
    %v3966 = vpop.f32.mrb[0].mxu0
    %v3967 = vadd.f32 %v3774, %v3966
    %v3968 = vpop.f32.mrb[0].mxu0
    %v3969 = vadd.f32 %v3776, %v3968
    %v3970 = vpop.f32.mrb[0].mxu0
    %v3971 = vadd.f32 %v3778, %v3970
    %v3972 = vpop.f32.mrb[0].mxu0
    %v3973 = vadd.f32 %v3780, %v3972
    %3974 = vmatprep.mubr.bf16.mxu0 %v1459
    %3975 = vmatmul.mubr.bf16.gmra.mrb[0].mxu0 %v1251
    %v3976 = vpop.f32.mrb[0].mxu0
    %v3977 = vadd.f32 %v3784, %v3976
    %v3978 = vpop.f32.mrb[0].mxu0
    %v3979 = vadd.f32 %v3786, %v3978
    %v3980 = vpop.f32.mrb[0].mxu0
    %v3981 = vadd.f32 %v3788, %v3980
    %v3982 = vpop.f32.mrb[0].mxu0
    %v3983 = vadd.f32 %v3790, %v3982
    %3984 = vdwg.mxu0
    %v3985 = vmax.f32 %v3248, 0.0
    %v3986 = vmax.f32 %v3250, 0.0
    %v3987 = vmax.f32 %v3827, 0.0
    %v3988 = vmax.f32 %v3829, 0.0
    %v3989 = vmax.f32 %v3252, 0.0
    %v3990 = vmax.f32 %v3254, 0.0
    %v3991 = vmax.f32 %v3831, 0.0
    %v3992 = vmax.f32 %v3833, 0.0
    %v3993 = vmax.f32 %v3258, 0.0
    %v3994 = vmax.f32 %v3260, 0.0
    %v3995 = vmax.f32 %v3837, 0.0
    %v3996 = vmax.f32 %v3839, 0.0
    %v3997 = vmax.f32 %v3262, 0.0
    %v3998 = vmax.f32 %v3264, 0.0
    %v3999 = vmax.f32 %v3841, 0.0
    %v4000 = vmax.f32 %v3843, 0.0
    %v4001 = vmax.f32 %v3268, 0.0
    %v4002 = vmax.f32 %v3270, 0.0
    %v4003 = vmax.f32 %v3847, 0.0
    %v4004 = vmax.f32 %v3849, 0.0
    %v4005 = vmax.f32 %v3272, 0.0
    %v4006 = vmax.f32 %v3274, 0.0
    %v4007 = vmax.f32 %v3851, 0.0
    %v4008 = vmax.f32 %v3853, 0.0
    %v4009 = vmax.f32 %v3278, 0.0
    %v4010 = vmax.f32 %v3280, 0.0
    %v4011 = vmax.f32 %v3857, 0.0
    %v4012 = vmax.f32 %v3859, 0.0
    %v4013 = vmax.f32 %v3282, 0.0
    %v4014 = vmax.f32 %v3284, 0.0
    %v4015 = vmax.f32 %v3861, 0.0
    %v4016 = vmax.f32 %v3863, 0.0
    %v4017 = vmax.f32 %v3288, 0.0
    %v4018 = vmax.f32 %v3290, 0.0
    %v4019 = vmax.f32 %v3867, 0.0
    %v4020 = vmax.f32 %v3869, 0.0
    %v4021 = vmax.f32 %v3292, 0.0
    %v4022 = vmax.f32 %v3294, 0.0
    %v4023 = vmax.f32 %v3871, 0.0
    %v4024 = vmax.f32 %v3873, 0.0
    %v4025 = vmax.f32 %v3298, 0.0
    %v4026 = vmax.f32 %v3300, 0.0
    %v4027 = vmax.f32 %v3877, 0.0
    %v4028 = vmax.f32 %v3879, 0.0
    %v4029 = vmax.f32 %v3302, 0.0
    %v4030 = vmax.f32 %v3304, 0.0
    %v4031 = vmax.f32 %v3881, 0.0
    %v4032 = vmax.f32 %v3883, 0.0
    %v4033 = vmax.f32 %v3308, 0.0
    %v4034 = vmax.f32 %v3310, 0.0
    %v4035 = vmax.f32 %v3887, 0.0
    %v4036 = vmax.f32 %v3889, 0.0
    %v4037 = vmax.f32 %v3312, 0.0
    %v4038 = vmax.f32 %v3314, 0.0
    %v4039 = vmax.f32 %v3891, 0.0
    %v4040 = vmax.f32 %v3893, 0.0
    %v4041 = vmax.f32 %v3318, 0.0
    %v4042 = vmax.f32 %v3320, 0.0
    %v4043 = vmax.f32 %v3897, 0.0
    %v4044 = vmax.f32 %v3899, 0.0
    %v4045 = vmax.f32 %v3322, 0.0
    %v4046 = vmax.f32 %v3324, 0.0
    %v4047 = vmax.f32 %v3901, 0.0
    %v4048 = vmax.f32 %v3903, 0.0
    %v4049 = vmax.f32 %v3328, 0.0
    %v4050 = vmax.f32 %v3330, 0.0
    %v4051 = vmax.f32 %v3907, 0.0
    %v4052 = vmax.f32 %v3909, 0.0
    %v4053 = vmax.f32 %v3332, 0.0
    %v4054 = vmax.f32 %v3334, 0.0
    %v4055 = vmax.f32 %v3911, 0.0
    %v4056 = vmax.f32 %v3913, 0.0
    %v4057 = vmax.f32 %v3338, 0.0
    %v4058 = vmax.f32 %v3340, 0.0
    %v4059 = vmax.f32 %v3917, 0.0
    %v4060 = vmax.f32 %v3919, 0.0
    %v4061 = vmax.f32 %v3342, 0.0
    %v4062 = vmax.f32 %v3344, 0.0
    %v4063 = vmax.f32 %v3921, 0.0
    %v4064 = vmax.f32 %v3923, 0.0
    %v4065 = vmax.f32 %v3348, 0.0
    %v4066 = vmax.f32 %v3350, 0.0
    %v4067 = vmax.f32 %v3927, 0.0
    %v4068 = vmax.f32 %v3929, 0.0
    %v4069 = vmax.f32 %v3352, 0.0
    %v4070 = vmax.f32 %v3354, 0.0
    %v4071 = vmax.f32 %v3931, 0.0
    %v4072 = vmax.f32 %v3933, 0.0
    %v4073 = vmax.f32 %v3358, 0.0
    %v4074 = vmax.f32 %v3360, 0.0
    %v4075 = vmax.f32 %v3937, 0.0
    %v4076 = vmax.f32 %v3939, 0.0
    %v4077 = vmax.f32 %v3362, 0.0
    %v4078 = vmax.f32 %v3364, 0.0
    %v4079 = vmax.f32 %v3941, 0.0
    %v4080 = vmax.f32 %v3943, 0.0
    %v4081 = vmax.f32 %v3368, 0.0
    %v4082 = vmax.f32 %v3370, 0.0
    %v4083 = vmax.f32 %v3947, 0.0
    %v4084 = vmax.f32 %v3949, 0.0
    %v4085 = vmax.f32 %v3372, 0.0
    %v4086 = vmax.f32 %v3374, 0.0
    %v4087 = vmax.f32 %v3951, 0.0
    %v4088 = vmax.f32 %v3953, 0.0
    %v4089 = vmax.f32 %v3378, 0.0
    %v4090 = vmax.f32 %v3380, 0.0
    %v4091 = vmax.f32 %v3957, 0.0
    %v4092 = vmax.f32 %v3959, 0.0
    %v4093 = vmax.f32 %v3382, 0.0
    %v4094 = vmax.f32 %v3384, 0.0
    %v4095 = vmax.f32 %v3961, 0.0
    %v4096 = vmax.f32 %v3963, 0.0
    %v4097 = vmax.f32 %v3388, 0.0
    %v4098 = vmax.f32 %v3390, 0.0
    %v4099 = vmax.f32 %v3967, 0.0
    %v4100 = vmax.f32 %v3969, 0.0
    %v4101 = vmax.f32 %v3392, 0.0
    %v4102 = vmax.f32 %v3394, 0.0
    %v4103 = vmax.f32 %v3971, 0.0
    %v4104 = vmax.f32 %v3973, 0.0
    %v4105 = vmax.f32 %v3398, 0.0
    %v4106 = vmax.f32 %v3400, 0.0
    %v4107 = vmax.f32 %v3977, 0.0
    %v4108 = vmax.f32 %v3979, 0.0
    %v4109 = vmax.f32 %v3402, 0.0
    %v4110 = vmax.f32 %v3404, 0.0
    %v4111 = vmax.f32 %v3981, 0.0
    %v4112 = vmax.f32 %v3983, 0.0
    %v4113 = vsel %vm1717, %v3985, 0.0
    %v4114 = vsel %vm1749, %v3986, 0.0
    %v4115 = vsel %vm1781, %v3987, 0.0
    %v4116 = vsel %vm1813, %v3988, 0.0
    %v4117 = vsel %vm1718, %v3989, 0.0
    %v4118 = vsel %vm1750, %v3990, 0.0
    %v4119 = vsel %vm1782, %v3991, 0.0
    %v4120 = vsel %vm1814, %v3992, 0.0
    %v4121 = vsel %vm1719, %v3993, 0.0
    %v4122 = vsel %vm1751, %v3994, 0.0
    %v4123 = vsel %vm1783, %v3995, 0.0
    %v4124 = vsel %vm1815, %v3996, 0.0
    %v4125 = vsel %vm1720, %v3997, 0.0
    %v4126 = vsel %vm1752, %v3998, 0.0
    %v4127 = vsel %vm1784, %v3999, 0.0
    %v4128 = vsel %vm1816, %v4000, 0.0
    %v4129 = vsel %vm1721, %v4001, 0.0
    %v4130 = vsel %vm1753, %v4002, 0.0
    %v4131 = vsel %vm1785, %v4003, 0.0
    %v4132 = vsel %vm1817, %v4004, 0.0
    %v4133 = vsel %vm1722, %v4005, 0.0
    %v4134 = vsel %vm1754, %v4006, 0.0
    %v4135 = vsel %vm1786, %v4007, 0.0
    %v4136 = vsel %vm1818, %v4008, 0.0
    %v4137 = vsel %vm1723, %v4009, 0.0
    %v4138 = vsel %vm1755, %v4010, 0.0
    %v4139 = vsel %vm1787, %v4011, 0.0
    %v4140 = vsel %vm1819, %v4012, 0.0
    %v4141 = vsel %vm1724, %v4013, 0.0
    %v4142 = vsel %vm1756, %v4014, 0.0
    %v4143 = vsel %vm1788, %v4015, 0.0
    %v4144 = vsel %vm1820, %v4016, 0.0
    %v4145 = vsel %vm1725, %v4017, 0.0
    %v4146 = vsel %vm1757, %v4018, 0.0
    %v4147 = vsel %vm1789, %v4019, 0.0
    %v4148 = vsel %vm1821, %v4020, 0.0
    %v4149 = vsel %vm1726, %v4021, 0.0
    %v4150 = vsel %vm1758, %v4022, 0.0
    %v4151 = vsel %vm1790, %v4023, 0.0
    %v4152 = vsel %vm1822, %v4024, 0.0
    %v4153 = vsel %vm1727, %v4025, 0.0
    %v4154 = vsel %vm1759, %v4026, 0.0
    %v4155 = vsel %vm1791, %v4027, 0.0
    %v4156 = vsel %vm1823, %v4028, 0.0
    %v4157 = vsel %vm1728, %v4029, 0.0
    %v4158 = vsel %vm1760, %v4030, 0.0
    %v4159 = vsel %vm1792, %v4031, 0.0
    %v4160 = vsel %vm1824, %v4032, 0.0
    %v4161 = vsel %vm1729, %v4033, 0.0
    %v4162 = vsel %vm1761, %v4034, 0.0
    %v4163 = vsel %vm1793, %v4035, 0.0
    %v4164 = vsel %vm1825, %v4036, 0.0
    %v4165 = vsel %vm1730, %v4037, 0.0
    %v4166 = vsel %vm1762, %v4038, 0.0
    %v4167 = vsel %vm1794, %v4039, 0.0
    %v4168 = vsel %vm1826, %v4040, 0.0
    %v4169 = vsel %vm1731, %v4041, 0.0
    %v4170 = vsel %vm1763, %v4042, 0.0
    %v4171 = vsel %vm1795, %v4043, 0.0
    %v4172 = vsel %vm1827, %v4044, 0.0
    %v4173 = vsel %vm1732, %v4045, 0.0
    %v4174 = vsel %vm1764, %v4046, 0.0
    %v4175 = vsel %vm1796, %v4047, 0.0
    %v4176 = vsel %vm1828, %v4048, 0.0
    %v4177 = vsel %vm1733, %v4049, 0.0
    %v4178 = vsel %vm1765, %v4050, 0.0
    %v4179 = vsel %vm1797, %v4051, 0.0
    %v4180 = vsel %vm1829, %v4052, 0.0
    %v4181 = vsel %vm1734, %v4053, 0.0
    %v4182 = vsel %vm1766, %v4054, 0.0
    %v4183 = vsel %vm1798, %v4055, 0.0
    %v4184 = vsel %vm1830, %v4056, 0.0
    %v4185 = vsel %vm1735, %v4057, 0.0
    %v4186 = vsel %vm1767, %v4058, 0.0
    %v4187 = vsel %vm1799, %v4059, 0.0
    %v4188 = vsel %vm1831, %v4060, 0.0
    %v4189 = vsel %vm1736, %v4061, 0.0
    %v4190 = vsel %vm1768, %v4062, 0.0
    %v4191 = vsel %vm1800, %v4063, 0.0
    %v4192 = vsel %vm1832, %v4064, 0.0
    %v4193 = vsel %vm1737, %v4065, 0.0
    %v4194 = vsel %vm1769, %v4066, 0.0
    %v4195 = vsel %vm1801, %v4067, 0.0
    %v4196 = vsel %vm1833, %v4068, 0.0
    %v4197 = vsel %vm1738, %v4069, 0.0
    %v4198 = vsel %vm1770, %v4070, 0.0
    %v4199 = vsel %vm1802, %v4071, 0.0
    %v4200 = vsel %vm1834, %v4072, 0.0
    %v4201 = vsel %vm1739, %v4073, 0.0
    %v4202 = vsel %vm1771, %v4074, 0.0
    %v4203 = vsel %vm1803, %v4075, 0.0
    %v4204 = vsel %vm1835, %v4076, 0.0
    %v4205 = vsel %vm1740, %v4077, 0.0
    %v4206 = vsel %vm1772, %v4078, 0.0
    %v4207 = vsel %vm1804, %v4079, 0.0
    %v4208 = vsel %vm1836, %v4080, 0.0
    %v4209 = vsel %vm1741, %v4081, 0.0
    %v4210 = vsel %vm1773, %v4082, 0.0
    %v4211 = vsel %vm1805, %v4083, 0.0
    %v4212 = vsel %vm1837, %v4084, 0.0
    %v4213 = vsel %vm1742, %v4085, 0.0
    %v4214 = vsel %vm1774, %v4086, 0.0
    %v4215 = vsel %vm1806, %v4087, 0.0
    %v4216 = vsel %vm1838, %v4088, 0.0
    %v4217 = vsel %vm1743, %v4089, 0.0
    %v4218 = vsel %vm1775, %v4090, 0.0
    %v4219 = vsel %vm1807, %v4091, 0.0
    %v4220 = vsel %vm1839, %v4092, 0.0
    %v4221 = vsel %vm1744, %v4093, 0.0
    %v4222 = vsel %vm1776, %v4094, 0.0
    %v4223 = vsel %vm1808, %v4095, 0.0
    %v4224 = vsel %vm1840, %v4096, 0.0
    %v4225 = vsel %vm1745, %v4097, 0.0
    %v4226 = vsel %vm1777, %v4098, 0.0
    %v4227 = vsel %vm1809, %v4099, 0.0
    %v4228 = vsel %vm1841, %v4100, 0.0
    %v4229 = vsel %vm1746, %v4101, 0.0
    %v4230 = vsel %vm1778, %v4102, 0.0
    %v4231 = vsel %vm1810, %v4103, 0.0
    %v4232 = vsel %vm1842, %v4104, 0.0
    %v4233 = vsel %vm1747, %v4105, 0.0
    %v4234 = vsel %vm1779, %v4106, 0.0
    %v4235 = vsel %vm1811, %v4107, 0.0
    %v4236 = vsel %vm1843, %v4108, 0.0
    %v4237 = vsel %vm1748, %v4109, 0.0
    %v4238 = vsel %vm1780, %v4110, 0.0
    %v4239 = vsel %vm1812, %v4111, 0.0
    %v4240 = vsel %vm1844, %v4112, 0.0
    %v4241 = vmax.f32 %v4113, %v4117
    %v4242 = vmax.f32 %v4241, %v4121
    %v4243 = vmax.f32 %v4242, %v4125
    %v4244 = vmax.f32 %v4243, %v4129
    %v4245 = vmax.f32 %v4244, %v4133
    %v4246 = vmax.f32 %v4245, %v4137
    %v4247 = vmax.f32 %v4246, %v4141
    %v4248 = vmax.f32 %v4247, %v4145
    %v4249 = vmax.f32 %v4248, %v4149
    %v4250 = vmax.f32 %v4249, %v4153
    %v4251 = vmax.f32 %v4250, %v4157
    %v4252 = vmax.f32 %v4251, %v4161
    %v4253 = vmax.f32 %v4252, %v4165
    %v4254 = vmax.f32 %v4253, %v4169
    %v4255 = vmax.f32 %v4254, %v4173
    %v4256 = vrot.slane %v4255, 4
    %v4257 = vmax.f32 %v4255, %v4256
    %v4258 = vrot.slane %v4257, 2
    %v4259 = vmax.f32 %v4257, %v4258
    %v4260 = vrot.slane %v4259, 1
    %v4261 = vmax.f32 %v4259, %v4260
    %v4262 = vmax.f32 %v4114, %v4118
    %v4263 = vmax.f32 %v4262, %v4122
    %v4264 = vmax.f32 %v4263, %v4126
    %v4265 = vmax.f32 %v4264, %v4130
    %v4266 = vmax.f32 %v4265, %v4134
    %v4267 = vmax.f32 %v4266, %v4138
    %v4268 = vmax.f32 %v4267, %v4142
    %v4269 = vmax.f32 %v4268, %v4146
    %v4270 = vmax.f32 %v4269, %v4150
    %v4271 = vmax.f32 %v4270, %v4154
    %v4272 = vmax.f32 %v4271, %v4158
    %v4273 = vmax.f32 %v4272, %v4162
    %v4274 = vmax.f32 %v4273, %v4166
    %v4275 = vmax.f32 %v4274, %v4170
    %v4276 = vmax.f32 %v4275, %v4174
    %v4277 = vrot.slane %v4276, 4
    %v4278 = vmax.f32 %v4276, %v4277
    %v4279 = vrot.slane %v4278, 2
    %v4280 = vmax.f32 %v4278, %v4279
    %v4281 = vrot.slane %v4280, 1
    %v4282 = vmax.f32 %v4280, %v4281
    %v4283 = vmax.f32 %v4115, %v4119
    %v4284 = vmax.f32 %v4283, %v4123
    %v4285 = vmax.f32 %v4284, %v4127
    %v4286 = vmax.f32 %v4285, %v4131
    %v4287 = vmax.f32 %v4286, %v4135
    %v4288 = vmax.f32 %v4287, %v4139
    %v4289 = vmax.f32 %v4288, %v4143
    %v4290 = vmax.f32 %v4289, %v4147
    %v4291 = vmax.f32 %v4290, %v4151
    %v4292 = vmax.f32 %v4291, %v4155
    %v4293 = vmax.f32 %v4292, %v4159
    %v4294 = vmax.f32 %v4293, %v4163
    %v4295 = vmax.f32 %v4294, %v4167
    %v4296 = vmax.f32 %v4295, %v4171
    %v4297 = vmax.f32 %v4296, %v4175
    %v4298 = vrot.slane %v4297, 4
    %v4299 = vmax.f32 %v4297, %v4298
    %v4300 = vrot.slane %v4299, 2
    %v4301 = vmax.f32 %v4299, %v4300
    %v4302 = vrot.slane %v4301, 1
    %v4303 = vmax.f32 %v4301, %v4302
    %v4304 = vmax.f32 %v4116, %v4120
    %v4305 = vmax.f32 %v4304, %v4124
    %v4306 = vmax.f32 %v4305, %v4128
    %v4307 = vmax.f32 %v4306, %v4132
    %v4308 = vmax.f32 %v4307, %v4136
    %v4309 = vmax.f32 %v4308, %v4140
    %v4310 = vmax.f32 %v4309, %v4144
    %v4311 = vmax.f32 %v4310, %v4148
    %v4312 = vmax.f32 %v4311, %v4152
    %v4313 = vmax.f32 %v4312, %v4156
    %v4314 = vmax.f32 %v4313, %v4160
    %v4315 = vmax.f32 %v4314, %v4164
    %v4316 = vmax.f32 %v4315, %v4168
    %v4317 = vmax.f32 %v4316, %v4172
    %v4318 = vmax.f32 %v4317, %v4176
    %v4319 = vrot.slane %v4318, 4
    %v4320 = vmax.f32 %v4318, %v4319
    %v4321 = vrot.slane %v4320, 2
    %v4322 = vmax.f32 %v4320, %v4321
    %v4323 = vrot.slane %v4322, 1
    %v4324 = vmax.f32 %v4322, %v4323
    %v4325 = vmax.f32 %v4177, %v4181
    %v4326 = vmax.f32 %v4325, %v4185
    %v4327 = vmax.f32 %v4326, %v4189
    %v4328 = vmax.f32 %v4327, %v4193
    %v4329 = vmax.f32 %v4328, %v4197
    %v4330 = vmax.f32 %v4329, %v4201
    %v4331 = vmax.f32 %v4330, %v4205
    %v4332 = vmax.f32 %v4331, %v4209
    %v4333 = vmax.f32 %v4332, %v4213
    %v4334 = vmax.f32 %v4333, %v4217
    %v4335 = vmax.f32 %v4334, %v4221
    %v4336 = vmax.f32 %v4335, %v4225
    %v4337 = vmax.f32 %v4336, %v4229
    %v4338 = vmax.f32 %v4337, %v4233
    %v4339 = vmax.f32 %v4338, %v4237
    %v4340 = vrot.slane %v4339, 4
    %v4341 = vmax.f32 %v4339, %v4340
    %v4342 = vrot.slane %v4341, 2
    %v4343 = vmax.f32 %v4341, %v4342
    %v4344 = vrot.slane %v4343, 1
    %v4345 = vmax.f32 %v4343, %v4344
    %v4346 = vmax.f32 %v4178, %v4182
    %v4347 = vmax.f32 %v4346, %v4186
    %v4348 = vmax.f32 %v4347, %v4190
    %v4349 = vmax.f32 %v4348, %v4194
    %v4350 = vmax.f32 %v4349, %v4198
    %v4351 = vmax.f32 %v4350, %v4202
    %v4352 = vmax.f32 %v4351, %v4206
    %v4353 = vmax.f32 %v4352, %v4210
    %v4354 = vmax.f32 %v4353, %v4214
    %v4355 = vmax.f32 %v4354, %v4218
    %v4356 = vmax.f32 %v4355, %v4222
    %v4357 = vmax.f32 %v4356, %v4226
    %v4358 = vmax.f32 %v4357, %v4230
    %v4359 = vmax.f32 %v4358, %v4234
    %v4360 = vmax.f32 %v4359, %v4238
    %v4361 = vrot.slane %v4360, 4
    %v4362 = vmax.f32 %v4360, %v4361
    %v4363 = vrot.slane %v4362, 2
    %v4364 = vmax.f32 %v4362, %v4363
    %v4365 = vrot.slane %v4364, 1
    %v4366 = vmax.f32 %v4364, %v4365
    %v4367 = vmax.f32 %v4179, %v4183
    %v4368 = vmax.f32 %v4367, %v4187
    %v4369 = vmax.f32 %v4368, %v4191
    %v4370 = vmax.f32 %v4369, %v4195
    %v4371 = vmax.f32 %v4370, %v4199
    %v4372 = vmax.f32 %v4371, %v4203
    %v4373 = vmax.f32 %v4372, %v4207
    %v4374 = vmax.f32 %v4373, %v4211
    %v4375 = vmax.f32 %v4374, %v4215
    %v4376 = vmax.f32 %v4375, %v4219
    %v4377 = vmax.f32 %v4376, %v4223
    %v4378 = vmax.f32 %v4377, %v4227
    %v4379 = vmax.f32 %v4378, %v4231
    %v4380 = vmax.f32 %v4379, %v4235
    %v4381 = vmax.f32 %v4380, %v4239
    %v4382 = vrot.slane %v4381, 4
    %v4383 = vmax.f32 %v4381, %v4382
    %v4384 = vrot.slane %v4383, 2
    %v4385 = vmax.f32 %v4383, %v4384
    %v4386 = vrot.slane %v4385, 1
    %v4387 = vmax.f32 %v4385, %v4386
    %v4388 = vmax.f32 %v4180, %v4184
    %v4389 = vmax.f32 %v4388, %v4188
    %v4390 = vmax.f32 %v4389, %v4192
    %v4391 = vmax.f32 %v4390, %v4196
    %v4392 = vmax.f32 %v4391, %v4200
    %v4393 = vmax.f32 %v4392, %v4204
    %v4394 = vmax.f32 %v4393, %v4208
    %v4395 = vmax.f32 %v4394, %v4212
    %v4396 = vmax.f32 %v4395, %v4216
    %v4397 = vmax.f32 %v4396, %v4220
    %v4398 = vmax.f32 %v4397, %v4224
    %v4399 = vmax.f32 %v4398, %v4228
    %v4400 = vmax.f32 %v4399, %v4232
    %v4401 = vmax.f32 %v4400, %v4236
    %v4402 = vmax.f32 %v4401, %v4240
    %v4403 = vrot.slane %v4402, 4
    %v4404 = vmax.f32 %v4402, %v4403
    %v4405 = vrot.slane %v4404, 2
    %v4406 = vmax.f32 %v4404, %v4405
    %v4407 = vrot.slane %v4406, 1
    %v4408 = vmax.f32 %v4406, %v4407
    %vm4409 = vcmask 1040384
    %v4410 = vsel %vm4409, %v4261, %v4345
    %v4411 = vsel %vm4409, %v4282, %v4366
    %v4412 = vsel %vm4409, %v4303, %v4387
    %v4413 = vsel %vm4409, %v4324, %v4408
    %s4414 = smul.u32 4, 64
    %s4415 = smul.u32 %s4414, 4
    %s4416 = sshll.u32 %s4415, 4
    %4417 = dma.done [#allocation4], %s4416
    %s4418 = smul.u32 %s4414, 1
    %s4419 = sshll.u32 %s4418, 4
    %4420 = dma.done %s73, %s4419
    %v4421 = vpack.c.bf16 %v4410, %v4410
    %v4422 = vpack.c.bf16 %v4411, %v4411
    %v4423 = vpack.c.bf16 %v4412, %v4412
    %v4424 = vpack.c.bf16 %v4413, %v4413
    %v4425 = vld [vmem:[#allocation2] sm:$0xff]
    %v4426 = vld [vmem:[#allocation2 + $0x8] sm:$0xff]
    %v4427 = vld [vmem:[#allocation2 + $0x10] sm:$0xff]
    %v4428 = vld [vmem:[#allocation2 + $0x18] sm:$0xff]
    %v4429 = vld [vmem:[#allocation2 + $0x20] sm:$0xff]
    %v4430 = vld [vmem:[#allocation2 + $0x28] sm:$0xff]
    %v4431 = vld [vmem:[#allocation2 + $0x30] sm:$0xff]
    %v4432 = vld [vmem:[#allocation2 + $0x38] sm:$0xff]
    %v4433 = vld [vmem:[#allocation2 + $0x40] sm:$0xff]
    %v4434 = vld [vmem:[#allocation2 + $0x48] sm:$0xff]
    %v4435 = vld [vmem:[#allocation2 + $0x50] sm:$0xff]
    %v4436 = vld [vmem:[#allocation2 + $0x58] sm:$0xff]
    %v4437 = vld [vmem:[#allocation2 + $0x60] sm:$0xff]
    %v4438 = vld [vmem:[#allocation2 + $0x68] sm:$0xff]
    %v4439 = vld [vmem:[#allocation2 + $0x70] sm:$0xff]
    %v4440 = vld [vmem:[#allocation2 + $0x78] sm:$0xff]
    %v4441 = vld [vmem:[#allocation2 + $0x80] sm:$0xff]
    %v4442 = vld [vmem:[#allocation2 + $0x88] sm:$0xff]
    %v4443 = vld [vmem:[#allocation2 + $0x90] sm:$0xff]
    %v4444 = vld [vmem:[#allocation2 + $0x98] sm:$0xff]
    %v4445 = vld [vmem:[#allocation2 + $0xa0] sm:$0xff]
    %v4446 = vld [vmem:[#allocation2 + $0xa8] sm:$0xff]
    %v4447 = vld [vmem:[#allocation2 + $0xb0] sm:$0xff]
    %v4448 = vld [vmem:[#allocation2 + $0xb8] sm:$0xff]
    %v4449 = vld [vmem:[#allocation2 + $0xc0] sm:$0xff]
    %v4450 = vld [vmem:[#allocation2 + $0xc8] sm:$0xff]
    %v4451 = vld [vmem:[#allocation2 + $0xd0] sm:$0xff]
    %v4452 = vld [vmem:[#allocation2 + $0xd8] sm:$0xff]
    %v4453 = vld [vmem:[#allocation2 + $0xe0] sm:$0xff]
    %v4454 = vld [vmem:[#allocation2 + $0xe8] sm:$0xff]
    %v4455 = vld [vmem:[#allocation2 + $0xf0] sm:$0xff]
    %v4456 = vld [vmem:[#allocation2 + $0xf8] sm:$0xff]
    %v4457 = vld [vmem:[#allocation2 + $0x100] sm:$0xff]
    %v4458 = vld [vmem:[#allocation2 + $0x108] sm:$0xff]
    %v4459 = vld [vmem:[#allocation2 + $0x110] sm:$0xff]
    %v4460 = vld [vmem:[#allocation2 + $0x118] sm:$0xff]
    %v4461 = vld [vmem:[#allocation2 + $0x120] sm:$0xff]
    %v4462 = vld [vmem:[#allocation2 + $0x128] sm:$0xff]
    %v4463 = vld [vmem:[#allocation2 + $0x130] sm:$0xff]
    %v4464 = vld [vmem:[#allocation2 + $0x138] sm:$0xff]
    %v4465 = vld [vmem:[#allocation2 + $0x140] sm:$0xff]
    %v4466 = vld [vmem:[#allocation2 + $0x148] sm:$0xff]
    %v4467 = vld [vmem:[#allocation2 + $0x150] sm:$0xff]
    %v4468 = vld [vmem:[#allocation2 + $0x158] sm:$0xff]
    %v4469 = vld [vmem:[#allocation2 + $0x160] sm:$0xff]
    %v4470 = vld [vmem:[#allocation2 + $0x168] sm:$0xff]
    %v4471 = vld [vmem:[#allocation2 + $0x170] sm:$0xff]
    %v4472 = vld [vmem:[#allocation2 + $0x178] sm:$0xff]
    %v4473 = vld [vmem:[#allocation2 + $0x180] sm:$0xff]
    %v4474 = vld [vmem:[#allocation2 + $0x188] sm:$0xff]
    %v4475 = vld [vmem:[#allocation2 + $0x190] sm:$0xff]
    %v4476 = vld [vmem:[#allocation2 + $0x198] sm:$0xff]
    %v4477 = vld [vmem:[#allocation2 + $0x1a0] sm:$0xff]
    %v4478 = vld [vmem:[#allocation2 + $0x1a8] sm:$0xff]
    %v4479 = vld [vmem:[#allocation2 + $0x1b0] sm:$0xff]
    %v4480 = vld [vmem:[#allocation2 + $0x1b8] sm:$0xff]
    %v4481 = vld [vmem:[#allocation2 + $0x1c0] sm:$0xff]
    %v4482 = vld [vmem:[#allocation2 + $0x1c8] sm:$0xff]
    %v4483 = vld [vmem:[#allocation2 + $0x1d0] sm:$0xff]
    %v4484 = vld [vmem:[#allocation2 + $0x1d8] sm:$0xff]
    %v4485 = vld [vmem:[#allocation2 + $0x1e0] sm:$0xff]
    %v4486 = vld [vmem:[#allocation2 + $0x1e8] sm:$0xff]
    %v4487 = vld [vmem:[#allocation2 + $0x1f0] sm:$0xff]
    %v4488 = vld [vmem:[#allocation2 + $0x1f8] sm:$0xff]
    %v4489 = vld [vmem:[#allocation2 + $0x200] sm:$0xff]
    %v4490 = vld [vmem:[#allocation2 + $0x208] sm:$0xff]
    %v4491 = vld [vmem:[#allocation2 + $0x210] sm:$0xff]
    %v4492 = vld [vmem:[#allocation2 + $0x218] sm:$0xff]
    %v4493 = vld [vmem:[#allocation2 + $0x220] sm:$0xff]
    %v4494 = vld [vmem:[#allocation2 + $0x228] sm:$0xff]
    %v4495 = vld [vmem:[#allocation2 + $0x230] sm:$0xff]
    %v4496 = vld [vmem:[#allocation2 + $0x238] sm:$0xff]
    %v4497 = vld [vmem:[#allocation2 + $0x240] sm:$0xff]
    %v4498 = vld [vmem:[#allocation2 + $0x248] sm:$0xff]
    %v4499 = vld [vmem:[#allocation2 + $0x250] sm:$0xff]
    %v4500 = vld [vmem:[#allocation2 + $0x258] sm:$0xff]
    %v4501 = vld [vmem:[#allocation2 + $0x260] sm:$0xff]
    %v4502 = vld [vmem:[#allocation2 + $0x268] sm:$0xff]
    %v4503 = vld [vmem:[#allocation2 + $0x270] sm:$0xff]
    %v4504 = vld [vmem:[#allocation2 + $0x278] sm:$0xff]
    %v4505 = vld [vmem:[#allocation2 + $0x280] sm:$0xff]
    %v4506 = vld [vmem:[#allocation2 + $0x288] sm:$0xff]
    %v4507 = vld [vmem:[#allocation2 + $0x290] sm:$0xff]
    %v4508 = vld [vmem:[#allocation2 + $0x298] sm:$0xff]
    %v4509 = vld [vmem:[#allocation2 + $0x2a0] sm:$0xff]
    %v4510 = vld [vmem:[#allocation2 + $0x2a8] sm:$0xff]
    %v4511 = vld [vmem:[#allocation2 + $0x2b0] sm:$0xff]
    %v4512 = vld [vmem:[#allocation2 + $0x2b8] sm:$0xff]
    %v4513 = vld [vmem:[#allocation2 + $0x2c0] sm:$0xff]
    %v4514 = vld [vmem:[#allocation2 + $0x2c8] sm:$0xff]
    %v4515 = vld [vmem:[#allocation2 + $0x2d0] sm:$0xff]
    %v4516 = vld [vmem:[#allocation2 + $0x2d8] sm:$0xff]
    %v4517 = vld [vmem:[#allocation2 + $0x2e0] sm:$0xff]
    %v4518 = vld [vmem:[#allocation2 + $0x2e8] sm:$0xff]
    %v4519 = vld [vmem:[#allocation2 + $0x2f0] sm:$0xff]
    %v4520 = vld [vmem:[#allocation2 + $0x2f8] sm:$0xff]
    %v4521 = vld [vmem:[#allocation2 + $0x300] sm:$0xff]
    %v4522 = vld [vmem:[#allocation2 + $0x308] sm:$0xff]
    %v4523 = vld [vmem:[#allocation2 + $0x310] sm:$0xff]
    %v4524 = vld [vmem:[#allocation2 + $0x318] sm:$0xff]
    %v4525 = vld [vmem:[#allocation2 + $0x320] sm:$0xff]
    %v4526 = vld [vmem:[#allocation2 + $0x328] sm:$0xff]
    %v4527 = vld [vmem:[#allocation2 + $0x330] sm:$0xff]
    %v4528 = vld [vmem:[#allocation2 + $0x338] sm:$0xff]
    %v4529 = vld [vmem:[#allocation2 + $0x340] sm:$0xff]
    %v4530 = vld [vmem:[#allocation2 + $0x348] sm:$0xff]
    %v4531 = vld [vmem:[#allocation2 + $0x350] sm:$0xff]
    %v4532 = vld [vmem:[#allocation2 + $0x358] sm:$0xff]
    %v4533 = vld [vmem:[#allocation2 + $0x360] sm:$0xff]
    %v4534 = vld [vmem:[#allocation2 + $0x368] sm:$0xff]
    %v4535 = vld [vmem:[#allocation2 + $0x370] sm:$0xff]
    %v4536 = vld [vmem:[#allocation2 + $0x378] sm:$0xff]
    %v4537 = vld [vmem:[#allocation2 + $0x380] sm:$0xff]
    %v4538 = vld [vmem:[#allocation2 + $0x388] sm:$0xff]
    %v4539 = vld [vmem:[#allocation2 + $0x390] sm:$0xff]
    %v4540 = vld [vmem:[#allocation2 + $0x398] sm:$0xff]
    %v4541 = vld [vmem:[#allocation2 + $0x3a0] sm:$0xff]
    %v4542 = vld [vmem:[#allocation2 + $0x3a8] sm:$0xff]
    %v4543 = vld [vmem:[#allocation2 + $0x3b0] sm:$0xff]
    %v4544 = vld [vmem:[#allocation2 + $0x3b8] sm:$0xff]
    %v4545 = vld [vmem:[#allocation2 + $0x3c0] sm:$0xff]
    %v4546 = vld [vmem:[#allocation2 + $0x3c8] sm:$0xff]
    %v4547 = vld [vmem:[#allocation2 + $0x3d0] sm:$0xff]
    %v4548 = vld [vmem:[#allocation2 + $0x3d8] sm:$0xff]
    %v4549 = vld [vmem:[#allocation2 + $0x3e0] sm:$0xff]
    %v4550 = vld [vmem:[#allocation2 + $0x3e8] sm:$0xff]
    %v4551 = vld [vmem:[#allocation2 + $0x3f0] sm:$0xff]
    %v4552 = vld [vmem:[#allocation2 + $0x3f8] sm:$0xff]
    %v4553 = vld [vmem:[%s4] sm:$0xf]
    %v4555 = vlaneseq
    %v4556 = vshrl.u32 %v4555, 7
    %v4557 = vsub.s32 0, %v4556
    %v4558 = vrot.slane %v4553, %v4557
    %v4559 = vlaneseq
    %v4560 = vshrl.u32 %v4559, 7
    %v4561 = vsub.s32 1, %v4560
    %v4562 = vrot.slane %v4553, %v4561
    %v4563 = vlaneseq
    %v4564 = vshrl.u32 %v4563, 7
    %v4565 = vsub.s32 2, %v4564
    %v4566 = vrot.slane %v4553, %v4565
    %v4567 = vlaneseq
    %v4568 = vshrl.u32 %v4567, 7
    %v4569 = vsub.s32 3, %v4568
    %v4570 = vrot.slane %v4553, %v4569
    %4575 = vmatprep.subr.bf16.mxu0 %v4426
    %4576 = vmatpush1.bf16.msra.mxu0 %v4425
    %4577 = vmatprep.subr.bf16.mxu0 %v4430
    %4578 = vmatpush1.bf16.msra.mxu0 %v4429
    %4579 = vmatprep.subr.bf16.mxu0 %v4434
    %4580 = vmatpush1.bf16.msra.mxu0 %v4433
    %4581 = vmatprep.subr.bf16.mxu0 %v4438
    %4582 = vmatpush1.bf16.msra.mxu0 %v4437
    %4583 = vmatprep.subr.bf16.mxu0 %v4442
    %4584 = vmatpush1.bf16.msra.mxu0 %v4441
    %4585 = vmatprep.subr.bf16.mxu0 %v4446
    %4586 = vmatpush1.bf16.msra.mxu0 %v4445
    %4587 = vmatprep.subr.bf16.mxu0 %v4450
    %4588 = vmatpush1.bf16.msra.mxu0 %v4449
    %4589 = vmatprep.subr.bf16.mxu0 %v4454
    %4590 = vmatpush1.bf16.msra.mxu0 %v4453
    %4591 = vmatprep.subr.bf16.mxu0 %v4458
    %4592 = vmatpush1.bf16.msra.mxu0 %v4457
    %4593 = vmatprep.subr.bf16.mxu0 %v4462
    %4594 = vmatpush1.bf16.msra.mxu0 %v4461
    %4595 = vmatprep.subr.bf16.mxu0 %v4466
    %4596 = vmatpush1.bf16.msra.mxu0 %v4465
    %4597 = vmatprep.subr.bf16.mxu0 %v4470
    %4598 = vmatpush1.bf16.msra.mxu0 %v4469
    %4599 = vmatprep.subr.bf16.mxu0 %v4474
    %4600 = vmatpush1.bf16.msra.mxu0 %v4473
    %4601 = vmatprep.subr.bf16.mxu0 %v4478
    %4602 = vmatpush1.bf16.msra.mxu0 %v4477
    %4603 = vmatprep.subr.bf16.mxu0 %v4482
    %4604 = vmatpush1.bf16.msra.mxu0 %v4481
    %4605 = vmatprep.subr.bf16.mxu0 %v4486
    %4606 = vmatpush1.bf16.msra.mxu0 %v4485
    %4607 = vmatprep.mubr.bf16.mxu0 %v4422
    %4608 = vmatmul.mubr.bf16.gmra.mrb[0].mxu0 %v4421
    %v4609 = vpop.f32.mrb[0].mxu0
    %v4610 = vadd.f32 %v4558, %v4609
    %v4611 = vpop.f32.mrb[0].mxu0
    %v4612 = vadd.f32 %v4562, %v4611
    %v4613 = vpop.f32.mrb[0].mxu0
    %v4614 = vpop.f32.mrb[0].mxu0
    %4615 = vdwg.mxu0
    %4616 = vmatprep.subr.bf16.mxu0 %v4490
    %4617 = vmatpush1.bf16.msra.mxu0 %v4489
    %4618 = vmatprep.subr.bf16.mxu0 %v4494
    %4619 = vmatpush1.bf16.msra.mxu0 %v4493
    %4620 = vmatprep.subr.bf16.mxu0 %v4498
    %4621 = vmatpush1.bf16.msra.mxu0 %v4497
    %4622 = vmatprep.subr.bf16.mxu0 %v4502
    %4623 = vmatpush1.bf16.msra.mxu0 %v4501
    %4624 = vmatprep.subr.bf16.mxu0 %v4506
    %4625 = vmatpush1.bf16.msra.mxu0 %v4505
    %4626 = vmatprep.subr.bf16.mxu0 %v4510
    %4627 = vmatpush1.bf16.msra.mxu0 %v4509
    %4628 = vmatprep.subr.bf16.mxu0 %v4514
    %4629 = vmatpush1.bf16.msra.mxu0 %v4513
    %4630 = vmatprep.subr.bf16.mxu0 %v4518
    %4631 = vmatpush1.bf16.msra.mxu0 %v4517
    %4632 = vmatprep.subr.bf16.mxu0 %v4522
    %4633 = vmatpush1.bf16.msra.mxu0 %v4521
    %4634 = vmatprep.subr.bf16.mxu0 %v4526
    %4635 = vmatpush1.bf16.msra.mxu0 %v4525
    %4636 = vmatprep.subr.bf16.mxu0 %v4530
    %4637 = vmatpush1.bf16.msra.mxu0 %v4529
    %4638 = vmatprep.subr.bf16.mxu0 %v4534
    %4639 = vmatpush1.bf16.msra.mxu0 %v4533
    %4640 = vmatprep.subr.bf16.mxu0 %v4538
    %4641 = vmatpush1.bf16.msra.mxu0 %v4537
    %4642 = vmatprep.subr.bf16.mxu0 %v4542
    %4643 = vmatpush1.bf16.msra.mxu0 %v4541
    %4644 = vmatprep.subr.bf16.mxu0 %v4546
    %4645 = vmatpush1.bf16.msra.mxu0 %v4545
    %4646 = vmatprep.subr.bf16.mxu0 %v4550
    %4647 = vmatpush1.bf16.msra.mxu0 %v4549
    %4648 = vmatprep.mubr.bf16.mxu0 %v4424
    %4649 = vmatmul.mubr.bf16.gmra.mrb[0].mxu0 %v4423
    %v4650 = vpop.f32.mrb[0].mxu0
    %v4651 = vadd.f32 %v4610, %v4650
    %v4652 = vpop.f32.mrb[0].mxu0
    %v4653 = vadd.f32 %v4612, %v4652
    %v4654 = vpop.f32.mrb[0].mxu0
    %v4655 = vpop.f32.mrb[0].mxu0
    %4656 = vdwg.mxu0
    %4657 = vmatprep.subr.bf16.mxu0 %v4428
    %4658 = vmatpush1.bf16.msra.mxu0 %v4427
    %4659 = vmatprep.subr.bf16.mxu0 %v4432
    %4660 = vmatpush1.bf16.msra.mxu0 %v4431
    %4661 = vmatprep.subr.bf16.mxu0 %v4436
    %4662 = vmatpush1.bf16.msra.mxu0 %v4435
    %4663 = vmatprep.subr.bf16.mxu0 %v4440
    %4664 = vmatpush1.bf16.msra.mxu0 %v4439
    %4665 = vmatprep.subr.bf16.mxu0 %v4444
    %4666 = vmatpush1.bf16.msra.mxu0 %v4443
    %4667 = vmatprep.subr.bf16.mxu0 %v4448
    %4668 = vmatpush1.bf16.msra.mxu0 %v4447
    %4669 = vmatprep.subr.bf16.mxu0 %v4452
    %4670 = vmatpush1.bf16.msra.mxu0 %v4451
    %4671 = vmatprep.subr.bf16.mxu0 %v4456
    %4672 = vmatpush1.bf16.msra.mxu0 %v4455
    %4673 = vmatprep.subr.bf16.mxu0 %v4460
    %4674 = vmatpush1.bf16.msra.mxu0 %v4459
    %4675 = vmatprep.subr.bf16.mxu0 %v4464
    %4676 = vmatpush1.bf16.msra.mxu0 %v4463
    %4677 = vmatprep.subr.bf16.mxu0 %v4468
    %4678 = vmatpush1.bf16.msra.mxu0 %v4467
    %4679 = vmatprep.subr.bf16.mxu0 %v4472
    %4680 = vmatpush1.bf16.msra.mxu0 %v4471
    %4681 = vmatprep.subr.bf16.mxu0 %v4476
    %4682 = vmatpush1.bf16.msra.mxu0 %v4475
    %4683 = vmatprep.subr.bf16.mxu0 %v4480
    %4684 = vmatpush1.bf16.msra.mxu0 %v4479
    %4685 = vmatprep.subr.bf16.mxu0 %v4484
    %4686 = vmatpush1.bf16.msra.mxu0 %v4483
    %4687 = vmatprep.subr.bf16.mxu0 %v4488
    %4688 = vmatpush1.bf16.msra.mxu0 %v4487
    %4689 = vmatprep.mubr.bf16.mxu0 %v4422
    %4690 = vmatmul.mubr.bf16.gmra.mrb[0].mxu0 %v4421
    %v4691 = vpop.f32.mrb[0].mxu0
    %v4692 = vadd.f32 %v4566, %v4691
    %v4693 = vpop.f32.mrb[0].mxu0
    %v4694 = vadd.f32 %v4570, %v4693
    %v4695 = vpop.f32.mrb[0].mxu0
    %v4696 = vpop.f32.mrb[0].mxu0
    %4697 = vdwg.mxu0
    %4698 = vmatprep.subr.bf16.mxu0 %v4492
    %4699 = vmatpush1.bf16.msra.mxu0 %v4491
    %4700 = vmatprep.subr.bf16.mxu0 %v4496
    %4701 = vmatpush1.bf16.msra.mxu0 %v4495
    %4702 = vmatprep.subr.bf16.mxu0 %v4500
    %4703 = vmatpush1.bf16.msra.mxu0 %v4499
    %4704 = vmatprep.subr.bf16.mxu0 %v4504
    %4705 = vmatpush1.bf16.msra.mxu0 %v4503
    %4706 = vmatprep.subr.bf16.mxu0 %v4508
    %4707 = vmatpush1.bf16.msra.mxu0 %v4507
    %4708 = vmatprep.subr.bf16.mxu0 %v4512
    %4709 = vmatpush1.bf16.msra.mxu0 %v4511
    %4710 = vmatprep.subr.bf16.mxu0 %v4516
    %4711 = vmatpush1.bf16.msra.mxu0 %v4515
    %4712 = vmatprep.subr.bf16.mxu0 %v4520
    %4713 = vmatpush1.bf16.msra.mxu0 %v4519
    %4714 = vmatprep.subr.bf16.mxu0 %v4524
    %4715 = vmatpush1.bf16.msra.mxu0 %v4523
    %4716 = vmatprep.subr.bf16.mxu0 %v4528
    %4717 = vmatpush1.bf16.msra.mxu0 %v4527
    %4718 = vmatprep.subr.bf16.mxu0 %v4532
    %4719 = vmatpush1.bf16.msra.mxu0 %v4531
    %4720 = vmatprep.subr.bf16.mxu0 %v4536
    %4721 = vmatpush1.bf16.msra.mxu0 %v4535
    %4722 = vmatprep.subr.bf16.mxu0 %v4540
    %4723 = vmatpush1.bf16.msra.mxu0 %v4539
    %4724 = vmatprep.subr.bf16.mxu0 %v4544
    %4725 = vmatpush1.bf16.msra.mxu0 %v4543
    %4726 = vmatprep.subr.bf16.mxu0 %v4548
    %4727 = vmatpush1.bf16.msra.mxu0 %v4547
    %4728 = vmatprep.subr.bf16.mxu0 %v4552
    %4729 = vmatpush1.bf16.msra.mxu0 %v4551
    %4730 = vmatprep.mubr.bf16.mxu0 %v4424
    %4731 = vmatmul.mubr.bf16.gmra.mrb[0].mxu0 %v4423
    %v4732 = vpop.f32.mrb[0].mxu0
    %v4733 = vadd.f32 %v4692, %v4732
    %v4734 = vpop.f32.mrb[0].mxu0
    %v4735 = vadd.f32 %v4694, %v4734
    %v4736 = vpop.f32.mrb[0].mxu0
    %v4737 = vpop.f32.mrb[0].mxu0
    %4738 = vdwg.mxu0
    %v4739 = vmax.f32 %v4651, 0.0
    %v4740 = vmax.f32 %v4653, 0.0
    %v4741 = vmax.f32 %v4733, 0.0
    %v4742 = vmax.f32 %v4735, 0.0
    %v4743 = vpack.c.bf16 %v4739, %v4739
    %v4744 = vpack.c.bf16 %v4740, %v4740
    %v4745 = vpack.c.bf16 %v4741, %v4741
    %v4746 = vpack.c.bf16 %v4742, %v4742
    %v4747 = vld [vmem:[#allocation3] sm:$0xff]
    %v4748 = vld [vmem:[#allocation3 + $0x8] sm:$0xff]
    %v4749 = vld [vmem:[#allocation3 + $0x10] sm:$0xff]
    %v4750 = vld [vmem:[#allocation3 + $0x18] sm:$0xff]
    %v4751 = vld [vmem:[#allocation3 + $0x20] sm:$0xff]
    %v4752 = vld [vmem:[#allocation3 + $0x28] sm:$0xff]
    %v4753 = vld [vmem:[#allocation3 + $0x30] sm:$0xff]
    %v4754 = vld [vmem:[#allocation3 + $0x38] sm:$0xff]
    %v4755 = vld [vmem:[#allocation3 + $0x40] sm:$0xff]
    %v4756 = vld [vmem:[#allocation3 + $0x48] sm:$0xff]
    %v4757 = vld [vmem:[#allocation3 + $0x50] sm:$0xff]
    %v4758 = vld [vmem:[#allocation3 + $0x58] sm:$0xff]
    %v4759 = vld [vmem:[#allocation3 + $0x60] sm:$0xff]
    %v4760 = vld [vmem:[#allocation3 + $0x68] sm:$0xff]
    %v4761 = vld [vmem:[#allocation3 + $0x70] sm:$0xff]
    %v4762 = vld [vmem:[#allocation3 + $0x78] sm:$0xff]
    %v4763 = vld [vmem:[#allocation3 + $0x80] sm:$0xff]
    %v4764 = vld [vmem:[#allocation3 + $0x88] sm:$0xff]
    %v4765 = vld [vmem:[#allocation3 + $0x90] sm:$0xff]
    %v4766 = vld [vmem:[#allocation3 + $0x98] sm:$0xff]
    %v4767 = vld [vmem:[#allocation3 + $0xa0] sm:$0xff]
    %v4768 = vld [vmem:[#allocation3 + $0xa8] sm:$0xff]
    %v4769 = vld [vmem:[#allocation3 + $0xb0] sm:$0xff]
    %v4770 = vld [vmem:[#allocation3 + $0xb8] sm:$0xff]
    %v4771 = vld [vmem:[#allocation3 + $0xc0] sm:$0xff]
    %v4772 = vld [vmem:[#allocation3 + $0xc8] sm:$0xff]
    %v4773 = vld [vmem:[#allocation3 + $0xd0] sm:$0xff]
    %v4774 = vld [vmem:[#allocation3 + $0xd8] sm:$0xff]
    %v4775 = vld [vmem:[#allocation3 + $0xe0] sm:$0xff]
    %v4776 = vld [vmem:[#allocation3 + $0xe8] sm:$0xff]
    %v4777 = vld [vmem:[#allocation3 + $0xf0] sm:$0xff]
    %v4778 = vld [vmem:[#allocation3 + $0xf8] sm:$0xff]
    %v4779 = vld [vmem:[%s6] sm:$0x1]
    %v4781 = vlaneseq
    %v4782 = vshrl.u32 %v4781, 7
    %v4783 = vsub.s32 0, %v4782
    %v4784 = vrot.slane %v4779, %v4783
    %4786 = vmatprep.subr.bf16.mxu0 0
    %4787 = vmatpush1.bf16.msra.mxu0 %v4747
    %4788 = vmatprep.subr.bf16.mxu0 0
    %4789 = vmatpush1.bf16.msra.mxu0 %v4748
    %4790 = vmatprep.subr.bf16.mxu0 0
    %4791 = vmatpush1.bf16.msra.mxu0 %v4749
    %4792 = vmatprep.subr.bf16.mxu0 0
    %4793 = vmatpush1.bf16.msra.mxu0 %v4750
    %4794 = vmatprep.subr.bf16.mxu0 0
    %4795 = vmatpush1.bf16.msra.mxu0 %v4751
    %4796 = vmatprep.subr.bf16.mxu0 0
    %4797 = vmatpush1.bf16.msra.mxu0 %v4752
    %4798 = vmatprep.subr.bf16.mxu0 0
    %4799 = vmatpush1.bf16.msra.mxu0 %v4753
    %4800 = vmatprep.subr.bf16.mxu0 0
    %4801 = vmatpush1.bf16.msra.mxu0 %v4754
    %4802 = vmatprep.subr.bf16.mxu0 0
    %4803 = vmatpush1.bf16.msra.mxu0 %v4755
    %4804 = vmatprep.subr.bf16.mxu0 0
    %4805 = vmatpush1.bf16.msra.mxu0 %v4756
    %4806 = vmatprep.subr.bf16.mxu0 0
    %4807 = vmatpush1.bf16.msra.mxu0 %v4757
    %4808 = vmatprep.subr.bf16.mxu0 0
    %4809 = vmatpush1.bf16.msra.mxu0 %v4758
    %4810 = vmatprep.subr.bf16.mxu0 0
    %4811 = vmatpush1.bf16.msra.mxu0 %v4759
    %4812 = vmatprep.subr.bf16.mxu0 0
    %4813 = vmatpush1.bf16.msra.mxu0 %v4760
    %4814 = vmatprep.subr.bf16.mxu0 0
    %4815 = vmatpush1.bf16.msra.mxu0 %v4761
    %4816 = vmatprep.subr.bf16.mxu0 0
    %4817 = vmatpush1.bf16.msra.mxu0 %v4762
    %4818 = vmatprep.mubr.bf16.mxu0 %v4744
    %4819 = vmatmul.mubr.bf16.gmra.mrb[0].mxu0 %v4743
    %v4820 = vpop.f32.mrb[0].mxu0
    %v4821 = vadd.f32 %v4784, %v4820
    %v4822 = vpop.f32.mrb[0].mxu0
    %v4823 = vpop.f32.mrb[0].mxu0
    %v4824 = vpop.f32.mrb[0].mxu0
    %4825 = vdwg.mxu0
    %4826 = vmatprep.subr.bf16.mxu0 0
    %4827 = vmatpush1.bf16.msra.mxu0 %v4763
    %4828 = vmatprep.subr.bf16.mxu0 0
    %4829 = vmatpush1.bf16.msra.mxu0 %v4764
    %4830 = vmatprep.subr.bf16.mxu0 0
    %4831 = vmatpush1.bf16.msra.mxu0 %v4765
    %4832 = vmatprep.subr.bf16.mxu0 0
    %4833 = vmatpush1.bf16.msra.mxu0 %v4766
    %4834 = vmatprep.subr.bf16.mxu0 0
    %4835 = vmatpush1.bf16.msra.mxu0 %v4767
    %4836 = vmatprep.subr.bf16.mxu0 0
    %4837 = vmatpush1.bf16.msra.mxu0 %v4768
    %4838 = vmatprep.subr.bf16.mxu0 0
    %4839 = vmatpush1.bf16.msra.mxu0 %v4769
    %4840 = vmatprep.subr.bf16.mxu0 0
    %4841 = vmatpush1.bf16.msra.mxu0 %v4770
    %4842 = vmatprep.subr.bf16.mxu0 0
    %4843 = vmatpush1.bf16.msra.mxu0 %v4771
    %4844 = vmatprep.subr.bf16.mxu0 0
    %4845 = vmatpush1.bf16.msra.mxu0 %v4772
    %4846 = vmatprep.subr.bf16.mxu0 0
    %4847 = vmatpush1.bf16.msra.mxu0 %v4773
    %4848 = vmatprep.subr.bf16.mxu0 0
    %4849 = vmatpush1.bf16.msra.mxu0 %v4774
    %4850 = vmatprep.subr.bf16.mxu0 0
    %4851 = vmatpush1.bf16.msra.mxu0 %v4775
    %4852 = vmatprep.subr.bf16.mxu0 0
    %4853 = vmatpush1.bf16.msra.mxu0 %v4776
    %4854 = vmatprep.subr.bf16.mxu0 0
    %4855 = vmatpush1.bf16.msra.mxu0 %v4777
    %4856 = vmatprep.subr.bf16.mxu0 0
    %4857 = vmatpush1.bf16.msra.mxu0 %v4778
    %4858 = vmatprep.mubr.bf16.mxu0 %v4746
    %4859 = vmatmul.mubr.bf16.gmra.mrb[0].mxu0 %v4745
    %v4860 = vpop.f32.mrb[0].mxu0
    %v4861 = vadd.f32 %v4821, %v4860
    %v4862 = vpop.f32.mrb[0].mxu0
    %v4863 = vpop.f32.mrb[0].mxu0
    %v4864 = vpop.f32.mrb[0].mxu0
    %4865 = vdwg.mxu0
    %v4866 = vxor.u32 %v4861, 2147483648
    %v4867 = vmul.f32 %v4866, 1.442695
    %v4868 = vpow.pop %v4867
    %v4869 = vadd.f32 %v4868, 1.0
    %v4870 = vrcp.pop %v4869
    %v4871 = vmul.f32 1.0, %v4870
    %4872 = vst [vmem:[#allocation8] sm:$0x3] %v4871
    // Predicated region
    $region60: #{textcnn_forward.1} parent=1 // pred_check
      _
    $region61: #{textcnn_forward.1} parent=1 // pred_check_branch
      %4874 = sbr.rel (0) target = $region63
    $region62: #{textcnn_forward.1} parent=1 // pred_region
      %s4876 = ssub.s32 32, 32
      %4877 = vsyncadd [#allocation7], %s4876
      %s4879 = sshll.u32 [#allocation8], 4
      %s4880 = int_to_ptr.vmem [resolvable:$true] %s4879
      %4882 = dma.vmem_to_hbm [thread:$0]  %s4880, 32, %s7, [#allocation7]
    $region63: #{textcnn_forward.1} parent=1 // pred_fallthru
      _
    // Predicated region
    $region64: #{textcnn_forward.1} parent=1 // pred_check
      _
    $region65: #{textcnn_forward.1} parent=1 // pred_check_branch
      %4884 = sbr.rel (0) target = $region67
    $region66: #{textcnn_forward.1} parent=1 // pred_region
      %4885 = dma.done [#allocation7], 32
    $region67: #{textcnn_forward.1} parent=1 // pred_fallthru
      _
    %4886 = vsyncpa [#allocation6], 1
    %4887 = vsyncpa [#allocation7], 1
  %4888 = vsyncmov [#allocation4]
  %s4889 = vpop.sfrf %4888
  %p4890 = scmp.eq.s32.totalorder %s4889, 0
  %p4891 = pneg %p4890
  %4893 = shalt.err (%p4891)
  %s4894 = scalar_lea.sflag [#allocation4], 1
  %4895 = vsyncmov %s4894
  %s4896 = vpop.sfrf %4895
  %p4897 = scmp.eq.s32.totalorder %s4896, 0
  %p4898 = pneg %p4897
  %4900 = shalt.err (%p4898)

</llo_original>
